<compile_context>
chip_gen: v7x
topology: tpu7x:2x2x1
jax: 0.10.0
libtpu: 0.0.40
codegen_flags: <defaults>
</compile_context>

<pallas_src>
import jax
import jax.numpy as jnp
from jax import lax
from jax.experimental import pallas as pl
from jax.experimental.pallas import tpu as pltpu


def _make_resblock_kernel(*, H, Wp, Cp, K, tile_h, L_in, L_mid, L_out,
                          front_flat, tail_flat, batch_stride):
    pad = K // 2
    THW = tile_h * Wp                      # flat rows advanced per row tile
    res_off = 2 * pad * Wp + pad           # residual slice offset inside the x slab
    base2 = front_flat - pad               # conv2 tap base offset inside mid scratch
    mid_read = front_flat + L_mid + Wp     # conv2 never reads past this flat row

    def kernel(x_hbm, w1_ref, b1_ref, w2_ref, b2_ref, cmask_ref,
               o_ref, x_buf, mid_ref, sem):
        # x_hbm    : (N*Rtot*Wp, Cp) bf16 in HBM (manual DMA)
        # w*_ref   : (K*K, Cp, Cp) bf16, resident (constant index map)
        # b*_ref   : (1, Cp) f32
        # cmask_ref: (L_mid, Cp) f32 -- 1.0 on real image columns, 0.0 on wrap columns
        # o_ref    : (1, L_out, Cp) f32
        # x_buf    : VMEM (2, L_in, Cp) bf16   -- double-buffered input slab
        # mid_ref  : VMEM (front_flat + L_mid + tail_flat, Cp) bf16 -- conv1+ReLU out
        n = pl.program_id(0)
        t = pl.program_id(1)
        T = pl.num_programs(1)
        slot = t % 2

        def slab_copy(tt, sl):
            base = pl.multiple_of(n * batch_stride + tt * THW, 8)
            return pltpu.make_async_copy(x_hbm.at[pl.ds(base, L_in)],
                                         x_buf.at[sl], sem.at[sl])

        # First row tile of this batch element: cold-start its DMA and (re)zero the
        # never-otherwise-written halo regions of the intermediate scratch (cheap).
        @pl.when(t == 0)
        def _():
            slab_copy(t, slot).start()
            mid_ref[0:front_flat, :] = jnp.zeros((front_flat, Cp), jnp.bfloat16)
            mid_ref[front_flat + L_mid:, :] = jnp.zeros((tail_flat, Cp), jnp.bfloat16)

        # Prefetch the next row tile of the same batch element (overlaps with compute).
        @pl.when(t + 1 < T)
        def _():
            slab_copy(t + 1, 1 - slot).start()

        # Wait for this tile's input slab.
        slab_copy(t, slot).wait()

        xv = x_buf[slot]                                        # (L_in, Cp) bf16

        # ---- conv1 + bias + ReLU: K*K accumulating per-tap MXU matmuls -------------
        acc1 = None
        for dy in range(K):
            for dx in range(K):
                tap = xv[dy * Wp + dx: dy * Wp + dx + L_mid, :]          # bf16
                d = jnp.dot(tap, w1_ref[dy * K + dx],
                            preferred_element_type=jnp.float32)
                acc1 = d if acc1 is None else acc1 + d
        # Bias + ReLU, then kill the wrap columns with one resident-mask multiply.
        acc1 = jnp.maximum(acc1 + b1_ref[...], 0.0) * cmask_ref[...]
        mid_ref[front_flat:front_flat + L_mid, :] = acc1.astype(jnp.bfloat16)

        # Rows above the image exist only on the first row tile (tile_h >= pad).
        @pl.when(t == 0)
        def _():
            mid_ref[front_flat:front_flat + pad * Wp, :] = (
                jnp.zeros((pad * Wp, Cp), jnp.bfloat16))

        # Rows below the image (trailing row tiles): zero a fixed-size window whose
        # dynamic start puts any overhang inside the (already zero) tail halo.
        n_bot = (t + 1) * tile_h + pad - H
        @pl.when(n_bot > 0)
        def _():
            start = pl.multiple_of(front_flat + L_mid - n_bot * Wp, 8)
            mid_ref[pl.ds(start, tail_flat), :] = (
                jnp.zeros((tail_flat, Cp), jnp.bfloat16))

        # ---- conv2 + bias: K*K accumulating per-tap matmuls, then residual add -----
        mv = mid_ref[0:mid_read, :]                             # bf16
        acc2 = None
        for dy in range(K):
            for dx in range(K):
                off = base2 + dy * Wp + dx
                tap = mv[off: off + L_out, :]
                d = jnp.dot(tap, w2_ref[dy * K + dx],
                            preferred_element_type=jnp.float32)
                acc2 = d if acc2 is None else acc2 + d
        acc2 = acc2 + b2_ref[...]
        res = acc2 + xv[res_off: res_off + L_out, :].astype(jnp.float32)
        o_ref[0] = res.astype(o_ref.dtype)

    return kernel


def resblock_forward(x_nchw, w1_oihw, b1, w2_oihw, b2, *, tile_h=8):
    """ResBlock forward. x_nchw: (N, C, H, W) f32; weights in PyTorch OIHW layout."""
    N, C, H, W = x_nchw.shape
    Cout, Cin, K, _ = w1_oihw.shape
    assert Cout == C and Cin == C
    assert K % 2 == 1, "default_conv-style 'same' padding assumes odd kernel size"
    pad = K // 2
    LANE = 128

    Cp = ((C + LANE - 1) // LANE) * LANE            # lane-dense channel padding
    Wp = ((W + 2 * pad + 7) // 8) * 8               # sublane-aligned padded width

    tile_h = max(pad, min(tile_h, H))               # raise on v6e/v5e for wide images
    T = -(-H // tile_h)                             # row tiles per batch element
    Ht = T * tile_h

    rows_in = tile_h + 4 * pad + 1                  # +1 slack row keeps taps in bounds
    rows_mid = tile_h + 2 * pad
    L_in = rows_in * Wp
    L_mid = rows_mid * Wp
    L_out = tile_h * Wp
    front_flat = ((pad + 15) // 16) * 16            # aligned zero front halo (>= pad)
    max_bot = Ht - H + pad                          # worst-case rows below the image
    tail_flat = max_bot * Wp                        # zero tail halo (>= Wp >= pad)
    Rtot = Ht + 4 * pad + 1
    batch_stride = Rtot * Wp

    # ---- glue: NCHW -> NHWC, zero-pad channels/rows/cols, flatten, cast to bf16 ----
    # TODO(synk): when chaining ResBlocks, keep activations in this padded flat NHWC
    # bf16 layout between blocks instead of paying these HBM passes on every call.
    x = jnp.transpose(x_nchw, (0, 2, 3, 1))
    xpad = jnp.pad(x, ((0, 0),
                       (2 * pad, (Ht - H) + 2 * pad + 1),
                       (pad, Wp - W - pad),
                       (0, Cp - C)))
    xflat = xpad.reshape(N * Rtot * Wp, Cp).astype(jnp.bfloat16)   # bf16 slab in HBM

    def prep_w(w):                                  # OIHW -> (K*K, Cp, Cp) bf16
        wt = jnp.transpose(w, (2, 3, 1, 0))
        wt = jnp.pad(wt, ((0, 0), (0, 0), (0, Cp - C), (0, Cp - C)))
        return wt.reshape(K * K, Cp, Cp).astype(jnp.bfloat16)

    w1 = prep_w(w1_oihw)
    w2 = prep_w(w2_oihw)
    b1r = jnp.pad(b1, (0, Cp - C)).reshape(1, Cp).astype(jnp.float32)
    b2r = jnp.pad(b2, (0, Cp - C)).reshape(1, Cp).astype(jnp.float32)

    # Resident column mask (no in-kernel iota/mod): 1.0 on real image columns.
    cmask = ((jnp.arange(L_mid) % Wp) < W).astype(jnp.float32)
    cmask = jnp.tile(cmask[:, None], (1, Cp))

    kernel = _make_resblock_kernel(H=H, Wp=Wp, Cp=Cp, K=K, tile_h=tile_h,
                                   L_in=L_in, L_mid=L_mid, L_out=L_out,
                                   front_flat=front_flat, tail_flat=tail_flat,
                                   batch_stride=batch_stride)

    out_flat = pl.pallas_call(
        kernel,
        out_shape=jax.ShapeDtypeStruct((N, Ht * Wp, Cp), x_nchw.dtype),
        grid_spec=pltpu.PrefetchScalarGridSpec(
            num_scalar_prefetch=0,
            grid=(N, T),
            in_specs=[
                pl.BlockSpec(memory_space=pl.ANY),                      # x (HBM, DMA)
                pl.BlockSpec((K * K, Cp, Cp), lambda n, t: (0, 0, 0)),  # w1 resident
                pl.BlockSpec((1, Cp), lambda n, t: (0, 0)),             # b1
                pl.BlockSpec((K * K, Cp, Cp), lambda n, t: (0, 0, 0)),  # w2 resident
                pl.BlockSpec((1, Cp), lambda n, t: (0, 0)),             # b2
                pl.BlockSpec((L_mid, Cp), lambda n, t: (0, 0)),         # column mask
            ],
            out_specs=pl.BlockSpec((1, L_out, Cp), lambda n, t: (n, t, 0)),
            scratch_shapes=[
                pltpu.VMEM((2, L_in, Cp), jnp.bfloat16),                # input dbl buf
                pltpu.VMEM((front_flat + L_mid + tail_flat, Cp), jnp.bfloat16),
                pltpu.SemaphoreType.DMA((2,)),
            ]),
        compiler_params=pltpu.CompilerParams(
            dimension_semantics=("parallel", "arbitrary"),
            vmem_limit_bytes=48 * 1024 * 1024),   # leaves headroom even on v7x (64 MiB)
    )(xflat, w1, b1r, w2, b2r, cmask)

    # ---- glue: trim padded rows/cols/channels and return to NCHW ----
    out = out_flat.reshape(N, Ht, Wp, Cp)[:, :H, :W, :C]
    return jnp.transpose(out, (0, 3, 1, 2))


def resblock_reference(x, w1, b1, w2, b2):
    """Pure-JAX f32 reference matching the PyTorch module semantics."""
    pad = w1.shape[-1] // 2

    def conv(z, w, b):
        y = lax.conv_general_dilated(
            z, w, window_strides=(1, 1),
            padding=((pad, pad), (pad, pad)),
            dimension_numbers=("NCHW", "OIHW", "NCHW"))
        return y + b[None, :, None, None]

    r = jax.nn.relu(conv(x, w1, b1))
    r = conv(r, w2, b2)
    return r + x


if __name__ == "__main__":
    key = jax.random.PRNGKey(0)
    N, C, H, W, K = 2, 4, 16, 16, 3
    k1, k2, k3, k4, k5 = jax.random.split(key, 5)

    x = jax.random.normal(k1, (N, C, H, W), dtype=jnp.float32)
    fan = float(C * K * K)
    w1 = jax.random.normal(k2, (C, C, K, K), dtype=jnp.float32) / jnp.sqrt(fan)
    b1 = 0.1 * jax.random.normal(k3, (C,), dtype=jnp.float32)
    w2 = jax.random.normal(k4, (C, C, K, K), dtype=jnp.float32) / jnp.sqrt(fan)
    b2 = 0.1 * jax.random.normal(k5, (C,), dtype=jnp.float32)

    out = resblock_forward(x, w1, b1, w2, b2)
    jax.block_until_ready(out)

    ref = resblock_reference(x, w1, b1, w2, b2)
    assert out.shape == ref.shape, (out.shape, ref.shape)
    max_err = float(jnp.max(jnp.abs(out - ref)))
    scale = float(jnp.max(jnp.abs(ref)))
    # bf16 MXU operands, bf16 intermediate and bf16 residual stream (f32 accumulation
    # throughout) => ~1% relative error at these magnitudes.
    assert max_err <= 1e-2 * scale + 3e-2, f"max abs err {max_err} (ref scale {scale})"
    print("KERNEL_OK")
</pallas_src>

<mosaic_0001>
module attributes {stable_mosaic.version = 11 : i64} {
  func.func @kernel(%arg0: i32, %arg1: i32, %arg2: memref<1008x128xbf16, #tpu.memory_space<any>>, %arg3: memref<9x128x128xbf16, #tpu.memory_space<vmem>>, %arg4: memref<1x128xf32, #tpu.memory_space<vmem>>, %arg5: memref<9x128x128xbf16, #tpu.memory_space<vmem>>, %arg6: memref<1x128xf32, #tpu.memory_space<vmem>>, %arg7: memref<240x128xf32, #tpu.memory_space<vmem>>, %arg8: memref<1x192x128xf32, #tpu.memory_space<vmem>>, %arg9: memref<2x312x128xbf16, #tpu.memory_space<vmem>>, %arg10: memref<280x128xbf16, #tpu.memory_space<vmem>>, %arg11: memref<2x!tpu.dma_semaphore, #tpu.memory_space<semaphore_mem>>) attributes {dimension_semantics = [#tpu.dimension_semantics<parallel>, #tpu.dimension_semantics<arbitrary>], iteration_bounds = array<i64: 2, 2>, scalar_prefetch = 0 : i64, scratch_operands = 3 : i64, tpu.core_type = #tpu.core_type<tc>, window_params = [{}, {pipeline_mode = #tpu.pipeline_mode<synchronous>, transform_indices = @transform_1, window_bounds = array<i64: 9, 128, 128>}, {pipeline_mode = #tpu.pipeline_mode<synchronous>, transform_indices = @transform_2, window_bounds = array<i64: 1, 128>}, {pipeline_mode = #tpu.pipeline_mode<synchronous>, transform_indices = @transform_3, window_bounds = array<i64: 9, 128, 128>}, {pipeline_mode = #tpu.pipeline_mode<synchronous>, transform_indices = @transform_4, window_bounds = array<i64: 1, 128>}, {pipeline_mode = #tpu.pipeline_mode<synchronous>, transform_indices = @transform_5, window_bounds = array<i64: 240, 128>}, {transform_indices = @transform_6, window_bounds = array<i64: 1, 192, 128>}]} {
    %c2_i32 = arith.constant 2 : i32
    %c0_i32 = arith.constant 0 : i32
    %0 = arith.cmpi eq, %c2_i32, %c0_i32 : i32
    %c1_i32 = arith.constant 1 : i32
    %1 = arith.select %0, %c1_i32, %c2_i32 : i32
    %2 = arith.remsi %arg1, %1 : i32
    %c0_i32_0 = arith.constant 0 : i32
    %3 = arith.cmpi ne, %2, %c0_i32_0 : i32
    %c0_i32_1 = arith.constant 0 : i32
    %4 = arith.cmpi slt, %2, %c0_i32_1 : i32
    %c0_i32_2 = arith.constant 0 : i32
    %5 = arith.cmpi slt, %1, %c0_i32_2 : i32
    %6 = arith.xori %4, %5 : i1
    %7 = arith.andi %6, %3 : i1
    %8 = arith.addi %2, %1 : i32
    %9 = arith.select %7, %8, %2 : i32
    %c0_i32_3 = arith.constant 0 : i32
    %10 = arith.cmpi eq, %arg1, %c0_i32_3 : i32
    %11 = arith.extui %10 : i1 to i32
    %c0_i32_4 = arith.constant 0 : i32
    %12 = arith.cmpi ne, %11, %c0_i32_4 : i32
    scf.if %12 {
      %c504_i32_94 = arith.constant 504 : i32
      %146 = arith.muli %arg0, %c504_i32_94 : i32
      %c192_i32_95 = arith.constant 192 : i32
      %147 = arith.muli %arg1, %c192_i32_95 : i32
      %148 = arith.addi %146, %147 : i32
      %149 = tpu.assume_multiple %148, 8 : i32
      %c0_i32_96 = arith.constant 0 : i32
      %150 = tpu.memref_slice %arg2[%149, %c0_i32_96] : memref<1008x128xbf16, #tpu.memory_space<any>> -> memref<312x128xbf16, #tpu.memory_space<any>>
      %c0_i32_97 = arith.constant 0 : i32
      %c0_i32_98 = arith.constant 0 : i32
      %151 = tpu.memref_slice %arg9[%9, %c0_i32_97, %c0_i32_98] : memref<2x312x128xbf16, #tpu.memory_space<vmem>> -> memref<1x312x128xbf16, #tpu.memory_space<vmem>>
      %152 = tpu.memref_squeeze %151 : memref<1x312x128xbf16, #tpu.memory_space<vmem>> -> memref<312x128xbf16, #tpu.memory_space<vmem>>
      %153 = tpu.memref_slice %arg11[%9] : memref<2x!tpu.dma_semaphore, #tpu.memory_space<semaphore_mem>> -> memref<1x!tpu.dma_semaphore, #tpu.memory_space<semaphore_mem>>
      %154 = tpu.memref_squeeze %153 : memref<1x!tpu.dma_semaphore, #tpu.memory_space<semaphore_mem>> -> memref<!tpu.dma_semaphore, #tpu.memory_space<semaphore_mem>>
      tpu.enqueue_dma source(%150 : memref<312x128xbf16, #tpu.memory_space<any>>) target(%152 : memref<312x128xbf16, #tpu.memory_space<vmem>>) target_semaphore(%154 : memref<!tpu.dma_semaphore, #tpu.memory_space<semaphore_mem>>)
      %cst_99 = arith.constant 0.000000e+00 : bf16
      %155 = vector.broadcast %cst_99 : bf16 to vector<16x128xbf16>
      %c0_100 = arith.constant 0 : index
      %c0_101 = arith.constant 0 : index
      %156 = vector.load %arg10[%c0_100, %c0_101] : memref<280x128xbf16, #tpu.memory_space<vmem>>, vector<16x128xbf16>
      tpu.vector_store %arg10[%c0_100, %c0_101], %155 {strides = array<i32>} : memref<280x128xbf16, #tpu.memory_space<vmem>>, vector<16x128xbf16>,
      %cst_102 = arith.constant 0.000000e+00 : bf16
      %157 = vector.broadcast %cst_102 : bf16 to vector<24x128xbf16>
      %c256 = arith.constant 256 : index
      %c0_103 = arith.constant 0 : index
      %158 = vector.load %arg10[%c256, %c0_103] : memref<280x128xbf16, #tpu.memory_space<vmem>>, vector<24x128xbf16>
      tpu.vector_store %arg10[%c256, %c0_103], %157 {strides = array<i32>} : memref<280x128xbf16, #tpu.memory_space<vmem>>, vector<24x128xbf16>,
    } else {
    }
    %c1_i32_5 = arith.constant 1 : i32
    %13 = arith.addi %arg1, %c1_i32_5 : i32
    %c2_i32_6 = arith.constant 2 : i32
    %14 = arith.cmpi slt, %13, %c2_i32_6 : i32
    %15 = arith.extui %14 : i1 to i32
    %c0_i32_7 = arith.constant 0 : i32
    %16 = arith.cmpi ne, %15, %c0_i32_7 : i32
    scf.if %16 {
      %c1_i32_94 = arith.constant 1 : i32
      %146 = arith.addi %arg1, %c1_i32_94 : i32
      %c1_i32_95 = arith.constant 1 : i32
      %147 = arith.subi %c1_i32_95, %9 : i32
      %c504_i32_96 = arith.constant 504 : i32
      %148 = arith.muli %arg0, %c504_i32_96 : i32
      %c192_i32_97 = arith.constant 192 : i32
      %149 = arith.muli %146, %c192_i32_97 : i32
      %150 = arith.addi %148, %149 : i32
      %151 = tpu.assume_multiple %150, 8 : i32
      %c0_i32_98 = arith.constant 0 : i32
      %152 = tpu.memref_slice %arg2[%151, %c0_i32_98] : memref<1008x128xbf16, #tpu.memory_space<any>> -> memref<312x128xbf16, #tpu.memory_space<any>>
      %c0_i32_99 = arith.constant 0 : i32
      %c0_i32_100 = arith.constant 0 : i32
      %153 = tpu.memref_slice %arg9[%147, %c0_i32_99, %c0_i32_100] : memref<2x312x128xbf16, #tpu.memory_space<vmem>> -> memref<1x312x128xbf16, #tpu.memory_space<vmem>>
      %154 = tpu.memref_squeeze %153 : memref<1x312x128xbf16, #tpu.memory_space<vmem>> -> memref<312x128xbf16, #tpu.memory_space<vmem>>
      %155 = tpu.memref_slice %arg11[%147] : memref<2x!tpu.dma_semaphore, #tpu.memory_space<semaphore_mem>> -> memref<1x!tpu.dma_semaphore, #tpu.memory_space<semaphore_mem>>
      %156 = tpu.memref_squeeze %155 : memref<1x!tpu.dma_semaphore, #tpu.memory_space<semaphore_mem>> -> memref<!tpu.dma_semaphore, #tpu.memory_space<semaphore_mem>>
      tpu.enqueue_dma source(%152 : memref<312x128xbf16, #tpu.memory_space<any>>) target(%154 : memref<312x128xbf16, #tpu.memory_space<vmem>>) target_semaphore(%156 : memref<!tpu.dma_semaphore, #tpu.memory_space<semaphore_mem>>)
    } else {
    }
    %c504_i32 = arith.constant 504 : i32
    %17 = arith.muli %arg0, %c504_i32 : i32
    %c192_i32 = arith.constant 192 : i32
    %18 = arith.muli %arg1, %c192_i32 : i32
    %19 = arith.addi %17, %18 : i32
    %20 = tpu.assume_multiple %19, 8 : i32
    %c0_i32_8 = arith.constant 0 : i32
    %21 = tpu.memref_slice %arg2[%20, %c0_i32_8] : memref<1008x128xbf16, #tpu.memory_space<any>> -> memref<312x128xbf16, #tpu.memory_space<any>>
    %c0_i32_9 = arith.constant 0 : i32
    %c0_i32_10 = arith.constant 0 : i32
    %22 = tpu.memref_slice %arg9[%9, %c0_i32_9, %c0_i32_10] : memref<2x312x128xbf16, #tpu.memory_space<vmem>> -> memref<1x312x128xbf16, #tpu.memory_space<vmem>>
    %23 = tpu.memref_squeeze %22 : memref<1x312x128xbf16, #tpu.memory_space<vmem>> -> memref<312x128xbf16, #tpu.memory_space<vmem>>
    %24 = tpu.memref_slice %arg11[%9] : memref<2x!tpu.dma_semaphore, #tpu.memory_space<semaphore_mem>> -> memref<1x!tpu.dma_semaphore, #tpu.memory_space<semaphore_mem>>
    %25 = tpu.memref_squeeze %24 : memref<1x!tpu.dma_semaphore, #tpu.memory_space<semaphore_mem>> -> memref<!tpu.dma_semaphore, #tpu.memory_space<semaphore_mem>>
    tpu.wait_dma2 semaphore(%25 : memref<!tpu.dma_semaphore, #tpu.memory_space<semaphore_mem>>) src(%21 : memref<312x128xbf16, #tpu.memory_space<any>>) dst(%23 : memref<312x128xbf16, #tpu.memory_space<vmem>>)
    %26 = arith.index_cast %9 : i32 to index
    %c0 = arith.constant 0 : index
    %c0_11 = arith.constant 0 : index
    %27 = vector.load %arg9[%26, %c0, %c0_11] : memref<2x312x128xbf16, #tpu.memory_space<vmem>>, vector<1x312x128xbf16>
    %28 = vector.shape_cast %27 : vector<1x312x128xbf16> to vector<312x128xbf16>
    %29 = vector.extract_strided_slice %28 {offsets = [0, 0], sizes = [240, 128], strides = [1, 1]} : vector<312x128xbf16> to vector<240x128xbf16>
    %c0_12 = arith.constant 0 : index
    %c0_13 = arith.constant 0 : index
    %c0_14 = arith.constant 0 : index
    %30 = vector.load %arg3[%c0_12, %c0_13, %c0_14] : memref<9x128x128xbf16, #tpu.memory_space<vmem>>, vector<1x128x128xbf16>
    %31 = vector.shape_cast %30 : vector<1x128x128xbf16> to vector<128x128xbf16>
    %cst = arith.constant dense<0.000000e+00> : vector<240x128xf32>
    %32 = tpu.matmul %29, %31, %cst {dimension_numbers = #tpu.dot_dimension_numbers<[1], [0], [0], [1], [0, 0, 1, 1], [], []>} : vector<240x128xbf16>, vector<128x128xbf16>, vector<240x128xf32> -> vector<240x128xf32>
    %33 = vector.extract_strided_slice %28 {offsets = [1, 0], sizes = [240, 128], strides = [1, 1]} : vector<312x128xbf16> to vector<240x128xbf16>
    %c1 = arith.constant 1 : index
    %c0_15 = arith.constant 0 : index
    %c0_16 = arith.constant 0 : index
    %34 = vector.load %arg3[%c1, %c0_15, %c0_16] : memref<9x128x128xbf16, #tpu.memory_space<vmem>>, vector<1x128x128xbf16>
    %35 = vector.shape_cast %34 : vector<1x128x128xbf16> to vector<128x128xbf16>
    %cst_17 = arith.constant dense<0.000000e+00> : vector<240x128xf32>
    %36 = tpu.matmul %33, %35, %cst_17 {dimension_numbers = #tpu.dot_dimension_numbers<[1], [0], [0], [1], [0, 0, 1, 1], [], []>} : vector<240x128xbf16>, vector<128x128xbf16>, vector<240x128xf32> -> vector<240x128xf32>
    %37 = arith.addf %32, %36 : vector<240x128xf32>
    %38 = vector.extract_strided_slice %28 {offsets = [2, 0], sizes = [240, 128], strides = [1, 1]} : vector<312x128xbf16> to vector<240x128xbf16>
    %c2 = arith.constant 2 : index
    %c0_18 = arith.constant 0 : index
    %c0_19 = arith.constant 0 : index
    %39 = vector.load %arg3[%c2, %c0_18, %c0_19] : memref<9x128x128xbf16, #tpu.memory_space<vmem>>, vector<1x128x128xbf16>
    %40 = vector.shape_cast %39 : vector<1x128x128xbf16> to vector<128x128xbf16>
    %cst_20 = arith.constant dense<0.000000e+00> : vector<240x128xf32>
    %41 = tpu.matmul %38, %40, %cst_20 {dimension_numbers = #tpu.dot_dimension_numbers<[1], [0], [0], [1], [0, 0, 1, 1], [], []>} : vector<240x128xbf16>, vector<128x128xbf16>, vector<240x128xf32> -> vector<240x128xf32>
    %42 = arith.addf %37, %41 : vector<240x128xf32>
    %43 = vector.extract_strided_slice %28 {offsets = [24, 0], sizes = [240, 128], strides = [1, 1]} : vector<312x128xbf16> to vector<240x128xbf16>
    %c3 = arith.constant 3 : index
    %c0_21 = arith.constant 0 : index
    %c0_22 = arith.constant 0 : index
    %44 = vector.load %arg3[%c3, %c0_21, %c0_22] : memref<9x128x128xbf16, #tpu.memory_space<vmem>>, vector<1x128x128xbf16>
    %45 = vector.shape_cast %44 : vector<1x128x128xbf16> to vector<128x128xbf16>
    %cst_23 = arith.constant dense<0.000000e+00> : vector<240x128xf32>
    %46 = tpu.matmul %43, %45, %cst_23 {dimension_numbers = #tpu.dot_dimension_numbers<[1], [0], [0], [1], [0, 0, 1, 1], [], []>} : vector<240x128xbf16>, vector<128x128xbf16>, vector<240x128xf32> -> vector<240x128xf32>
    %47 = arith.addf %42, %46 : vector<240x128xf32>
    %48 = vector.extract_strided_slice %28 {offsets = [25, 0], sizes = [240, 128], strides = [1, 1]} : vector<312x128xbf16> to vector<240x128xbf16>
    %c4 = arith.constant 4 : index
    %c0_24 = arith.constant 0 : index
    %c0_25 = arith.constant 0 : index
    %49 = vector.load %arg3[%c4, %c0_24, %c0_25] : memref<9x128x128xbf16, #tpu.memory_space<vmem>>, vector<1x128x128xbf16>
    %50 = vector.shape_cast %49 : vector<1x128x128xbf16> to vector<128x128xbf16>
    %cst_26 = arith.constant dense<0.000000e+00> : vector<240x128xf32>
    %51 = tpu.matmul %48, %50, %cst_26 {dimension_numbers = #tpu.dot_dimension_numbers<[1], [0], [0], [1], [0, 0, 1, 1], [], []>} : vector<240x128xbf16>, vector<128x128xbf16>, vector<240x128xf32> -> vector<240x128xf32>
    %52 = arith.addf %47, %51 : vector<240x128xf32>
    %53 = vector.extract_strided_slice %28 {offsets = [26, 0], sizes = [240, 128], strides = [1, 1]} : vector<312x128xbf16> to vector<240x128xbf16>
    %c5 = arith.constant 5 : index
    %c0_27 = arith.constant 0 : index
    %c0_28 = arith.constant 0 : index
    %54 = vector.load %arg3[%c5, %c0_27, %c0_28] : memref<9x128x128xbf16, #tpu.memory_space<vmem>>, vector<1x128x128xbf16>
    %55 = vector.shape_cast %54 : vector<1x128x128xbf16> to vector<128x128xbf16>
    %cst_29 = arith.constant dense<0.000000e+00> : vector<240x128xf32>
    %56 = tpu.matmul %53, %55, %cst_29 {dimension_numbers = #tpu.dot_dimension_numbers<[1], [0], [0], [1], [0, 0, 1, 1], [], []>} : vector<240x128xbf16>, vector<128x128xbf16>, vector<240x128xf32> -> vector<240x128xf32>
    %57 = arith.addf %52, %56 : vector<240x128xf32>
    %58 = vector.extract_strided_slice %28 {offsets = [48, 0], sizes = [240, 128], strides = [1, 1]} : vector<312x128xbf16> to vector<240x128xbf16>
    %c6 = arith.constant 6 : index
    %c0_30 = arith.constant 0 : index
    %c0_31 = arith.constant 0 : index
    %59 = vector.load %arg3[%c6, %c0_30, %c0_31] : memref<9x128x128xbf16, #tpu.memory_space<vmem>>, vector<1x128x128xbf16>
    %60 = vector.shape_cast %59 : vector<1x128x128xbf16> to vector<128x128xbf16>
    %cst_32 = arith.constant dense<0.000000e+00> : vector<240x128xf32>
    %61 = tpu.matmul %58, %60, %cst_32 {dimension_numbers = #tpu.dot_dimension_numbers<[1], [0], [0], [1], [0, 0, 1, 1], [], []>} : vector<240x128xbf16>, vector<128x128xbf16>, vector<240x128xf32> -> vector<240x128xf32>
    %62 = arith.addf %57, %61 : vector<240x128xf32>
    %63 = vector.extract_strided_slice %28 {offsets = [49, 0], sizes = [240, 128], strides = [1, 1]} : vector<312x128xbf16> to vector<240x128xbf16>
    %c7 = arith.constant 7 : index
    %c0_33 = arith.constant 0 : index
    %c0_34 = arith.constant 0 : index
    %64 = vector.load %arg3[%c7, %c0_33, %c0_34] : memref<9x128x128xbf16, #tpu.memory_space<vmem>>, vector<1x128x128xbf16>
    %65 = vector.shape_cast %64 : vector<1x128x128xbf16> to vector<128x128xbf16>
    %cst_35 = arith.constant dense<0.000000e+00> : vector<240x128xf32>
    %66 = tpu.matmul %63, %65, %cst_35 {dimension_numbers = #tpu.dot_dimension_numbers<[1], [0], [0], [1], [0, 0, 1, 1], [], []>} : vector<240x128xbf16>, vector<128x128xbf16>, vector<240x128xf32> -> vector<240x128xf32>
    %67 = arith.addf %62, %66 : vector<240x128xf32>
    %68 = vector.extract_strided_slice %28 {offsets = [50, 0], sizes = [240, 128], strides = [1, 1]} : vector<312x128xbf16> to vector<240x128xbf16>
    %c8 = arith.constant 8 : index
    %c0_36 = arith.constant 0 : index
    %c0_37 = arith.constant 0 : index
    %69 = vector.load %arg3[%c8, %c0_36, %c0_37] : memref<9x128x128xbf16, #tpu.memory_space<vmem>>, vector<1x128x128xbf16>
    %70 = vector.shape_cast %69 : vector<1x128x128xbf16> to vector<128x128xbf16>
    %cst_38 = arith.constant dense<0.000000e+00> : vector<240x128xf32>
    %71 = tpu.matmul %68, %70, %cst_38 {dimension_numbers = #tpu.dot_dimension_numbers<[1], [0], [0], [1], [0, 0, 1, 1], [], []>} : vector<240x128xbf16>, vector<128x128xbf16>, vector<240x128xf32> -> vector<240x128xf32>
    %72 = arith.addf %67, %71 : vector<240x128xf32>
    %c0_39 = arith.constant 0 : index
    %c0_40 = arith.constant 0 : index
    %73 = vector.load %arg4[%c0_39, %c0_40] : memref<1x128xf32, #tpu.memory_space<vmem>>, vector<1x128xf32>
    %74 = vector.broadcast %73 : vector<1x128xf32> to vector<240x128xf32>
    %75 = arith.addf %72, %74 : vector<240x128xf32>
    %cst_41 = arith.constant 0.000000e+00 : f32
    %76 = vector.broadcast %cst_41 : f32 to vector<240x128xf32>
    %77 = arith.maximumf %75, %76 : vector<240x128xf32>
    %c0_42 = arith.constant 0 : index
    %c0_43 = arith.constant 0 : index
    %78 = vector.load %arg7[%c0_42, %c0_43] : memref<240x128xf32, #tpu.memory_space<vmem>>, vector<240x128xf32>
    %79 = arith.mulf %77, %78 : vector<240x128xf32>
    %80 = arith.truncf %79 : vector<240x128xf32> to vector<240x128xbf16>
    %c16 = arith.constant 16 : index
    %c0_44 = arith.constant 0 : index
    %81 = vector.load %arg10[%c16, %c0_44] : memref<280x128xbf16, #tpu.memory_space<vmem>>, vector<240x128xbf16>
    tpu.vector_store %arg10[%c16, %c0_44], %80 {strides = array<i32>} : memref<280x128xbf16, #tpu.memory_space<vmem>>, vector<240x128xbf16>,
    %c0_i32_45 = arith.constant 0 : i32
    %82 = arith.cmpi eq, %arg1, %c0_i32_45 : i32
    %83 = arith.extui %82 : i1 to i32
    %c0_i32_46 = arith.constant 0 : i32
    %84 = arith.cmpi ne, %83, %c0_i32_46 : i32
    scf.if %84 {
      %cst_94 = arith.constant 0.000000e+00 : bf16
      %146 = vector.broadcast %cst_94 : bf16 to vector<24x128xbf16>
      %c16_95 = arith.constant 16 : index
      %c0_96 = arith.constant 0 : index
      %147 = vector.load %arg10[%c16_95, %c0_96] : memref<280x128xbf16, #tpu.memory_space<vmem>>, vector<24x128xbf16>
      tpu.vector_store %arg10[%c16_95, %c0_96], %146 {strides = array<i32>} : memref<280x128xbf16, #tpu.memory_space<vmem>>, vector<24x128xbf16>,
    } else {
    }
    %c1_i32_47 = arith.constant 1 : i32
    %85 = arith.addi %arg1, %c1_i32_47 : i32
    %c8_i32 = arith.constant 8 : i32
    %86 = arith.muli %85, %c8_i32 : i32
    %c1_i32_48 = arith.constant 1 : i32
    %87 = arith.addi %86, %c1_i32_48 : i32
    %c16_i32 = arith.constant 16 : i32
    %88 = arith.subi %87, %c16_i32 : i32
    %c0_i32_49 = arith.constant 0 : i32
    %89 = arith.cmpi sgt, %88, %c0_i32_49 : i32
    %90 = arith.extui %89 : i1 to i32
    %c0_i32_50 = arith.constant 0 : i32
    %91 = arith.cmpi ne, %90, %c0_i32_50 : i32
    scf.if %91 {
      %c24_i32 = arith.constant 24 : i32
      %146 = arith.muli %88, %c24_i32 : i32
      %c256_i32 = arith.constant 256 : i32
      %147 = arith.subi %c256_i32, %146 : i32
      %148 = tpu.assume_multiple %147, 8 : i32
      %cst_94 = arith.constant 0.000000e+00 : bf16
      %149 = vector.broadcast %cst_94 : bf16 to vector<24x128xbf16>
      %150 = arith.index_cast %148 : i32 to index
      %c0_95 = arith.constant 0 : index
      %151 = vector.load %arg10[%150, %c0_95] : memref<280x128xbf16, #tpu.memory_space<vmem>>, vector<24x128xbf16>
      tpu.vector_store %arg10[%150, %c0_95], %149 {strides = array<i32>} : memref<280x128xbf16, #tpu.memory_space<vmem>>, vector<24x128xbf16>,
    } else {
    }
    %c0_51 = arith.constant 0 : index
    %c0_52 = arith.constant 0 : index
    %92 = vector.load %arg10[%c0_51, %c0_52] : memref<280x128xbf16, #tpu.memory_space<vmem>>, vector<280x128xbf16>
    %93 = vector.extract_strided_slice %92 {offsets = [15, 0], sizes = [192, 128], strides = [1, 1]} : vector<280x128xbf16> to vector<192x128xbf16>
    %c0_53 = arith.constant 0 : index
    %c0_54 = arith.constant 0 : index
    %c0_55 = arith.constant 0 : index
    %94 = vector.load %arg5[%c0_53, %c0_54, %c0_55] : memref<9x128x128xbf16, #tpu.memory_space<vmem>>, vector<1x128x128xbf16>
    %95 = vector.shape_cast %94 : vector<1x128x128xbf16> to vector<128x128xbf16>
    %cst_56 = arith.constant dense<0.000000e+00> : vector<192x128xf32>
    %96 = tpu.matmul %93, %95, %cst_56 {dimension_numbers = #tpu.dot_dimension_numbers<[1], [0], [0], [1], [0, 0, 1, 1], [], []>} : vector<192x128xbf16>, vector<128x128xbf16>, vector<192x128xf32> -> vector<192x128xf32>
    %97 = vector.extract_strided_slice %92 {offsets = [16, 0], sizes = [192, 128], strides = [1, 1]} : vector<280x128xbf16> to vector<192x128xbf16>
    %c1_57 = arith.constant 1 : index
    %c0_58 = arith.constant 0 : index
    %c0_59 = arith.constant 0 : index
    %98 = vector.load %arg5[%c1_57, %c0_58, %c0_59] : memref<9x128x128xbf16, #tpu.memory_space<vmem>>, vector<1x128x128xbf16>
    %99 = vector.shape_cast %98 : vector<1x128x128xbf16> to vector<128x128xbf16>
    %cst_60 = arith.constant dense<0.000000e+00> : vector<192x128xf32>
    %100 = tpu.matmul %97, %99, %cst_60 {dimension_numbers = #tpu.dot_dimension_numbers<[1], [0], [0], [1], [0, 0, 1, 1], [], []>} : vector<192x128xbf16>, vector<128x128xbf16>, vector<192x128xf32> -> vector<192x128xf32>
    %101 = arith.addf %96, %100 : vector<192x128xf32>
    %102 = vector.extract_strided_slice %92 {offsets = [17, 0], sizes = [192, 128], strides = [1, 1]} : vector<280x128xbf16> to vector<192x128xbf16>
    %c2_61 = arith.constant 2 : index
    %c0_62 = arith.constant 0 : index
    %c0_63 = arith.constant 0 : index
    %103 = vector.load %arg5[%c2_61, %c0_62, %c0_63] : memref<9x128x128xbf16, #tpu.memory_space<vmem>>, vector<1x128x128xbf16>
    %104 = vector.shape_cast %103 : vector<1x128x128xbf16> to vector<128x128xbf16>
    %cst_64 = arith.constant dense<0.000000e+00> : vector<192x128xf32>
    %105 = tpu.matmul %102, %104, %cst_64 {dimension_numbers = #tpu.dot_dimension_numbers<[1], [0], [0], [1], [0, 0, 1, 1], [], []>} : vector<192x128xbf16>, vector<128x128xbf16>, vector<192x128xf32> -> vector<192x128xf32>
    %106 = arith.addf %101, %105 : vector<192x128xf32>
    %107 = vector.extract_strided_slice %92 {offsets = [39, 0], sizes = [192, 128], strides = [1, 1]} : vector<280x128xbf16> to vector<192x128xbf16>
    %c3_65 = arith.constant 3 : index
    %c0_66 = arith.constant 0 : index
    %c0_67 = arith.constant 0 : index
    %108 = vector.load %arg5[%c3_65, %c0_66, %c0_67] : memref<9x128x128xbf16, #tpu.memory_space<vmem>>, vector<1x128x128xbf16>
    %109 = vector.shape_cast %108 : vector<1x128x128xbf16> to vector<128x128xbf16>
    %cst_68 = arith.constant dense<0.000000e+00> : vector<192x128xf32>
    %110 = tpu.matmul %107, %109, %cst_68 {dimension_numbers = #tpu.dot_dimension_numbers<[1], [0], [0], [1], [0, 0, 1, 1], [], []>} : vector<192x128xbf16>, vector<128x128xbf16>, vector<192x128xf32> -> vector<192x128xf32>
    %111 = arith.addf %106, %110 : vector<192x128xf32>
    %112 = vector.extract_strided_slice %92 {offsets = [40, 0], sizes = [192, 128], strides = [1, 1]} : vector<280x128xbf16> to vector<192x128xbf16>
    %c4_69 = arith.constant 4 : index
    %c0_70 = arith.constant 0 : index
    %c0_71 = arith.constant 0 : index
    %113 = vector.load %arg5[%c4_69, %c0_70, %c0_71] : memref<9x128x128xbf16, #tpu.memory_space<vmem>>, vector<1x128x128xbf16>
    %114 = vector.shape_cast %113 : vector<1x128x128xbf16> to vector<128x128xbf16>
    %cst_72 = arith.constant dense<0.000000e+00> : vector<192x128xf32>
    %115 = tpu.matmul %112, %114, %cst_72 {dimension_numbers = #tpu.dot_dimension_numbers<[1], [0], [0], [1], [0, 0, 1, 1], [], []>} : vector<192x128xbf16>, vector<128x128xbf16>, vector<192x128xf32> -> vector<192x128xf32>
    %116 = arith.addf %111, %115 : vector<192x128xf32>
    %117 = vector.extract_strided_slice %92 {offsets = [41, 0], sizes = [192, 128], strides = [1, 1]} : vector<280x128xbf16> to vector<192x128xbf16>
    %c5_73 = arith.constant 5 : index
    %c0_74 = arith.constant 0 : index
    %c0_75 = arith.constant 0 : index
    %118 = vector.load %arg5[%c5_73, %c0_74, %c0_75] : memref<9x128x128xbf16, #tpu.memory_space<vmem>>, vector<1x128x128xbf16>
    %119 = vector.shape_cast %118 : vector<1x128x128xbf16> to vector<128x128xbf16>
    %cst_76 = arith.constant dense<0.000000e+00> : vector<192x128xf32>
    %120 = tpu.matmul %117, %119, %cst_76 {dimension_numbers = #tpu.dot_dimension_numbers<[1], [0], [0], [1], [0, 0, 1, 1], [], []>} : vector<192x128xbf16>, vector<128x128xbf16>, vector<192x128xf32> -> vector<192x128xf32>
    %121 = arith.addf %116, %120 : vector<192x128xf32>
    %122 = vector.extract_strided_slice %92 {offsets = [63, 0], sizes = [192, 128], strides = [1, 1]} : vector<280x128xbf16> to vector<192x128xbf16>
    %c6_77 = arith.constant 6 : index
    %c0_78 = arith.constant 0 : index
    %c0_79 = arith.constant 0 : index
    %123 = vector.load %arg5[%c6_77, %c0_78, %c0_79] : memref<9x128x128xbf16, #tpu.memory_space<vmem>>, vector<1x128x128xbf16>
    %124 = vector.shape_cast %123 : vector<1x128x128xbf16> to vector<128x128xbf16>
    %cst_80 = arith.constant dense<0.000000e+00> : vector<192x128xf32>
    %125 = tpu.matmul %122, %124, %cst_80 {dimension_numbers = #tpu.dot_dimension_numbers<[1], [0], [0], [1], [0, 0, 1, 1], [], []>} : vector<192x128xbf16>, vector<128x128xbf16>, vector<192x128xf32> -> vector<192x128xf32>
    %126 = arith.addf %121, %125 : vector<192x128xf32>
    %127 = vector.extract_strided_slice %92 {offsets = [64, 0], sizes = [192, 128], strides = [1, 1]} : vector<280x128xbf16> to vector<192x128xbf16>
    %c7_81 = arith.constant 7 : index
    %c0_82 = arith.constant 0 : index
    %c0_83 = arith.constant 0 : index
    %128 = vector.load %arg5[%c7_81, %c0_82, %c0_83] : memref<9x128x128xbf16, #tpu.memory_space<vmem>>, vector<1x128x128xbf16>
    %129 = vector.shape_cast %128 : vector<1x128x128xbf16> to vector<128x128xbf16>
    %cst_84 = arith.constant dense<0.000000e+00> : vector<192x128xf32>
    %130 = tpu.matmul %127, %129, %cst_84 {dimension_numbers = #tpu.dot_dimension_numbers<[1], [0], [0], [1], [0, 0, 1, 1], [], []>} : vector<192x128xbf16>, vector<128x128xbf16>, vector<192x128xf32> -> vector<192x128xf32>
    %131 = arith.addf %126, %130 : vector<192x128xf32>
    %132 = vector.extract_strided_slice %92 {offsets = [65, 0], sizes = [192, 128], strides = [1, 1]} : vector<280x128xbf16> to vector<192x128xbf16>
    %c8_85 = arith.constant 8 : index
    %c0_86 = arith.constant 0 : index
    %c0_87 = arith.constant 0 : index
    %133 = vector.load %arg5[%c8_85, %c0_86, %c0_87] : memref<9x128x128xbf16, #tpu.memory_space<vmem>>, vector<1x128x128xbf16>
    %134 = vector.shape_cast %133 : vector<1x128x128xbf16> to vector<128x128xbf16>
    %cst_88 = arith.constant dense<0.000000e+00> : vector<192x128xf32>
    %135 = tpu.matmul %132, %134, %cst_88 {dimension_numbers = #tpu.dot_dimension_numbers<[1], [0], [0], [1], [0, 0, 1, 1], [], []>} : vector<192x128xbf16>, vector<128x128xbf16>, vector<192x128xf32> -> vector<192x128xf32>
    %136 = arith.addf %131, %135 : vector<192x128xf32>
    %c0_89 = arith.constant 0 : index
    %c0_90 = arith.constant 0 : index
    %137 = vector.load %arg6[%c0_89, %c0_90] : memref<1x128xf32, #tpu.memory_space<vmem>>, vector<1x128xf32>
    %138 = vector.broadcast %137 : vector<1x128xf32> to vector<192x128xf32>
    %139 = arith.addf %136, %138 : vector<192x128xf32>
    %140 = vector.extract_strided_slice %28 {offsets = [49, 0], sizes = [192, 128], strides = [1, 1]} : vector<312x128xbf16> to vector<192x128xbf16>
    %141 = arith.extf %140 : vector<192x128xbf16> to vector<192x128xf32>
    %142 = arith.addf %139, %141 : vector<192x128xf32>
    %c0_91 = arith.constant 0 : index
    %c0_92 = arith.constant 0 : index
    %c0_93 = arith.constant 0 : index
    %143 = vector.load %arg8[%c0_91, %c0_92, %c0_93] : memref<1x192x128xf32, #tpu.memory_space<vmem>>, vector<1x192x128xf32>
    %144 = vector.shape_cast %143 : vector<1x192x128xf32> to vector<192x128xf32>
    %145 = vector.shape_cast %142 : vector<192x128xf32> to vector<1x192x128xf32>
    tpu.vector_store %arg8[%c0_91, %c0_92, %c0_93], %145 {strides = array<i32>} : memref<1x192x128xf32, #tpu.memory_space<vmem>>, vector<1x192x128xf32>,
    return
  }
  func.func @transform_1(%arg0: i32, %arg1: i32) -> (i32, i32, i32) {
    %c0_i32 = arith.constant 0 : i32
    %c0_i32_0 = arith.constant 0 : i32
    %c0_i32_1 = arith.constant 0 : i32
    %c0_i32_2 = arith.constant 0 : i32
    return %c0_i32, %c0_i32_0, %c0_i32_1 : i32, i32, i32
  }
  func.func @transform_2(%arg0: i32, %arg1: i32) -> (i32, i32) {
    %c0_i32 = arith.constant 0 : i32
    %c0_i32_0 = arith.constant 0 : i32
    %c0_i32_1 = arith.constant 0 : i32
    return %c0_i32, %c0_i32_0 : i32, i32
  }
  func.func @transform_3(%arg0: i32, %arg1: i32) -> (i32, i32, i32) {
    %c0_i32 = arith.constant 0 : i32
    %c0_i32_0 = arith.constant 0 : i32
    %c0_i32_1 = arith.constant 0 : i32
    %c0_i32_2 = arith.constant 0 : i32
    return %c0_i32, %c0_i32_0, %c0_i32_1 : i32, i32, i32
  }
  func.func @transform_4(%arg0: i32, %arg1: i32) -> (i32, i32) {
    %c0_i32 = arith.constant 0 : i32
    %c0_i32_0 = arith.constant 0 : i32
    %c0_i32_1 = arith.constant 0 : i32
    return %c0_i32, %c0_i32_0 : i32, i32
  }
  func.func @transform_5(%arg0: i32, %arg1: i32) -> (i32, i32) {
    %c0_i32 = arith.constant 0 : i32
    %c0_i32_0 = arith.constant 0 : i32
    %c0_i32_1 = arith.constant 0 : i32
    return %c0_i32, %c0_i32_0 : i32, i32
  }
  func.func @transform_6(%arg0: i32, %arg1: i32) -> (i32, i32, i32) {
    %c0_i32 = arith.constant 0 : i32
    %c0_i32_0 = arith.constant 0 : i32
    return %arg0, %arg1, %c0_i32 : i32, i32, i32
  }
}

</mosaic_0001>

<llo_original>
// kernel: tpu_custom_call.1
$region0: #{tpu_custom_call.1}
  #allocation0 [shape = 'u32[]', space=smem, size = 0x4, offset = 0x4, fixed_abs, tag = 'smem constant byte address 0x4 - core index']
  #allocation1 [shape = 'u32[144,128]{1,0:T(1,128)}', space=vmem, size = 0x12000, scoped, tag = 'internal scratch']
  #allocation2 [shape = 'bf16[2,312,128]{2,1,0:T(8,128)(2,1)}', space=vmem, size = 0x27000, scoped, tag = 'scratch operand']
  #allocation3 [shape = 'bf16[280,128]{1,0:T(8,128)(2,1)}', space=vmem, size = 0x11800, scoped, tag = 'scratch operand']
  #allocation4 [shape = 's32[2]{0}', space=sflag, size = 0x8, scoped, tag = 'scratch operand']
  #allocation12 [shape = 's32[]', space=sflag, size = 0x4, offset = 0, fixed_abs, tag = 'sflag constant byte address 0x0 - dummy sync flag']
  #allocation13 [shape = 's32[]', space=sflag, size = 0x4, offset = 0, fixed_abs, tag = 'sflag constant byte address 0x0 - dummy sync flag']
  #allocation14 [shape = 'u32[]', space=smem, size = 0x4, offset = 0x44, fixed_abs, tag = 'smem constant byte address 0x44 - assertion arg 0']
  #allocation15 [shape = 'u32[]', space=smem, size = 0x4, offset = 0x48, fixed_abs, tag = 'smem constant byte address 0x48 - assertion arg 1']
  #allocation16 [shape = 's32[]', space=sflag, size = 0x4, offset = 0, fixed_abs, tag = 'sflag constant byte address 0x0 - dummy sync flag']
  #allocation17 [shape = 's32[]', space=sflag, size = 0x4, offset = 0, fixed_abs, tag = 'sflag constant byte address 0x0 - dummy sync flag']
  %s0 = inlined_call_operand.hbm [shape: bf16[1008,128], index: 0, kind: input, shape index: {}]
  %s1 = inlined_call_operand.hbm [shape: bf16[9,128,128], index: 1, kind: input, shape index: {}]
  %s2 = inlined_call_operand.vmem [shape: f32[1,128], index: 2, kind: input, shape index: {}]
  %s3 = inlined_call_operand.hbm [shape: bf16[9,128,128], index: 3, kind: input, shape index: {}]
  %s4 = inlined_call_operand.vmem [shape: f32[1,128], index: 4, kind: input, shape index: {}]
  %s5 = inlined_call_operand.hbm [shape: f32[240,128], index: 5, kind: input, shape index: {}]
  %s6 = inlined_call_operand.hbm [shape: f32[2,384,128], index: 6, kind: output, shape index: {}]
  %s7 = sld [smem:[#allocation0]]
  $region89: #{tpu_custom_call.1} parent=0
    _
  %s9 = ssub.s32 1, %s7
  %s10 = scalar_select 0, %s9, %s7
  $region1: #{tpu_custom_call.1} parent=0
    #allocation5 [shape = 'u8[294912]{0}', space=vmem, size = 0x48000, scoped, tag = 'input window, operand 1, single buffered']
    #allocation6 [shape = 's32[2]{0}', space=sflag, size = 0x8, scoped, tag = 'scoped memory for tpu_custom_call.1']
    #allocation7 [shape = 's32[2]{0}', space=sflag, size = 0x8, scoped, tag = 'scoped memory for tpu_custom_call.1']
    #allocation8 [shape = 'u8[294912]{0}', space=vmem, size = 0x48000, scoped, tag = 'input window, operand 3, single buffered']
    #allocation9 [shape = 's32[1]{0}', space=sflag, size = 0x4, scoped, tag = 'scoped memory for tpu_custom_call.1']
    #allocation10 [shape = 'u8[122880]{0}', space=vmem, size = 0x1e000, scoped, tag = 'input window, operand 5, single buffered']
    #allocation11 [shape = 'u8[196608]{0}', space=vmem, size = 0x30000, scoped, tag = 'output window, operand 0']
    %11 = vsyncpa [#allocation6], 0
    %12 = vsyncpa [#allocation9], 0
    %13 = vsyncpa [#allocation7], 0
    %s14 = scalar_lea.sflag [#allocation7], 1
    %15 = vsyncpa %s14, 0
    loop: start=0, step=1, limit=6
    $region2: #{tpu_custom_call.1} parent=1 // loop_pre_header
      _
    $region3: #{tpu_custom_call.1} parent=1 // loop_header
      %s17 = sphi 0, %s21
      %p18 = scmp.ge.s32.totalorder %s17, 6
      %s24 = sphi 0, %s36
      %s25 = sphi 0, %s32
      %s26 = sphi 0, %s24
      %s27 = sphi 0, %s25
      %s28 = sphi 0, %s26
      %s29 = sphi 0, %s27
      %s37 = sphi 0, %s37
      %s39 = sphi 0, %s37
      %s40 = sphi 0, %s39
      %s54 = sphi 0, %s40
      %s58 = sphi 0, %s58
      %s60 = sphi 0, %s58
      %s61 = sphi 0, %s60
      %s75 = sphi 0, %s61
      %s79 = sphi 0, %s79
      %s81 = sphi 0, %s79
      %s82 = sphi 0, %s81
      %s96 = sphi 0, %s82
      %s100 = sphi 0, %s100
      %s102 = sphi 0, %s100
      %s103 = sphi 0, %s102
      %s117 = sphi 0, %s103
      %s121 = sphi 0, %s121
      %s123 = sphi 0, %s121
      %s124 = sphi 0, %s123
      %s138 = sphi 0, %s124
      %s146 = sphi 0, %s148
      %s149 = sphi 0, %s146
      %s150 = sphi 0, %s149
      %s166 = sphi 0, %s150
    $region4: #{tpu_custom_call.1} parent=1 // loop_header_branch
      %20 = sbr.rel (%p18) target = $region8
    $region5: #{tpu_custom_call.1} parent=1 // loop_body
      %s22 = ssub.s32 %s17, 1
      %s23 = ssub.s32 %s17, 2
      %s30 = sadd.s32 1, %s25
      %p31 = scmp.ge.s32.totalorder %s30, 2
      %s32 = scalar_select %p31, 0, %s30
      %s33 = sadd.s32 1, %s24
      %s34 = scalar_select %p31, %s33, %s24
      %p35 = scmp.ge.s32.totalorder %s34, 2
      %s36 = scalar_select %p35, 0, %s34
      %s38 = sadd.s32 %s37, 1
      %p41 = scmp.eq.s32.totalorder %s17, 3
      %p42 = scmp.ne.s32.totalorder %s37, %s39
      %p43 = scmp.eq.s32.totalorder %s17, 0
      %p44 = por %p42, %p43
      %p45 = scmp.ne.s32.totalorder %s37, %s39
      %p46 = scmp.eq.s32.totalorder %s22, 3
      %p47 = por %p45, %p46
      %p48 = scmp.ne.s32.totalorder %s39, %s40
      %p49 = scmp.eq.s32.totalorder %s22, 0
      %p50 = por %p48, %p49
      %p51 = scmp.ne.s32.totalorder %s39, %s40
      %p52 = scmp.eq.s32.totalorder %s23, 3
      %p53 = por %p51, %p52
      %p55 = scmp.ne.s32.totalorder %s40, %s54
      %p56 = scmp.eq.s32.totalorder %s23, 0
      %p57 = por %p55, %p56
      %s59 = sadd.s32 %s58, 1
      %p62 = scmp.eq.s32.totalorder %s17, 3
      %p63 = scmp.ne.s32.totalorder %s58, %s60
      %p64 = scmp.eq.s32.totalorder %s17, 0
      %p65 = por %p63, %p64
      %p66 = scmp.ne.s32.totalorder %s58, %s60
      %p67 = scmp.eq.s32.totalorder %s22, 3
      %p68 = por %p66, %p67
      %p69 = scmp.ne.s32.totalorder %s60, %s61
      %p70 = scmp.eq.s32.totalorder %s22, 0
      %p71 = por %p69, %p70
      %p72 = scmp.ne.s32.totalorder %s60, %s61
      %p73 = scmp.eq.s32.totalorder %s23, 3
      %p74 = por %p72, %p73
      %p76 = scmp.ne.s32.totalorder %s61, %s75
      %p77 = scmp.eq.s32.totalorder %s23, 0
      %p78 = por %p76, %p77
      %s80 = sadd.s32 %s79, 1
      %p83 = scmp.eq.s32.totalorder %s17, 3
      %p84 = scmp.ne.s32.totalorder %s79, %s81
      %p85 = scmp.eq.s32.totalorder %s17, 0
      %p86 = por %p84, %p85
      %p87 = scmp.ne.s32.totalorder %s79, %s81
      %p88 = scmp.eq.s32.totalorder %s22, 3
      %p89 = por %p87, %p88
      %p90 = scmp.ne.s32.totalorder %s81, %s82
      %p91 = scmp.eq.s32.totalorder %s22, 0
      %p92 = por %p90, %p91
      %p93 = scmp.ne.s32.totalorder %s81, %s82
      %p94 = scmp.eq.s32.totalorder %s23, 3
      %p95 = por %p93, %p94
      %p97 = scmp.ne.s32.totalorder %s82, %s96
      %p98 = scmp.eq.s32.totalorder %s23, 0
      %p99 = por %p97, %p98
      %s101 = sadd.s32 %s100, 1
      %p104 = scmp.eq.s32.totalorder %s17, 3
      %p105 = scmp.ne.s32.totalorder %s100, %s102
      %p106 = scmp.eq.s32.totalorder %s17, 0
      %p107 = por %p105, %p106
      %p108 = scmp.ne.s32.totalorder %s100, %s102
      %p109 = scmp.eq.s32.totalorder %s22, 3
      %p110 = por %p108, %p109
      %p111 = scmp.ne.s32.totalorder %s102, %s103
      %p112 = scmp.eq.s32.totalorder %s22, 0
      %p113 = por %p111, %p112
      %p114 = scmp.ne.s32.totalorder %s102, %s103
      %p115 = scmp.eq.s32.totalorder %s23, 3
      %p116 = por %p114, %p115
      %p118 = scmp.ne.s32.totalorder %s103, %s117
      %p119 = scmp.eq.s32.totalorder %s23, 0
      %p120 = por %p118, %p119
      %s122 = sadd.s32 %s121, 1
      %p125 = scmp.eq.s32.totalorder %s17, 3
      %p126 = scmp.ne.s32.totalorder %s121, %s123
      %p127 = scmp.eq.s32.totalorder %s17, 0
      %p128 = por %p126, %p127
      %p129 = scmp.ne.s32.totalorder %s121, %s123
      %p130 = scmp.eq.s32.totalorder %s22, 3
      %p131 = por %p129, %p130
      %p132 = scmp.ne.s32.totalorder %s123, %s124
      %p133 = scmp.eq.s32.totalorder %s22, 0
      %p134 = por %p132, %p133
      %p135 = scmp.ne.s32.totalorder %s123, %s124
      %p136 = scmp.eq.s32.totalorder %s23, 3
      %p137 = por %p135, %p136
      %p139 = scmp.ne.s32.totalorder %s124, %s138
      %p140 = scmp.eq.s32.totalorder %s23, 0
      %p141 = por %p139, %p140
      %s142 = ssub.s32 %s24, %s36
      %s143 = ssub.s32 %s25, %s32
      %s144 = sor.u32 %s142, %s143
      %p145 = scmp.eq.s32.totalorder %s144, 0
      %s147 = sadd.s32 %s146, 1
      %s148 = scalar_select %p145, %s146, %s147
      %p151 = pneg %p145
      %p152 = scmp.eq.s32.totalorder %s17, 3
      %p153 = por %p151, %p152
      %p154 = scmp.ne.s32.totalorder %s146, %s149
      %p155 = scmp.eq.s32.totalorder %s17, 0
      %p156 = por %p154, %p155
      %p157 = scmp.ne.s32.totalorder %s146, %s149
      %p158 = scmp.eq.s32.totalorder %s22, 3
      %p159 = por %p157, %p158
      %p160 = scmp.ne.s32.totalorder %s149, %s150
      %p161 = scmp.eq.s32.totalorder %s22, 0
      %p162 = por %p160, %p161
      %p163 = scmp.ne.s32.totalorder %s149, %s150
      %p164 = scmp.eq.s32.totalorder %s23, 3
      %p165 = por %p163, %p164
      %p167 = scmp.ne.s32.totalorder %s150, %s166
      %p168 = scmp.eq.s32.totalorder %s23, 0
      %p169 = por %p167, %p168
      %p170 = scmp.le.s32.totalorder 1, %s17
      %p171 = scmp.lt.s32.totalorder %s17, 5
      %p172 = pnand %p170, %p171
      %p173 = pneg %p172
      // Predicated region
      $region9: #{tpu_custom_call.1} parent=5 // pred_check
        _
      $region10: #{tpu_custom_call.1} parent=5 // pred_check_branch
        %175 = sbr.rel (%p172) target = $region12
      $region11: #{tpu_custom_call.1} parent=5 // pred_region
        %s176 = ssub.s32 %s17, 1
        // Predicated region
        $region13: #{tpu_custom_call.1} parent=11 // pred_check
          %p177 = pneg %p50
        $region14: #{tpu_custom_call.1} parent=11 // pred_check_branch
          %179 = sbr.rel (%p177) target = $region16
        $region15: #{tpu_custom_call.1} parent=11 // pred_region
          %s181 = ssub.s32 9216, 9216
          %182 = vsyncadd [#allocation6], %s181
          %s183 = sshll.u32 [#allocation5], 4
          %s184 = int_to_ptr.vmem [resolvable:$true] %s183
          %189 = dma.hbm_to_vmem [thread:$0]  %s1, 9216, %s184, [#allocation6], 64, 64, 4
        $region16: #{tpu_custom_call.1} parent=11 // pred_fallthru
          _
        // Predicated region
        $region17: #{tpu_custom_call.1} parent=11 // pred_check
          %p190 = pneg %p71
        $region18: #{tpu_custom_call.1} parent=11 // pred_check_branch
          %192 = sbr.rel (%p190) target = $region20
        $region19: #{tpu_custom_call.1} parent=11 // pred_region
          _
        $region20: #{tpu_custom_call.1} parent=11 // pred_fallthru
          _
        // Predicated region
        $region21: #{tpu_custom_call.1} parent=11 // pred_check
          %p193 = pneg %p92
        $region22: #{tpu_custom_call.1} parent=11 // pred_check_branch
          %195 = sbr.rel (%p193) target = $region24
        $region23: #{tpu_custom_call.1} parent=11 // pred_region
          %s197 = ssub.s32 9216, 9216
          %198 = vsyncadd [#allocation9], %s197
          %s199 = sshll.u32 [#allocation8], 4
          %s200 = int_to_ptr.vmem [resolvable:$true] %s199
          %205 = dma.hbm_to_vmem [thread:$0]  %s3, 9216, %s200, [#allocation9], 64, 64, 4
        $region24: #{tpu_custom_call.1} parent=11 // pred_fallthru
          _
        // Predicated region
        $region25: #{tpu_custom_call.1} parent=11 // pred_check
          %p206 = pneg %p113
        $region26: #{tpu_custom_call.1} parent=11 // pred_check_branch
          %208 = sbr.rel (%p206) target = $region28
        $region27: #{tpu_custom_call.1} parent=11 // pred_region
          _
        $region28: #{tpu_custom_call.1} parent=11 // pred_fallthru
          _
        // Predicated region
        $region29: #{tpu_custom_call.1} parent=11 // pred_check
          %p209 = pneg %p134
        $region30: #{tpu_custom_call.1} parent=11 // pred_check_branch
          %211 = sbr.rel (%p209) target = $region32
        $region31: #{tpu_custom_call.1} parent=11 // pred_region
          %s213 = ssub.s32 3840, 3840
          %214 = vsyncadd [#allocation9], %s213
          %s215 = sshll.u32 [#allocation10], 4
          %s216 = int_to_ptr.vmem [resolvable:$true] %s215
          %221 = dma.hbm_to_vmem [thread:$0]  %s5, 3840, %s216, [#allocation9], 128, 128, 8
        $region32: #{tpu_custom_call.1} parent=11 // pred_fallthru
          _
      $region12: #{tpu_custom_call.1} parent=5 // pred_fallthru
        _
      %p222 = scmp.lt.s32.totalorder %s17, 4
      // Predicated region
      $region33: #{tpu_custom_call.1} parent=5 // pred_check
        %p223 = pneg %p222
      $region34: #{tpu_custom_call.1} parent=5 // pred_check_branch
        %225 = sbr.rel (%p223) target = $region36
      $region35: #{tpu_custom_call.1} parent=5 // pred_region
        _
      $region36: #{tpu_custom_call.1} parent=5 // pred_fallthru
        _
      %p226 = scmp.le.s32.totalorder 1, %s17
      %p227 = scmp.lt.s32.totalorder %s17, 5
      %p228 = pnand %p226, %p227
      %p229 = pneg %p228
      // Predicated region
      $region37: #{tpu_custom_call.1} parent=5 // pred_check
        _
      $region38: #{tpu_custom_call.1} parent=5 // pred_check_branch
        %231 = sbr.rel (%p228) target = $region40
      $region39: #{tpu_custom_call.1} parent=5 // pred_region
        %s232 = ssub.s32 %s17, 1
        // Predicated region
        $region41: #{tpu_custom_call.1} parent=39 // pred_check
          %p233 = pneg %p50
        $region42: #{tpu_custom_call.1} parent=39 // pred_check_branch
          %235 = sbr.rel (%p233) target = $region44
        $region43: #{tpu_custom_call.1} parent=39 // pred_region
          %236 = dma.done [#allocation6], 9216
        $region44: #{tpu_custom_call.1} parent=39 // pred_fallthru
          _
        // Predicated region
        $region45: #{tpu_custom_call.1} parent=39 // pred_check
          %p237 = pneg %p92
        $region46: #{tpu_custom_call.1} parent=39 // pred_check_branch
          %239 = sbr.rel (%p237) target = $region48
        $region47: #{tpu_custom_call.1} parent=39 // pred_region
          %240 = dma.done [#allocation9], 9216
        $region48: #{tpu_custom_call.1} parent=39 // pred_fallthru
          _
        // Predicated region
        $region49: #{tpu_custom_call.1} parent=39 // pred_check
          %p241 = pneg %p134
        $region50: #{tpu_custom_call.1} parent=39 // pred_check_branch
          %243 = sbr.rel (%p241) target = $region52
        $region51: #{tpu_custom_call.1} parent=39 // pred_region
          %244 = dma.done [#allocation9], 3840
        $region52: #{tpu_custom_call.1} parent=39 // pred_fallthru
          _
        %p245 = pneg %p50
        %p246 = pneg %p47
        %p247 = pneg %p71
        %p248 = pneg %p68
        %p249 = pneg %p92
        %p250 = pneg %p89
        %p251 = pneg %p113
        %p252 = pneg %p110
        %p253 = pneg %p134
        %p254 = pneg %p131
        %p255 = pneg %p162
        %p256 = pneg %p159
        %s257 = sand.u32 %s149, 1
        %s258 = scalar_lea.sflag [#allocation7], %s257
        %s259 = sand.u32 %s149, 1
        %s260 = smul.addr %s259, 192
        %s261 = scalar_lea.vmem [#allocation11], %s260
        %s262 = smul.u32 24, %s27
        %p264 = scmp.lt.s32.totalorder %s27, 0
        %s265 = ssub.s32 0, %s27
        %s266 = scalar_select %p264, %s265, %s27
        %s267 = sand.u32 %s266, 1
        %s268 = ssub.s32 0, %s267
        %s269 = scalar_select %p264, %s268, %s267
        %p270 = scmp.ne.s32.totalorder %s269, 0
        %p271 = scmp.lt.s32.totalorder %s269, 0
        %p272 = pnand %p271, %p270
        %p273 = pneg %p272
        %s274 = sadd.s32 %s269, 2
        %s275 = scalar_select %p273, %s274, %s269
        %p276 = scmp.eq.s32.totalorder %s27, 0
        // Predicated region
        $region53: #{tpu_custom_call.1} parent=39 // pred_check
          %p277 = pneg %p276
        $region54: #{tpu_custom_call.1} parent=39 // pred_check_branch
          %279 = sbr.rel (%p277) target = $region56
        $region55: #{tpu_custom_call.1} parent=39 // pred_region
          %s280 = smul.u32 %s26, 504
          %s281 = smul.u32 %s27, 192
          %s282 = sadd.s32 %s280, %s281
          %s283 = sshra.s32 %s282, 3
          %s284 = sand.u32 %s282, 7
          %s285 = smul.addr %s283, 64
          %s286 = scalar_lea.hbm %s0, %s285
          %s287 = smul.u32 %s275, 39
          %s288 = smul.addr %s287, 4
          %s289 = scalar_lea.vmem [#allocation2], %s288
          %s290 = scalar_lea.sflag [#allocation4], %s275
          // Predicated region
          $region57: #{tpu_custom_call.1} parent=55 // pred_check
            _
          $region58: #{tpu_custom_call.1} parent=55 // pred_check_branch
            %292 = sbr.rel target = $region60
          $region59: #{tpu_custom_call.1} parent=55 // pred_region
            %293 = sst [smem:[#allocation14]] [#allocation13]
            %294 = sst [smem:[#allocation15]] [#allocation12]
          $region60: #{tpu_custom_call.1} parent=55 // pred_fallthru
            _
          %296 = shalt.err (0)
          %s298 = sshll.u32 %s289, 4
          %s299 = int_to_ptr.vmem [resolvable:$true] %s298
          %301 = dma.hbm_to_vmem [thread:$0]  %s286, 2496, %s299, %s290
          %302 = vst [vmem:[#allocation3] sm:$0xf] 0
          %303 = vst [vmem:[#allocation3 + $0x4] sm:$0xf] 0
          %304 = vst [vmem:[#allocation3 + $0x80] sm:$0xf] 0
          %305 = vst [vmem:[#allocation3 + $0x84] sm:$0xf] 0
          %306 = vst [vmem:[#allocation3 + $0x88] sm:$0xf] 0
        $region56: #{tpu_custom_call.1} parent=39 // pred_fallthru
          _
        %s307 = sadd.s32 %s27, 1
        %p308 = scmp.lt.s32.totalorder %s307, 2
        // Predicated region
        $region61: #{tpu_custom_call.1} parent=39 // pred_check
          %p309 = pneg %p308
        $region62: #{tpu_custom_call.1} parent=39 // pred_check_branch
          %311 = sbr.rel (%p309) target = $region64
        $region63: #{tpu_custom_call.1} parent=39 // pred_region
          %s312 = ssub.s32 1, %s275
          %s313 = smul.u32 %s26, 504
          %s314 = smul.u32 %s307, 192
          %s315 = sadd.s32 %s313, %s314
          %s316 = sshra.s32 %s315, 3
          %s317 = sand.u32 %s315, 7
          %s318 = smul.addr %s316, 64
          %s319 = scalar_lea.hbm %s0, %s318
          %s320 = smul.u32 %s312, 39
          %s321 = smul.addr %s320, 4
          %s322 = scalar_lea.vmem [#allocation2], %s321
          %s323 = scalar_lea.sflag [#allocation4], %s312
          // Predicated region
          $region65: #{tpu_custom_call.1} parent=63 // pred_check
            _
          $region66: #{tpu_custom_call.1} parent=63 // pred_check_branch
            %325 = sbr.rel target = $region68
          $region67: #{tpu_custom_call.1} parent=63 // pred_region
            %326 = sst [smem:[#allocation14]] [#allocation17]
            %327 = sst [smem:[#allocation15]] [#allocation16]
          $region68: #{tpu_custom_call.1} parent=63 // pred_fallthru
            _
          %329 = shalt.err (0)
          %s331 = sshll.u32 %s322, 4
          %s332 = int_to_ptr.vmem [resolvable:$true] %s331
          %334 = dma.hbm_to_vmem [thread:$0]  %s319, 2496, %s332, %s323
        $region64: #{tpu_custom_call.1} parent=39 // pred_fallthru
          _
        %s335 = smul.u32 %s26, 504
        %s336 = smul.u32 %s27, 192
        %s337 = sadd.s32 %s335, %s336
        %s338 = smul.u32 %s275, 39
        %s339 = smul.addr %s338, 4
        %s340 = scalar_lea.vmem [#allocation2], %s339
        %s341 = scalar_lea.sflag [#allocation4], %s275
        %s342 = smul.u32 4, 39
        %s343 = smul.u32 %s342, 1
        %s344 = sshll.u32 %s343, 4
        %345 = dma.done %s341, %s344
        %v346 = vld [vmem:[%s340] sm:$0xf]
        %v347 = vld [vmem:[%s340 + $0x4] sm:$0xf]
        %v348 = vld [vmem:[%s340 + $0x8] sm:$0xf]
        %v349 = vld [vmem:[%s340 + $0xc] sm:$0xf]
        %v350 = vld [vmem:[%s340 + $0x10] sm:$0xf]
        %v351 = vld [vmem:[%s340 + $0x14] sm:$0xf]
        %v352 = vld [vmem:[%s340 + $0x18] sm:$0xf]
        %v353 = vld [vmem:[%s340 + $0x1c] sm:$0xf]
        %v354 = vld [vmem:[%s340 + $0x20] sm:$0xf]
        %v355 = vld [vmem:[%s340 + $0x24] sm:$0xf]
        %v356 = vld [vmem:[%s340 + $0x28] sm:$0xf]
        %v357 = vld [vmem:[%s340 + $0x2c] sm:$0xf]
        %v358 = vld [vmem:[%s340 + $0x30] sm:$0xf]
        %v359 = vld [vmem:[%s340 + $0x34] sm:$0xf]
        %v360 = vld [vmem:[%s340 + $0x38] sm:$0xf]
        %v361 = vld [vmem:[%s340 + $0x3c] sm:$0xf]
        %v362 = vld [vmem:[%s340 + $0x40] sm:$0xf]
        %v363 = vld [vmem:[%s340 + $0x44] sm:$0xf]
        %v364 = vld [vmem:[%s340 + $0x48] sm:$0xf]
        %v365 = vld [vmem:[%s340 + $0x4c] sm:$0xf]
        %v366 = vld [vmem:[%s340 + $0x50] sm:$0xf]
        %v367 = vld [vmem:[%s340 + $0x54] sm:$0xf]
        %v368 = vld [vmem:[%s340 + $0x58] sm:$0xf]
        %v369 = vld [vmem:[%s340 + $0x5c] sm:$0xf]
        %v370 = vld [vmem:[%s340 + $0x60] sm:$0xf]
        %v371 = vld [vmem:[%s340 + $0x64] sm:$0xf]
        %v372 = vld [vmem:[%s340 + $0x68] sm:$0xf]
        %v373 = vld [vmem:[%s340 + $0x6c] sm:$0xf]
        %v374 = vld [vmem:[%s340 + $0x70] sm:$0xf]
        %v375 = vld [vmem:[%s340 + $0x74] sm:$0xf]
        %v376 = vld [vmem:[%s340 + $0x78] sm:$0xf]
        %v377 = vld [vmem:[%s340 + $0x7c] sm:$0xf]
        %v378 = vld [vmem:[%s340 + $0x80] sm:$0xf]
        %v379 = vld [vmem:[%s340 + $0x84] sm:$0xf]
        %v380 = vld [vmem:[%s340 + $0x88] sm:$0xf]
        %v381 = vld [vmem:[%s340 + $0x8c] sm:$0xf]
        %v382 = vld [vmem:[%s340 + $0x90] sm:$0xf]
        %v383 = vld [vmem:[#allocation5] sm:$0xf]
        %v384 = vld [vmem:[#allocation5 + $0x4] sm:$0xf]
        %v385 = vld [vmem:[#allocation5 + $0x8] sm:$0xf]
        %v386 = vld [vmem:[#allocation5 + $0xc] sm:$0xf]
        %v387 = vld [vmem:[#allocation5 + $0x10] sm:$0xf]
        %v388 = vld [vmem:[#allocation5 + $0x14] sm:$0xf]
        %v389 = vld [vmem:[#allocation5 + $0x18] sm:$0xf]
        %v390 = vld [vmem:[#allocation5 + $0x1c] sm:$0xf]
        %v391 = vld [vmem:[#allocation5 + $0x20] sm:$0xf]
        %v392 = vld [vmem:[#allocation5 + $0x24] sm:$0xf]
        %v393 = vld [vmem:[#allocation5 + $0x28] sm:$0xf]
        %v394 = vld [vmem:[#allocation5 + $0x2c] sm:$0xf]
        %v395 = vld [vmem:[#allocation5 + $0x30] sm:$0xf]
        %v396 = vld [vmem:[#allocation5 + $0x34] sm:$0xf]
        %v397 = vld [vmem:[#allocation5 + $0x38] sm:$0xf]
        %v398 = vld [vmem:[#allocation5 + $0x3c] sm:$0xf]
        %s399 = scalar_lea.vmem [#allocation5], 64
        %v400 = vld [vmem:[%s399] sm:$0xf]
        %v401 = vld [vmem:[%s399 + $0x4] sm:$0xf]
        %v402 = vld [vmem:[%s399 + $0x8] sm:$0xf]
        %v403 = vld [vmem:[%s399 + $0xc] sm:$0xf]
        %v404 = vld [vmem:[%s399 + $0x10] sm:$0xf]
        %v405 = vld [vmem:[%s399 + $0x14] sm:$0xf]
        %v406 = vld [vmem:[%s399 + $0x18] sm:$0xf]
        %v407 = vld [vmem:[%s399 + $0x1c] sm:$0xf]
        %v408 = vld [vmem:[%s399 + $0x20] sm:$0xf]
        %v409 = vld [vmem:[%s399 + $0x24] sm:$0xf]
        %v410 = vld [vmem:[%s399 + $0x28] sm:$0xf]
        %v411 = vld [vmem:[%s399 + $0x2c] sm:$0xf]
        %v412 = vld [vmem:[%s399 + $0x30] sm:$0xf]
        %v413 = vld [vmem:[%s399 + $0x34] sm:$0xf]
        %v414 = vld [vmem:[%s399 + $0x38] sm:$0xf]
        %v415 = vld [vmem:[%s399 + $0x3c] sm:$0xf]
        %v447 = vunpack.c.l.b16 %v346
        %v448 = vunpack.c.l.b16 %v347
        %v449 = vunpack.c.l.b16 %v348
        %v450 = vunpack.c.l.b16 %v349
        %v451 = vunpack.c.l.b16 %v350
        %v452 = vunpack.c.l.b16 %v351
        %v453 = vunpack.c.l.b16 %v352
        %v454 = vunpack.c.l.b16 %v353
        %v455 = vunpack.c.l.b16 %v354
        %v456 = vunpack.c.l.b16 %v355
        %v457 = vunpack.c.l.b16 %v356
        %v458 = vunpack.c.l.b16 %v357
        %v459 = vunpack.c.l.b16 %v358
        %v460 = vunpack.c.l.b16 %v359
        %v461 = vunpack.c.l.b16 %v360
        %v462 = vunpack.c.l.b16 %v361
        %v463 = vunpack.c.l.b16 %v362
        %v464 = vunpack.c.l.b16 %v363
        %v465 = vunpack.c.l.b16 %v364
        %v466 = vunpack.c.l.b16 %v365
        %v467 = vunpack.c.l.b16 %v366
        %v468 = vunpack.c.l.b16 %v367
        %v469 = vunpack.c.l.b16 %v368
        %v470 = vunpack.c.l.b16 %v369
        %v471 = vunpack.c.l.b16 %v370
        %v472 = vunpack.c.l.b16 %v371
        %v473 = vunpack.c.l.b16 %v372
        %v474 = vunpack.c.l.b16 %v373
        %v475 = vunpack.c.l.b16 %v374
        %v476 = vunpack.c.l.b16 %v375
        %v477 = vunpack.c.l.b16 %v376
        %v478 = vpack.c.b16 %v448, %v447
        %v479 = vpack.c.b16 %v450, %v449
        %v480 = vpack.c.b16 %v452, %v451
        %v481 = vpack.c.b16 %v454, %v453
        %v482 = vpack.c.b16 %v456, %v455
        %v483 = vpack.c.b16 %v458, %v457
        %v484 = vpack.c.b16 %v460, %v459
        %v485 = vpack.c.b16 %v462, %v461
        %v486 = vpack.c.b16 %v464, %v463
        %v487 = vpack.c.b16 %v466, %v465
        %v488 = vpack.c.b16 %v468, %v467
        %v489 = vpack.c.b16 %v470, %v469
        %v490 = vpack.c.b16 %v472, %v471
        %v491 = vpack.c.b16 %v474, %v473
        %v492 = vpack.c.b16 %v476, %v475
        %v493 = vpack.c.b16 %v477, %v477
        %vm494 = vsmask.f32 7424
        %v496 = vshrl.u32 %v478, 16
        %v498 = vshll.u32 %v478, 16
        %v500 = vrot.slane %v498, 1
        %v501 = vor.u32 %v496, %v500
        %v503 = vshll.u32 %v479, 16
        %v505 = vrot.slane %v503, 1
        %v506 = vsel %vm494, %v501, %v505
        %v507 = vshrl.u32 %v479, 16
        %v509 = vor.u32 %v507, %v505
        %v511 = vshll.u32 %v480, 16
        %v513 = vrot.slane %v511, 1
        %v514 = vsel %vm494, %v509, %v513
        %v515 = vshrl.u32 %v480, 16
        %v517 = vor.u32 %v515, %v513
        %v519 = vshll.u32 %v481, 16
        %v521 = vrot.slane %v519, 1
        %v522 = vsel %vm494, %v517, %v521
        %v523 = vshrl.u32 %v481, 16
        %v525 = vor.u32 %v523, %v521
        %v527 = vshll.u32 %v482, 16
        %v529 = vrot.slane %v527, 1
        %v530 = vsel %vm494, %v525, %v529
        %v531 = vshrl.u32 %v482, 16
        %v533 = vor.u32 %v531, %v529
        %v535 = vshll.u32 %v483, 16
        %v537 = vrot.slane %v535, 1
        %v538 = vsel %vm494, %v533, %v537
        %v539 = vshrl.u32 %v483, 16
        %v541 = vor.u32 %v539, %v537
        %v543 = vshll.u32 %v484, 16
        %v545 = vrot.slane %v543, 1
        %v546 = vsel %vm494, %v541, %v545
        %v547 = vshrl.u32 %v484, 16
        %v549 = vor.u32 %v547, %v545
        %v551 = vshll.u32 %v485, 16
        %v553 = vrot.slane %v551, 1
        %v554 = vsel %vm494, %v549, %v553
        %v555 = vshrl.u32 %v485, 16
        %v557 = vor.u32 %v555, %v553
        %v559 = vshll.u32 %v486, 16
        %v561 = vrot.slane %v559, 1
        %v562 = vsel %vm494, %v557, %v561
        %v563 = vshrl.u32 %v486, 16
        %v565 = vor.u32 %v563, %v561
        %v567 = vshll.u32 %v487, 16
        %v569 = vrot.slane %v567, 1
        %v570 = vsel %vm494, %v565, %v569
        %v571 = vshrl.u32 %v487, 16
        %v573 = vor.u32 %v571, %v569
        %v575 = vshll.u32 %v488, 16
        %v577 = vrot.slane %v575, 1
        %v578 = vsel %vm494, %v573, %v577
        %v579 = vshrl.u32 %v488, 16
        %v581 = vor.u32 %v579, %v577
        %v583 = vshll.u32 %v489, 16
        %v585 = vrot.slane %v583, 1
        %v586 = vsel %vm494, %v581, %v585
        %v587 = vshrl.u32 %v489, 16
        %v589 = vor.u32 %v587, %v585
        %v591 = vshll.u32 %v490, 16
        %v593 = vrot.slane %v591, 1
        %v594 = vsel %vm494, %v589, %v593
        %v595 = vshrl.u32 %v490, 16
        %v597 = vor.u32 %v595, %v593
        %v599 = vshll.u32 %v491, 16
        %v601 = vrot.slane %v599, 1
        %v602 = vsel %vm494, %v597, %v601
        %v603 = vshrl.u32 %v491, 16
        %v605 = vor.u32 %v603, %v601
        %v607 = vshll.u32 %v492, 16
        %v609 = vrot.slane %v607, 1
        %v610 = vsel %vm494, %v605, %v609
        %v611 = vshrl.u32 %v492, 16
        %v613 = vor.u32 %v611, %v609
        %v615 = vshll.u32 %v493, 16
        %v617 = vrot.slane %v615, 1
        %v618 = vsel %vm494, %v613, %v617
        %v650 = vunpack.c.l.b16 %v400
        %v651 = vunpack.c.l.b16 %v401
        %v652 = vunpack.c.l.b16 %v402
        %v653 = vunpack.c.l.b16 %v403
        %v654 = vunpack.c.l.b16 %v404
        %v655 = vunpack.c.l.b16 %v405
        %v656 = vunpack.c.l.b16 %v406
        %v657 = vunpack.c.l.b16 %v407
        %v658 = vunpack.c.l.b16 %v408
        %v659 = vunpack.c.l.b16 %v409
        %v660 = vunpack.c.l.b16 %v410
        %v661 = vunpack.c.l.b16 %v411
        %v662 = vunpack.c.l.b16 %v412
        %v663 = vunpack.c.l.b16 %v413
        %v664 = vunpack.c.l.b16 %v414
        %v665 = vunpack.c.l.b16 %v415
        %v666 = vpack.c.b16 %v651, %v650
        %v667 = vpack.c.b16 %v653, %v652
        %v668 = vpack.c.b16 %v655, %v654
        %v669 = vpack.c.b16 %v657, %v656
        %v670 = vpack.c.b16 %v659, %v658
        %v671 = vpack.c.b16 %v661, %v660
        %v672 = vpack.c.b16 %v663, %v662
        %v673 = vpack.c.b16 %v665, %v664
        %682 = vmatprep.subr.bf16.mxu0 0
        %683 = vmatpush1.bf16.msra.mxu0 %v666
        %684 = vmatprep.subr.bf16.mxu0 0
        %685 = vmatpush1.bf16.msra.mxu0 %v667
        %686 = vmatprep.subr.bf16.mxu0 0
        %687 = vmatpush1.bf16.msra.mxu0 %v668
        %688 = vmatprep.subr.bf16.mxu0 0
        %689 = vmatpush1.bf16.msra.mxu0 %v669
        %690 = vmatprep.subr.bf16.mxu0 0
        %691 = vmatpush1.bf16.msra.mxu0 %v670
        %692 = vmatprep.subr.bf16.mxu0 0
        %693 = vmatpush1.bf16.msra.mxu0 %v671
        %694 = vmatprep.subr.bf16.mxu0 0
        %695 = vmatpush1.bf16.msra.mxu0 %v672
        %696 = vmatprep.subr.bf16.mxu0 0
        %697 = vmatpush1.bf16.msra.mxu0 %v673
        %698 = vmatprep.subr.bf16.mxu0 0
        %699 = vmatpush1.bf16.msra.mxu0 0
        %700 = vmatprep.subr.bf16.mxu0 0
        %701 = vmatpush1.bf16.msra.mxu0 0
        %702 = vmatprep.subr.bf16.mxu0 0
        %703 = vmatpush1.bf16.msra.mxu0 0
        %704 = vmatprep.subr.bf16.mxu0 0
        %705 = vmatpush1.bf16.msra.mxu0 0
        %706 = vmatprep.subr.bf16.mxu0 0
        %707 = vmatpush1.bf16.msra.mxu0 0
        %708 = vmatprep.subr.bf16.mxu0 0
        %709 = vmatpush1.bf16.msra.mxu0 0
        %710 = vmatprep.subr.bf16.mxu0 0
        %711 = vmatpush1.bf16.msra.mxu0 0
        %712 = vmatprep.subr.bf16.mxu0 0
        %713 = vmatpush1.bf16.msra.mxu0 0
        %714 = vmatprep.mubr.bf16.mxu0 0
        %715 = vmatmul.mubr.bf16.gmra.mrb[0].mxu0 %v506
        %v716 = vpop.f32.mrb[0].mxu0
        %v717 = vadd.f32 0.0, %v716
        %v718 = vpop.f32.mrb[0].mxu0
        %v719 = vpop.f32.mrb[0].mxu0
        %v720 = vadd.f32 0.0, %v719
        %v721 = vpop.f32.mrb[0].mxu0
        %722 = vmatprep.mubr.bf16.mxu0 0
        %723 = vmatmul.mubr.bf16.gmra.mrb[0].mxu0 %v514
        %v724 = vpop.f32.mrb[0].mxu0
        %v725 = vadd.f32 0.0, %v724
        %v726 = vpop.f32.mrb[0].mxu0
        %v727 = vpop.f32.mrb[0].mxu0
        %v728 = vadd.f32 0.0, %v727
        %v729 = vpop.f32.mrb[0].mxu0
        %730 = vmatprep.mubr.bf16.mxu0 0
        %731 = vmatmul.mubr.bf16.gmra.mrb[0].mxu0 %v522
        %v732 = vpop.f32.mrb[0].mxu0
        %v733 = vadd.f32 0.0, %v732
        %v734 = vpop.f32.mrb[0].mxu0
        %v735 = vpop.f32.mrb[0].mxu0
        %v736 = vadd.f32 0.0, %v735
        %v737 = vpop.f32.mrb[0].mxu0
        %738 = vmatprep.mubr.bf16.mxu0 0
        %739 = vmatmul.mubr.bf16.gmra.mrb[0].mxu0 %v530
        %v740 = vpop.f32.mrb[0].mxu0
        %v741 = vadd.f32 0.0, %v740
        %v742 = vpop.f32.mrb[0].mxu0
        %v743 = vpop.f32.mrb[0].mxu0
        %v744 = vadd.f32 0.0, %v743
        %v745 = vpop.f32.mrb[0].mxu0
        %746 = vmatprep.mubr.bf16.mxu0 0
        %747 = vmatmul.mubr.bf16.gmra.mrb[0].mxu0 %v538
        %v748 = vpop.f32.mrb[0].mxu0
        %v749 = vadd.f32 0.0, %v748
        %v750 = vpop.f32.mrb[0].mxu0
        %v751 = vpop.f32.mrb[0].mxu0
        %v752 = vadd.f32 0.0, %v751
        %v753 = vpop.f32.mrb[0].mxu0
        %754 = vmatprep.mubr.bf16.mxu0 0
        %755 = vmatmul.mubr.bf16.gmra.mrb[0].mxu0 %v546
        %v756 = vpop.f32.mrb[0].mxu0
        %v757 = vadd.f32 0.0, %v756
        %v758 = vpop.f32.mrb[0].mxu0
        %v759 = vpop.f32.mrb[0].mxu0
        %v760 = vadd.f32 0.0, %v759
        %v761 = vpop.f32.mrb[0].mxu0
        %762 = vmatprep.mubr.bf16.mxu0 0
        %763 = vmatmul.mubr.bf16.gmra.mrb[0].mxu0 %v554
        %v764 = vpop.f32.mrb[0].mxu0
        %v765 = vadd.f32 0.0, %v764
        %v766 = vpop.f32.mrb[0].mxu0
        %v767 = vpop.f32.mrb[0].mxu0
        %v768 = vadd.f32 0.0, %v767
        %v769 = vpop.f32.mrb[0].mxu0
        %770 = vmatprep.mubr.bf16.mxu0 0
        %771 = vmatmul.mubr.bf16.gmra.mrb[0].mxu0 %v562
        %v772 = vpop.f32.mrb[0].mxu0
        %v773 = vadd.f32 0.0, %v772
        %v774 = vpop.f32.mrb[0].mxu0
        %v775 = vpop.f32.mrb[0].mxu0
        %v776 = vadd.f32 0.0, %v775
        %v777 = vpop.f32.mrb[0].mxu0
        %778 = vmatprep.mubr.bf16.mxu0 0
        %779 = vmatmul.mubr.bf16.gmra.mrb[0].mxu0 %v570
        %v780 = vpop.f32.mrb[0].mxu0
        %v781 = vadd.f32 0.0, %v780
        %v782 = vpop.f32.mrb[0].mxu0
        %v783 = vpop.f32.mrb[0].mxu0
        %v784 = vadd.f32 0.0, %v783
        %v785 = vpop.f32.mrb[0].mxu0
        %786 = vmatprep.mubr.bf16.mxu0 0
        %787 = vmatmul.mubr.bf16.gmra.mrb[0].mxu0 %v578
        %v788 = vpop.f32.mrb[0].mxu0
        %v789 = vadd.f32 0.0, %v788
        %v790 = vpop.f32.mrb[0].mxu0
        %v791 = vpop.f32.mrb[0].mxu0
        %v792 = vadd.f32 0.0, %v791
        %v793 = vpop.f32.mrb[0].mxu0
        %794 = vmatprep.mubr.bf16.mxu0 0
        %795 = vmatmul.mubr.bf16.gmra.mrb[0].mxu0 %v586
        %v796 = vpop.f32.mrb[0].mxu0
        %v797 = vadd.f32 0.0, %v796
        %v798 = vpop.f32.mrb[0].mxu0
        %v799 = vpop.f32.mrb[0].mxu0
        %v800 = vadd.f32 0.0, %v799
        %v801 = vpop.f32.mrb[0].mxu0
        %802 = vmatprep.mubr.bf16.mxu0 0
        %803 = vmatmul.mubr.bf16.gmra.mrb[0].mxu0 %v594
        %v804 = vpop.f32.mrb[0].mxu0
        %v805 = vadd.f32 0.0, %v804
        %v806 = vpop.f32.mrb[0].mxu0
        %v807 = vpop.f32.mrb[0].mxu0
        %v808 = vadd.f32 0.0, %v807
        %v809 = vpop.f32.mrb[0].mxu0
        %810 = vmatprep.mubr.bf16.mxu0 0
        %811 = vmatmul.mubr.bf16.gmra.mrb[0].mxu0 %v602
        %v812 = vpop.f32.mrb[0].mxu0
        %v813 = vadd.f32 0.0, %v812
        %v814 = vpop.f32.mrb[0].mxu0
        %v815 = vpop.f32.mrb[0].mxu0
        %v816 = vadd.f32 0.0, %v815
        %v817 = vpop.f32.mrb[0].mxu0
        %818 = vmatprep.mubr.bf16.mxu0 0
        %819 = vmatmul.mubr.bf16.gmra.mrb[0].mxu0 %v610
        %v820 = vpop.f32.mrb[0].mxu0
        %v821 = vadd.f32 0.0, %v820
        %v822 = vpop.f32.mrb[0].mxu0
        %v823 = vpop.f32.mrb[0].mxu0
        %v824 = vadd.f32 0.0, %v823
        %v825 = vpop.f32.mrb[0].mxu0
        %826 = vmatprep.mubr.bf16.mxu0 0
        %827 = vmatmul.mubr.bf16.gmra.mrb[0].mxu0 %v618
        %v828 = vpop.f32.mrb[0].mxu0
        %v829 = vadd.f32 0.0, %v828
        %v830 = vpop.f32.mrb[0].mxu0
        %v831 = vpop.f32.mrb[0].mxu0
        %v832 = vadd.f32 0.0, %v831
        %v833 = vpop.f32.mrb[0].mxu0
        %834 = vdwg.mxu0
        %v866 = vunpack.c.l.b16 %v383
        %v867 = vunpack.c.l.b16 %v384
        %v868 = vunpack.c.l.b16 %v385
        %v869 = vunpack.c.l.b16 %v386
        %v870 = vunpack.c.l.b16 %v387
        %v871 = vunpack.c.l.b16 %v388
        %v872 = vunpack.c.l.b16 %v389
        %v873 = vunpack.c.l.b16 %v390
        %v874 = vunpack.c.l.b16 %v391
        %v875 = vunpack.c.l.b16 %v392
        %v876 = vunpack.c.l.b16 %v393
        %v877 = vunpack.c.l.b16 %v394
        %v878 = vunpack.c.l.b16 %v395
        %v879 = vunpack.c.l.b16 %v396
        %v880 = vunpack.c.l.b16 %v397
        %v881 = vunpack.c.l.b16 %v398
        %v882 = vpack.c.b16 %v867, %v866
        %v883 = vpack.c.b16 %v869, %v868
        %v884 = vpack.c.b16 %v871, %v870
        %v885 = vpack.c.b16 %v873, %v872
        %v886 = vpack.c.b16 %v875, %v874
        %v887 = vpack.c.b16 %v877, %v876
        %v888 = vpack.c.b16 %v879, %v878
        %v889 = vpack.c.b16 %v881, %v880
        %898 = vmatprep.subr.bf16.mxu0 0
        %899 = vmatpush1.bf16.msra.mxu0 %v882
        %900 = vmatprep.subr.bf16.mxu0 0
        %901 = vmatpush1.bf16.msra.mxu0 %v883
        %902 = vmatprep.subr.bf16.mxu0 0
        %903 = vmatpush1.bf16.msra.mxu0 %v884
        %904 = vmatprep.subr.bf16.mxu0 0
        %905 = vmatpush1.bf16.msra.mxu0 %v885
        %906 = vmatprep.subr.bf16.mxu0 0
        %907 = vmatpush1.bf16.msra.mxu0 %v886
        %908 = vmatprep.subr.bf16.mxu0 0
        %909 = vmatpush1.bf16.msra.mxu0 %v887
        %910 = vmatprep.subr.bf16.mxu0 0
        %911 = vmatpush1.bf16.msra.mxu0 %v888
        %912 = vmatprep.subr.bf16.mxu0 0
        %913 = vmatpush1.bf16.msra.mxu0 %v889
        %914 = vmatprep.subr.bf16.mxu0 0
        %915 = vmatpush1.bf16.msra.mxu0 0
        %916 = vmatprep.subr.bf16.mxu0 0
        %917 = vmatpush1.bf16.msra.mxu0 0
        %918 = vmatprep.subr.bf16.mxu0 0
        %919 = vmatpush1.bf16.msra.mxu0 0
        %920 = vmatprep.subr.bf16.mxu0 0
        %921 = vmatpush1.bf16.msra.mxu0 0
        %922 = vmatprep.subr.bf16.mxu0 0
        %923 = vmatpush1.bf16.msra.mxu0 0
        %924 = vmatprep.subr.bf16.mxu0 0
        %925 = vmatpush1.bf16.msra.mxu0 0
        %926 = vmatprep.subr.bf16.mxu0 0
        %927 = vmatpush1.bf16.msra.mxu0 0
        %928 = vmatprep.subr.bf16.mxu0 0
        %929 = vmatpush1.bf16.msra.mxu0 0
        %930 = vmatprep.mubr.bf16.mxu0 0
        %931 = vmatmul.mubr.bf16.gmra.mrb[0].mxu0 %v478
        %v932 = vpop.f32.mrb[0].mxu0
        %v933 = vadd.f32 %v717, %v932
        %v934 = vpop.f32.mrb[0].mxu0
        %v935 = vpop.f32.mrb[0].mxu0
        %v936 = vadd.f32 %v720, %v935
        %v937 = vpop.f32.mrb[0].mxu0
        %938 = vmatprep.mubr.bf16.mxu0 0
        %939 = vmatmul.mubr.bf16.gmra.mrb[0].mxu0 %v479
        %v940 = vpop.f32.mrb[0].mxu0
        %v941 = vadd.f32 %v725, %v940
        %v942 = vpop.f32.mrb[0].mxu0
        %v943 = vpop.f32.mrb[0].mxu0
        %v944 = vadd.f32 %v728, %v943
        %v945 = vpop.f32.mrb[0].mxu0
        %946 = vmatprep.mubr.bf16.mxu0 0
        %947 = vmatmul.mubr.bf16.gmra.mrb[0].mxu0 %v480
        %v948 = vpop.f32.mrb[0].mxu0
        %v949 = vadd.f32 %v733, %v948
        %v950 = vpop.f32.mrb[0].mxu0
        %v951 = vpop.f32.mrb[0].mxu0
        %v952 = vadd.f32 %v736, %v951
        %v953 = vpop.f32.mrb[0].mxu0
        %954 = vmatprep.mubr.bf16.mxu0 0
        %955 = vmatmul.mubr.bf16.gmra.mrb[0].mxu0 %v481
        %v956 = vpop.f32.mrb[0].mxu0
        %v957 = vadd.f32 %v741, %v956
        %v958 = vpop.f32.mrb[0].mxu0
        %v959 = vpop.f32.mrb[0].mxu0
        %v960 = vadd.f32 %v744, %v959
        %v961 = vpop.f32.mrb[0].mxu0
        %962 = vmatprep.mubr.bf16.mxu0 0
        %963 = vmatmul.mubr.bf16.gmra.mrb[0].mxu0 %v482
        %v964 = vpop.f32.mrb[0].mxu0
        %v965 = vadd.f32 %v749, %v964
        %v966 = vpop.f32.mrb[0].mxu0
        %v967 = vpop.f32.mrb[0].mxu0
        %v968 = vadd.f32 %v752, %v967
        %v969 = vpop.f32.mrb[0].mxu0
        %970 = vmatprep.mubr.bf16.mxu0 0
        %971 = vmatmul.mubr.bf16.gmra.mrb[0].mxu0 %v483
        %v972 = vpop.f32.mrb[0].mxu0
        %v973 = vadd.f32 %v757, %v972
        %v974 = vpop.f32.mrb[0].mxu0
        %v975 = vpop.f32.mrb[0].mxu0
        %v976 = vadd.f32 %v760, %v975
        %v977 = vpop.f32.mrb[0].mxu0
        %978 = vmatprep.mubr.bf16.mxu0 0
        %979 = vmatmul.mubr.bf16.gmra.mrb[0].mxu0 %v484
        %v980 = vpop.f32.mrb[0].mxu0
        %v981 = vadd.f32 %v765, %v980
        %v982 = vpop.f32.mrb[0].mxu0
        %v983 = vpop.f32.mrb[0].mxu0
        %v984 = vadd.f32 %v768, %v983
        %v985 = vpop.f32.mrb[0].mxu0
        %986 = vmatprep.mubr.bf16.mxu0 0
        %987 = vmatmul.mubr.bf16.gmra.mrb[0].mxu0 %v485
        %v988 = vpop.f32.mrb[0].mxu0
        %v989 = vadd.f32 %v773, %v988
        %v990 = vpop.f32.mrb[0].mxu0
        %v991 = vpop.f32.mrb[0].mxu0
        %v992 = vadd.f32 %v776, %v991
        %v993 = vpop.f32.mrb[0].mxu0
        %994 = vmatprep.mubr.bf16.mxu0 0
        %995 = vmatmul.mubr.bf16.gmra.mrb[0].mxu0 %v486
        %v996 = vpop.f32.mrb[0].mxu0
        %v997 = vadd.f32 %v781, %v996
        %v998 = vpop.f32.mrb[0].mxu0
        %v999 = vpop.f32.mrb[0].mxu0
        %v1000 = vadd.f32 %v784, %v999
        %v1001 = vpop.f32.mrb[0].mxu0
        %1002 = vmatprep.mubr.bf16.mxu0 0
        %1003 = vmatmul.mubr.bf16.gmra.mrb[0].mxu0 %v487
        %v1004 = vpop.f32.mrb[0].mxu0
        %v1005 = vadd.f32 %v789, %v1004
        %v1006 = vpop.f32.mrb[0].mxu0
        %v1007 = vpop.f32.mrb[0].mxu0
        %v1008 = vadd.f32 %v792, %v1007
        %v1009 = vpop.f32.mrb[0].mxu0
        %1010 = vmatprep.mubr.bf16.mxu0 0
        %1011 = vmatmul.mubr.bf16.gmra.mrb[0].mxu0 %v488
        %v1012 = vpop.f32.mrb[0].mxu0
        %v1013 = vadd.f32 %v797, %v1012
        %v1014 = vpop.f32.mrb[0].mxu0
        %v1015 = vpop.f32.mrb[0].mxu0
        %v1016 = vadd.f32 %v800, %v1015
        %v1017 = vpop.f32.mrb[0].mxu0
        %1018 = vmatprep.mubr.bf16.mxu0 0
        %1019 = vmatmul.mubr.bf16.gmra.mrb[0].mxu0 %v489
        %v1020 = vpop.f32.mrb[0].mxu0
        %v1021 = vadd.f32 %v805, %v1020
        %v1022 = vpop.f32.mrb[0].mxu0
        %v1023 = vpop.f32.mrb[0].mxu0
        %v1024 = vadd.f32 %v808, %v1023
        %v1025 = vpop.f32.mrb[0].mxu0
        %1026 = vmatprep.mubr.bf16.mxu0 0
        %1027 = vmatmul.mubr.bf16.gmra.mrb[0].mxu0 %v490
        %v1028 = vpop.f32.mrb[0].mxu0
        %v1029 = vadd.f32 %v813, %v1028
        %v1030 = vpop.f32.mrb[0].mxu0
        %v1031 = vpop.f32.mrb[0].mxu0
        %v1032 = vadd.f32 %v816, %v1031
        %v1033 = vpop.f32.mrb[0].mxu0
        %1034 = vmatprep.mubr.bf16.mxu0 0
        %1035 = vmatmul.mubr.bf16.gmra.mrb[0].mxu0 %v491
        %v1036 = vpop.f32.mrb[0].mxu0
        %v1037 = vadd.f32 %v821, %v1036
        %v1038 = vpop.f32.mrb[0].mxu0
        %v1039 = vpop.f32.mrb[0].mxu0
        %v1040 = vadd.f32 %v824, %v1039
        %v1041 = vpop.f32.mrb[0].mxu0
        %1042 = vmatprep.mubr.bf16.mxu0 0
        %1043 = vmatmul.mubr.bf16.gmra.mrb[0].mxu0 %v492
        %v1044 = vpop.f32.mrb[0].mxu0
        %v1045 = vadd.f32 %v829, %v1044
        %v1046 = vpop.f32.mrb[0].mxu0
        %v1047 = vpop.f32.mrb[0].mxu0
        %v1048 = vadd.f32 %v832, %v1047
        %v1049 = vpop.f32.mrb[0].mxu0
        %1050 = vdwg.mxu0
        %s1051 = scalar_lea.vmem [#allocation5], 128
        %v1052 = vld [vmem:[%s1051] sm:$0xf]
        %v1053 = vld [vmem:[%s1051 + $0x4] sm:$0xf]
        %v1054 = vld [vmem:[%s1051 + $0x8] sm:$0xf]
        %v1055 = vld [vmem:[%s1051 + $0xc] sm:$0xf]
        %v1056 = vld [vmem:[%s1051 + $0x10] sm:$0xf]
        %v1057 = vld [vmem:[%s1051 + $0x14] sm:$0xf]
        %v1058 = vld [vmem:[%s1051 + $0x18] sm:$0xf]
        %v1059 = vld [vmem:[%s1051 + $0x1c] sm:$0xf]
        %v1060 = vld [vmem:[%s1051 + $0x20] sm:$0xf]
        %v1061 = vld [vmem:[%s1051 + $0x24] sm:$0xf]
        %v1062 = vld [vmem:[%s1051 + $0x28] sm:$0xf]
        %v1063 = vld [vmem:[%s1051 + $0x2c] sm:$0xf]
        %v1064 = vld [vmem:[%s1051 + $0x30] sm:$0xf]
        %v1065 = vld [vmem:[%s1051 + $0x34] sm:$0xf]
        %v1066 = vld [vmem:[%s1051 + $0x38] sm:$0xf]
        %v1067 = vld [vmem:[%s1051 + $0x3c] sm:$0xf]
        %vm1068 = vcmask 1046528
        %v1069 = vrot.slane %v478, 1
        %v1070 = vrot.slane %v479, 1
        %v1071 = vsel %vm1068, %v1069, %v1070
        %v1072 = vrot.slane %v480, 1
        %v1073 = vsel %vm1068, %v1070, %v1072
        %v1074 = vrot.slane %v481, 1
        %v1075 = vsel %vm1068, %v1072, %v1074
        %v1076 = vrot.slane %v482, 1
        %v1077 = vsel %vm1068, %v1074, %v1076
        %v1078 = vrot.slane %v483, 1
        %v1079 = vsel %vm1068, %v1076, %v1078
        %v1080 = vrot.slane %v484, 1
        %v1081 = vsel %vm1068, %v1078, %v1080
        %v1082 = vrot.slane %v485, 1
        %v1083 = vsel %vm1068, %v1080, %v1082
        %v1084 = vrot.slane %v486, 1
        %v1085 = vsel %vm1068, %v1082, %v1084
        %v1086 = vrot.slane %v487, 1
        %v1087 = vsel %vm1068, %v1084, %v1086
        %v1088 = vrot.slane %v488, 1
        %v1089 = vsel %vm1068, %v1086, %v1088
        %v1090 = vrot.slane %v489, 1
        %v1091 = vsel %vm1068, %v1088, %v1090
        %v1092 = vrot.slane %v490, 1
        %v1093 = vsel %vm1068, %v1090, %v1092
        %v1094 = vrot.slane %v491, 1
        %v1095 = vsel %vm1068, %v1092, %v1094
        %v1096 = vrot.slane %v492, 1
        %v1097 = vsel %vm1068, %v1094, %v1096
        %v1098 = vrot.slane %v493, 1
        %v1099 = vsel %vm1068, %v1096, %v1098
        %v1131 = vunpack.c.l.b16 %v1052
        %v1132 = vunpack.c.l.b16 %v1053
        %v1133 = vunpack.c.l.b16 %v1054
        %v1134 = vunpack.c.l.b16 %v1055
        %v1135 = vunpack.c.l.b16 %v1056
        %v1136 = vunpack.c.l.b16 %v1057
        %v1137 = vunpack.c.l.b16 %v1058
        %v1138 = vunpack.c.l.b16 %v1059
        %v1139 = vunpack.c.l.b16 %v1060
        %v1140 = vunpack.c.l.b16 %v1061
        %v1141 = vunpack.c.l.b16 %v1062
        %v1142 = vunpack.c.l.b16 %v1063
        %v1143 = vunpack.c.l.b16 %v1064
        %v1144 = vunpack.c.l.b16 %v1065
        %v1145 = vunpack.c.l.b16 %v1066
        %v1146 = vunpack.c.l.b16 %v1067
        %v1147 = vpack.c.b16 %v1132, %v1131
        %v1148 = vpack.c.b16 %v1134, %v1133
        %v1149 = vpack.c.b16 %v1136, %v1135
        %v1150 = vpack.c.b16 %v1138, %v1137
        %v1151 = vpack.c.b16 %v1140, %v1139
        %v1152 = vpack.c.b16 %v1142, %v1141
        %v1153 = vpack.c.b16 %v1144, %v1143
        %v1154 = vpack.c.b16 %v1146, %v1145
        %1163 = vmatprep.subr.bf16.mxu0 0
        %1164 = vmatpush1.bf16.msra.mxu0 %v1147
        %1165 = vmatprep.subr.bf16.mxu0 0
        %1166 = vmatpush1.bf16.msra.mxu0 %v1148
        %1167 = vmatprep.subr.bf16.mxu0 0
        %1168 = vmatpush1.bf16.msra.mxu0 %v1149
        %1169 = vmatprep.subr.bf16.mxu0 0
        %1170 = vmatpush1.bf16.msra.mxu0 %v1150
        %1171 = vmatprep.subr.bf16.mxu0 0
        %1172 = vmatpush1.bf16.msra.mxu0 %v1151
        %1173 = vmatprep.subr.bf16.mxu0 0
        %1174 = vmatpush1.bf16.msra.mxu0 %v1152
        %1175 = vmatprep.subr.bf16.mxu0 0
        %1176 = vmatpush1.bf16.msra.mxu0 %v1153
        %1177 = vmatprep.subr.bf16.mxu0 0
        %1178 = vmatpush1.bf16.msra.mxu0 %v1154
        %1179 = vmatprep.subr.bf16.mxu0 0
        %1180 = vmatpush1.bf16.msra.mxu0 0
        %1181 = vmatprep.subr.bf16.mxu0 0
        %1182 = vmatpush1.bf16.msra.mxu0 0
        %1183 = vmatprep.subr.bf16.mxu0 0
        %1184 = vmatpush1.bf16.msra.mxu0 0
        %1185 = vmatprep.subr.bf16.mxu0 0
        %1186 = vmatpush1.bf16.msra.mxu0 0
        %1187 = vmatprep.subr.bf16.mxu0 0
        %1188 = vmatpush1.bf16.msra.mxu0 0
        %1189 = vmatprep.subr.bf16.mxu0 0
        %1190 = vmatpush1.bf16.msra.mxu0 0
        %1191 = vmatprep.subr.bf16.mxu0 0
        %1192 = vmatpush1.bf16.msra.mxu0 0
        %1193 = vmatprep.subr.bf16.mxu0 0
        %1194 = vmatpush1.bf16.msra.mxu0 0
        %1195 = vmatprep.mubr.bf16.mxu0 0
        %1196 = vmatmul.mubr.bf16.gmra.mrb[0].mxu0 %v1071
        %v1197 = vpop.f32.mrb[0].mxu0
        %v1198 = vadd.f32 0.0, %v1197
        %v1199 = vpop.f32.mrb[0].mxu0
        %v1200 = vpop.f32.mrb[0].mxu0
        %v1201 = vadd.f32 0.0, %v1200
        %v1202 = vpop.f32.mrb[0].mxu0
        %1203 = vmatprep.mubr.bf16.mxu0 0
        %1204 = vmatmul.mubr.bf16.gmra.mrb[0].mxu0 %v1073
        %v1205 = vpop.f32.mrb[0].mxu0
        %v1206 = vadd.f32 0.0, %v1205
        %v1207 = vpop.f32.mrb[0].mxu0
        %v1208 = vpop.f32.mrb[0].mxu0
        %v1209 = vadd.f32 0.0, %v1208
        %v1210 = vpop.f32.mrb[0].mxu0
        %1211 = vmatprep.mubr.bf16.mxu0 0
        %1212 = vmatmul.mubr.bf16.gmra.mrb[0].mxu0 %v1075
        %v1213 = vpop.f32.mrb[0].mxu0
        %v1214 = vadd.f32 0.0, %v1213
        %v1215 = vpop.f32.mrb[0].mxu0
        %v1216 = vpop.f32.mrb[0].mxu0
        %v1217 = vadd.f32 0.0, %v1216
        %v1218 = vpop.f32.mrb[0].mxu0
        %1219 = vmatprep.mubr.bf16.mxu0 0
        %1220 = vmatmul.mubr.bf16.gmra.mrb[0].mxu0 %v1077
        %v1221 = vpop.f32.mrb[0].mxu0
        %v1222 = vadd.f32 0.0, %v1221
        %v1223 = vpop.f32.mrb[0].mxu0
        %v1224 = vpop.f32.mrb[0].mxu0
        %v1225 = vadd.f32 0.0, %v1224
        %v1226 = vpop.f32.mrb[0].mxu0
        %1227 = vmatprep.mubr.bf16.mxu0 0
        %1228 = vmatmul.mubr.bf16.gmra.mrb[0].mxu0 %v1079
        %v1229 = vpop.f32.mrb[0].mxu0
        %v1230 = vadd.f32 0.0, %v1229
        %v1231 = vpop.f32.mrb[0].mxu0
        %v1232 = vpop.f32.mrb[0].mxu0
        %v1233 = vadd.f32 0.0, %v1232
        %v1234 = vpop.f32.mrb[0].mxu0
        %1235 = vmatprep.mubr.bf16.mxu0 0
        %1236 = vmatmul.mubr.bf16.gmra.mrb[0].mxu0 %v1081
        %v1237 = vpop.f32.mrb[0].mxu0
        %v1238 = vadd.f32 0.0, %v1237
        %v1239 = vpop.f32.mrb[0].mxu0
        %v1240 = vpop.f32.mrb[0].mxu0
        %v1241 = vadd.f32 0.0, %v1240
        %v1242 = vpop.f32.mrb[0].mxu0
        %1243 = vmatprep.mubr.bf16.mxu0 0
        %1244 = vmatmul.mubr.bf16.gmra.mrb[0].mxu0 %v1083
        %v1245 = vpop.f32.mrb[0].mxu0
        %v1246 = vadd.f32 0.0, %v1245
        %v1247 = vpop.f32.mrb[0].mxu0
        %v1248 = vpop.f32.mrb[0].mxu0
        %v1249 = vadd.f32 0.0, %v1248
        %v1250 = vpop.f32.mrb[0].mxu0
        %1251 = vmatprep.mubr.bf16.mxu0 0
        %1252 = vmatmul.mubr.bf16.gmra.mrb[0].mxu0 %v1085
        %v1253 = vpop.f32.mrb[0].mxu0
        %v1254 = vadd.f32 0.0, %v1253
        %v1255 = vpop.f32.mrb[0].mxu0
        %v1256 = vpop.f32.mrb[0].mxu0
        %v1257 = vadd.f32 0.0, %v1256
        %v1258 = vpop.f32.mrb[0].mxu0
        %1259 = vmatprep.mubr.bf16.mxu0 0
        %1260 = vmatmul.mubr.bf16.gmra.mrb[0].mxu0 %v1087
        %v1261 = vpop.f32.mrb[0].mxu0
        %v1262 = vadd.f32 0.0, %v1261
        %v1263 = vpop.f32.mrb[0].mxu0
        %v1264 = vpop.f32.mrb[0].mxu0
        %v1265 = vadd.f32 0.0, %v1264
        %v1266 = vpop.f32.mrb[0].mxu0
        %1267 = vmatprep.mubr.bf16.mxu0 0
        %1268 = vmatmul.mubr.bf16.gmra.mrb[0].mxu0 %v1089
        %v1269 = vpop.f32.mrb[0].mxu0
        %v1270 = vadd.f32 0.0, %v1269
        %v1271 = vpop.f32.mrb[0].mxu0
        %v1272 = vpop.f32.mrb[0].mxu0
        %v1273 = vadd.f32 0.0, %v1272
        %v1274 = vpop.f32.mrb[0].mxu0
        %1275 = vmatprep.mubr.bf16.mxu0 0
        %1276 = vmatmul.mubr.bf16.gmra.mrb[0].mxu0 %v1091
        %v1277 = vpop.f32.mrb[0].mxu0
        %v1278 = vadd.f32 0.0, %v1277
        %v1279 = vpop.f32.mrb[0].mxu0
        %v1280 = vpop.f32.mrb[0].mxu0
        %v1281 = vadd.f32 0.0, %v1280
        %v1282 = vpop.f32.mrb[0].mxu0
        %1283 = vmatprep.mubr.bf16.mxu0 0
        %1284 = vmatmul.mubr.bf16.gmra.mrb[0].mxu0 %v1093
        %v1285 = vpop.f32.mrb[0].mxu0
        %v1286 = vadd.f32 0.0, %v1285
        %v1287 = vpop.f32.mrb[0].mxu0
        %v1288 = vpop.f32.mrb[0].mxu0
        %v1289 = vadd.f32 0.0, %v1288
        %v1290 = vpop.f32.mrb[0].mxu0
        %1291 = vmatprep.mubr.bf16.mxu0 0
        %1292 = vmatmul.mubr.bf16.gmra.mrb[0].mxu0 %v1095
        %v1293 = vpop.f32.mrb[0].mxu0
        %v1294 = vadd.f32 0.0, %v1293
        %v1295 = vpop.f32.mrb[0].mxu0
        %v1296 = vpop.f32.mrb[0].mxu0
        %v1297 = vadd.f32 0.0, %v1296
        %v1298 = vpop.f32.mrb[0].mxu0
        %1299 = vmatprep.mubr.bf16.mxu0 0
        %1300 = vmatmul.mubr.bf16.gmra.mrb[0].mxu0 %v1097
        %v1301 = vpop.f32.mrb[0].mxu0
        %v1302 = vadd.f32 0.0, %v1301
        %v1303 = vpop.f32.mrb[0].mxu0
        %v1304 = vpop.f32.mrb[0].mxu0
        %v1305 = vadd.f32 0.0, %v1304
        %v1306 = vpop.f32.mrb[0].mxu0
        %1307 = vmatprep.mubr.bf16.mxu0 0
        %1308 = vmatmul.mubr.bf16.gmra.mrb[0].mxu0 %v1099
        %v1309 = vpop.f32.mrb[0].mxu0
        %v1310 = vadd.f32 0.0, %v1309
        %v1311 = vpop.f32.mrb[0].mxu0
        %v1312 = vpop.f32.mrb[0].mxu0
        %v1313 = vadd.f32 0.0, %v1312
        %v1314 = vpop.f32.mrb[0].mxu0
        %1315 = vdwg.mxu0
        %v1316 = vadd.f32 %v933, %v1198
        %v1317 = vadd.f32 %v936, %v1201
        %v1318 = vadd.f32 %v941, %v1206
        %v1319 = vadd.f32 %v944, %v1209
        %v1320 = vadd.f32 %v949, %v1214
        %v1321 = vadd.f32 %v952, %v1217
        %v1322 = vadd.f32 %v957, %v1222
        %v1323 = vadd.f32 %v960, %v1225
        %v1324 = vadd.f32 %v965, %v1230
        %v1325 = vadd.f32 %v968, %v1233
        %v1326 = vadd.f32 %v973, %v1238
        %v1327 = vadd.f32 %v976, %v1241
        %v1328 = vadd.f32 %v981, %v1246
        %v1329 = vadd.f32 %v984, %v1249
        %v1330 = vadd.f32 %v989, %v1254
        %v1331 = vadd.f32 %v992, %v1257
        %v1332 = vadd.f32 %v997, %v1262
        %v1333 = vadd.f32 %v1000, %v1265
        %v1334 = vadd.f32 %v1005, %v1270
        %v1335 = vadd.f32 %v1008, %v1273
        %v1336 = vadd.f32 %v1013, %v1278
        %v1337 = vadd.f32 %v1016, %v1281
        %v1338 = vadd.f32 %v1021, %v1286
        %v1339 = vadd.f32 %v1024, %v1289
        %v1340 = vadd.f32 %v1029, %v1294
        %v1341 = vadd.f32 %v1032, %v1297
        %v1342 = vadd.f32 %v1037, %v1302
        %v1343 = vadd.f32 %v1040, %v1305
        %v1344 = vadd.f32 %v1045, %v1310
        %v1345 = vadd.f32 %v1048, %v1313
        %s1346 = scalar_lea.vmem [#allocation5], 192
        %v1347 = vld [vmem:[%s1346] sm:$0xf]
        %v1348 = vld [vmem:[%s1346 + $0x4] sm:$0xf]
        %v1349 = vld [vmem:[%s1346 + $0x8] sm:$0xf]
        %v1350 = vld [vmem:[%s1346 + $0xc] sm:$0xf]
        %v1351 = vld [vmem:[%s1346 + $0x10] sm:$0xf]
        %v1352 = vld [vmem:[%s1346 + $0x14] sm:$0xf]
        %v1353 = vld [vmem:[%s1346 + $0x18] sm:$0xf]
        %v1354 = vld [vmem:[%s1346 + $0x1c] sm:$0xf]
        %v1355 = vld [vmem:[%s1346 + $0x20] sm:$0xf]
        %v1356 = vld [vmem:[%s1346 + $0x24] sm:$0xf]
        %v1357 = vld [vmem:[%s1346 + $0x28] sm:$0xf]
        %v1358 = vld [vmem:[%s1346 + $0x2c] sm:$0xf]
        %v1359 = vld [vmem:[%s1346 + $0x30] sm:$0xf]
        %v1360 = vld [vmem:[%s1346 + $0x34] sm:$0xf]
        %v1361 = vld [vmem:[%s1346 + $0x38] sm:$0xf]
        %v1362 = vld [vmem:[%s1346 + $0x3c] sm:$0xf]
        %v1365 = vunpack.c.l.b16 %v377
        %v1366 = vunpack.c.l.b16 %v378
        %v1367 = vpack.c.b16 %v451, %v450
        %v1368 = vpack.c.b16 %v453, %v452
        %v1369 = vpack.c.b16 %v455, %v454
        %v1370 = vpack.c.b16 %v457, %v456
        %v1371 = vpack.c.b16 %v459, %v458
        %v1372 = vpack.c.b16 %v461, %v460
        %v1373 = vpack.c.b16 %v463, %v462
        %v1374 = vpack.c.b16 %v465, %v464
        %v1375 = vpack.c.b16 %v467, %v466
        %v1376 = vpack.c.b16 %v469, %v468
        %v1377 = vpack.c.b16 %v471, %v470
        %v1378 = vpack.c.b16 %v473, %v472
        %v1379 = vpack.c.b16 %v475, %v474
        %v1380 = vpack.c.b16 %v477, %v476
        %v1381 = vpack.c.b16 %v1366, %v1365
        %v1413 = vunpack.c.l.b16 %v1347
        %v1414 = vunpack.c.l.b16 %v1348
        %v1415 = vunpack.c.l.b16 %v1349
        %v1416 = vunpack.c.l.b16 %v1350
        %v1417 = vunpack.c.l.b16 %v1351
        %v1418 = vunpack.c.l.b16 %v1352
        %v1419 = vunpack.c.l.b16 %v1353
        %v1420 = vunpack.c.l.b16 %v1354
        %v1421 = vunpack.c.l.b16 %v1355
        %v1422 = vunpack.c.l.b16 %v1356
        %v1423 = vunpack.c.l.b16 %v1357
        %v1424 = vunpack.c.l.b16 %v1358
        %v1425 = vunpack.c.l.b16 %v1359
        %v1426 = vunpack.c.l.b16 %v1360
        %v1427 = vunpack.c.l.b16 %v1361
        %v1428 = vunpack.c.l.b16 %v1362
        %v1429 = vpack.c.b16 %v1414, %v1413
        %v1430 = vpack.c.b16 %v1416, %v1415
        %v1431 = vpack.c.b16 %v1418, %v1417
        %v1432 = vpack.c.b16 %v1420, %v1419
        %v1433 = vpack.c.b16 %v1422, %v1421
        %v1434 = vpack.c.b16 %v1424, %v1423
        %v1435 = vpack.c.b16 %v1426, %v1425
        %v1436 = vpack.c.b16 %v1428, %v1427
        %1445 = vmatprep.subr.bf16.mxu0 0
        %1446 = vmatpush1.bf16.msra.mxu0 %v1429
        %1447 = vmatprep.subr.bf16.mxu0 0
        %1448 = vmatpush1.bf16.msra.mxu0 %v1430
        %1449 = vmatprep.subr.bf16.mxu0 0
        %1450 = vmatpush1.bf16.msra.mxu0 %v1431
        %1451 = vmatprep.subr.bf16.mxu0 0
        %1452 = vmatpush1.bf16.msra.mxu0 %v1432
        %1453 = vmatprep.subr.bf16.mxu0 0
        %1454 = vmatpush1.bf16.msra.mxu0 %v1433
        %1455 = vmatprep.subr.bf16.mxu0 0
        %1456 = vmatpush1.bf16.msra.mxu0 %v1434
        %1457 = vmatprep.subr.bf16.mxu0 0
        %1458 = vmatpush1.bf16.msra.mxu0 %v1435
        %1459 = vmatprep.subr.bf16.mxu0 0
        %1460 = vmatpush1.bf16.msra.mxu0 %v1436
        %1461 = vmatprep.subr.bf16.mxu0 0
        %1462 = vmatpush1.bf16.msra.mxu0 0
        %1463 = vmatprep.subr.bf16.mxu0 0
        %1464 = vmatpush1.bf16.msra.mxu0 0
        %1465 = vmatprep.subr.bf16.mxu0 0
        %1466 = vmatpush1.bf16.msra.mxu0 0
        %1467 = vmatprep.subr.bf16.mxu0 0
        %1468 = vmatpush1.bf16.msra.mxu0 0
        %1469 = vmatprep.subr.bf16.mxu0 0
        %1470 = vmatpush1.bf16.msra.mxu0 0
        %1471 = vmatprep.subr.bf16.mxu0 0
        %1472 = vmatpush1.bf16.msra.mxu0 0
        %1473 = vmatprep.subr.bf16.mxu0 0
        %1474 = vmatpush1.bf16.msra.mxu0 0
        %1475 = vmatprep.subr.bf16.mxu0 0
        %1476 = vmatpush1.bf16.msra.mxu0 0
        %1477 = vmatprep.mubr.bf16.mxu0 0
        %1478 = vmatmul.mubr.bf16.gmra.mrb[0].mxu0 %v1367
        %v1479 = vpop.f32.mrb[0].mxu0
        %v1480 = vadd.f32 0.0, %v1479
        %v1481 = vpop.f32.mrb[0].mxu0
        %v1482 = vpop.f32.mrb[0].mxu0
        %v1483 = vadd.f32 0.0, %v1482
        %v1484 = vpop.f32.mrb[0].mxu0
        %1485 = vmatprep.mubr.bf16.mxu0 0
        %1486 = vmatmul.mubr.bf16.gmra.mrb[0].mxu0 %v1368
        %v1487 = vpop.f32.mrb[0].mxu0
        %v1488 = vadd.f32 0.0, %v1487
        %v1489 = vpop.f32.mrb[0].mxu0
        %v1490 = vpop.f32.mrb[0].mxu0
        %v1491 = vadd.f32 0.0, %v1490
        %v1492 = vpop.f32.mrb[0].mxu0
        %1493 = vmatprep.mubr.bf16.mxu0 0
        %1494 = vmatmul.mubr.bf16.gmra.mrb[0].mxu0 %v1369
        %v1495 = vpop.f32.mrb[0].mxu0
        %v1496 = vadd.f32 0.0, %v1495
        %v1497 = vpop.f32.mrb[0].mxu0
        %v1498 = vpop.f32.mrb[0].mxu0
        %v1499 = vadd.f32 0.0, %v1498
        %v1500 = vpop.f32.mrb[0].mxu0
        %1501 = vmatprep.mubr.bf16.mxu0 0
        %1502 = vmatmul.mubr.bf16.gmra.mrb[0].mxu0 %v1370
        %v1503 = vpop.f32.mrb[0].mxu0
        %v1504 = vadd.f32 0.0, %v1503
        %v1505 = vpop.f32.mrb[0].mxu0
        %v1506 = vpop.f32.mrb[0].mxu0
        %v1507 = vadd.f32 0.0, %v1506
        %v1508 = vpop.f32.mrb[0].mxu0
        %1509 = vmatprep.mubr.bf16.mxu0 0
        %1510 = vmatmul.mubr.bf16.gmra.mrb[0].mxu0 %v1371
        %v1511 = vpop.f32.mrb[0].mxu0
        %v1512 = vadd.f32 0.0, %v1511
        %v1513 = vpop.f32.mrb[0].mxu0
        %v1514 = vpop.f32.mrb[0].mxu0
        %v1515 = vadd.f32 0.0, %v1514
        %v1516 = vpop.f32.mrb[0].mxu0
        %1517 = vmatprep.mubr.bf16.mxu0 0
        %1518 = vmatmul.mubr.bf16.gmra.mrb[0].mxu0 %v1372
        %v1519 = vpop.f32.mrb[0].mxu0
        %v1520 = vadd.f32 0.0, %v1519
        %v1521 = vpop.f32.mrb[0].mxu0
        %v1522 = vpop.f32.mrb[0].mxu0
        %v1523 = vadd.f32 0.0, %v1522
        %v1524 = vpop.f32.mrb[0].mxu0
        %1525 = vmatprep.mubr.bf16.mxu0 0
        %1526 = vmatmul.mubr.bf16.gmra.mrb[0].mxu0 %v1373
        %v1527 = vpop.f32.mrb[0].mxu0
        %v1528 = vadd.f32 0.0, %v1527
        %v1529 = vpop.f32.mrb[0].mxu0
        %v1530 = vpop.f32.mrb[0].mxu0
        %v1531 = vadd.f32 0.0, %v1530
        %v1532 = vpop.f32.mrb[0].mxu0
        %1533 = vmatprep.mubr.bf16.mxu0 0
        %1534 = vmatmul.mubr.bf16.gmra.mrb[0].mxu0 %v1374
        %v1535 = vpop.f32.mrb[0].mxu0
        %v1536 = vadd.f32 0.0, %v1535
        %v1537 = vpop.f32.mrb[0].mxu0
        %v1538 = vpop.f32.mrb[0].mxu0
        %v1539 = vadd.f32 0.0, %v1538
        %v1540 = vpop.f32.mrb[0].mxu0
        %1541 = vmatprep.mubr.bf16.mxu0 0
        %1542 = vmatmul.mubr.bf16.gmra.mrb[0].mxu0 %v1375
        %v1543 = vpop.f32.mrb[0].mxu0
        %v1544 = vadd.f32 0.0, %v1543
        %v1545 = vpop.f32.mrb[0].mxu0
        %v1546 = vpop.f32.mrb[0].mxu0
        %v1547 = vadd.f32 0.0, %v1546
        %v1548 = vpop.f32.mrb[0].mxu0
        %1549 = vmatprep.mubr.bf16.mxu0 0
        %1550 = vmatmul.mubr.bf16.gmra.mrb[0].mxu0 %v1376
        %v1551 = vpop.f32.mrb[0].mxu0
        %v1552 = vadd.f32 0.0, %v1551
        %v1553 = vpop.f32.mrb[0].mxu0
        %v1554 = vpop.f32.mrb[0].mxu0
        %v1555 = vadd.f32 0.0, %v1554
        %v1556 = vpop.f32.mrb[0].mxu0
        %1557 = vmatprep.mubr.bf16.mxu0 0
        %1558 = vmatmul.mubr.bf16.gmra.mrb[0].mxu0 %v1377
        %v1559 = vpop.f32.mrb[0].mxu0
        %v1560 = vadd.f32 0.0, %v1559
        %v1561 = vpop.f32.mrb[0].mxu0
        %v1562 = vpop.f32.mrb[0].mxu0
        %v1563 = vadd.f32 0.0, %v1562
        %v1564 = vpop.f32.mrb[0].mxu0
        %1565 = vmatprep.mubr.bf16.mxu0 0
        %1566 = vmatmul.mubr.bf16.gmra.mrb[0].mxu0 %v1378
        %v1567 = vpop.f32.mrb[0].mxu0
        %v1568 = vadd.f32 0.0, %v1567
        %v1569 = vpop.f32.mrb[0].mxu0
        %v1570 = vpop.f32.mrb[0].mxu0
        %v1571 = vadd.f32 0.0, %v1570
        %v1572 = vpop.f32.mrb[0].mxu0
        %1573 = vmatprep.mubr.bf16.mxu0 0
        %1574 = vmatmul.mubr.bf16.gmra.mrb[0].mxu0 %v1379
        %v1575 = vpop.f32.mrb[0].mxu0
        %v1576 = vadd.f32 0.0, %v1575
        %v1577 = vpop.f32.mrb[0].mxu0
        %v1578 = vpop.f32.mrb[0].mxu0
        %v1579 = vadd.f32 0.0, %v1578
        %v1580 = vpop.f32.mrb[0].mxu0
        %1581 = vmatprep.mubr.bf16.mxu0 0
        %1582 = vmatmul.mubr.bf16.gmra.mrb[0].mxu0 %v1380
        %v1583 = vpop.f32.mrb[0].mxu0
        %v1584 = vadd.f32 0.0, %v1583
        %v1585 = vpop.f32.mrb[0].mxu0
        %v1586 = vpop.f32.mrb[0].mxu0
        %v1587 = vadd.f32 0.0, %v1586
        %v1588 = vpop.f32.mrb[0].mxu0
        %1589 = vmatprep.mubr.bf16.mxu0 0
        %1590 = vmatmul.mubr.bf16.gmra.mrb[0].mxu0 %v1381
        %v1591 = vpop.f32.mrb[0].mxu0
        %v1592 = vadd.f32 0.0, %v1591
        %v1593 = vpop.f32.mrb[0].mxu0
        %v1594 = vpop.f32.mrb[0].mxu0
        %v1595 = vadd.f32 0.0, %v1594
        %v1596 = vpop.f32.mrb[0].mxu0
        %1597 = vdwg.mxu0
        %v1598 = vadd.f32 %v1316, %v1480
        %v1599 = vadd.f32 %v1317, %v1483
        %v1600 = vadd.f32 %v1318, %v1488
        %v1601 = vadd.f32 %v1319, %v1491
        %v1602 = vadd.f32 %v1320, %v1496
        %v1603 = vadd.f32 %v1321, %v1499
        %v1604 = vadd.f32 %v1322, %v1504
        %v1605 = vadd.f32 %v1323, %v1507
        %v1606 = vadd.f32 %v1324, %v1512
        %v1607 = vadd.f32 %v1325, %v1515
        %v1608 = vadd.f32 %v1326, %v1520
        %v1609 = vadd.f32 %v1327, %v1523
        %v1610 = vadd.f32 %v1328, %v1528
        %v1611 = vadd.f32 %v1329, %v1531
        %v1612 = vadd.f32 %v1330, %v1536
        %v1613 = vadd.f32 %v1331, %v1539
        %v1614 = vadd.f32 %v1332, %v1544
        %v1615 = vadd.f32 %v1333, %v1547
        %v1616 = vadd.f32 %v1334, %v1552
        %v1617 = vadd.f32 %v1335, %v1555
        %v1618 = vadd.f32 %v1336, %v1560
        %v1619 = vadd.f32 %v1337, %v1563
        %v1620 = vadd.f32 %v1338, %v1568
        %v1621 = vadd.f32 %v1339, %v1571
        %v1622 = vadd.f32 %v1340, %v1576
        %v1623 = vadd.f32 %v1341, %v1579
        %v1624 = vadd.f32 %v1342, %v1584
        %v1625 = vadd.f32 %v1343, %v1587
        %v1626 = vadd.f32 %v1344, %v1592
        %v1627 = vadd.f32 %v1345, %v1595
        %s1628 = scalar_lea.vmem [#allocation5], 256
        %v1629 = vld [vmem:[%s1628] sm:$0xf]
        %v1630 = vld [vmem:[%s1628 + $0x4] sm:$0xf]
        %v1631 = vld [vmem:[%s1628 + $0x8] sm:$0xf]
        %v1632 = vld [vmem:[%s1628 + $0xc] sm:$0xf]
        %v1633 = vld [vmem:[%s1628 + $0x10] sm:$0xf]
        %v1634 = vld [vmem:[%s1628 + $0x14] sm:$0xf]
        %v1635 = vld [vmem:[%s1628 + $0x18] sm:$0xf]
        %v1636 = vld [vmem:[%s1628 + $0x1c] sm:$0xf]
        %v1637 = vld [vmem:[%s1628 + $0x20] sm:$0xf]
        %v1638 = vld [vmem:[%s1628 + $0x24] sm:$0xf]
        %v1639 = vld [vmem:[%s1628 + $0x28] sm:$0xf]
        %v1640 = vld [vmem:[%s1628 + $0x2c] sm:$0xf]
        %v1641 = vld [vmem:[%s1628 + $0x30] sm:$0xf]
        %v1642 = vld [vmem:[%s1628 + $0x34] sm:$0xf]
        %v1643 = vld [vmem:[%s1628 + $0x38] sm:$0xf]
        %v1644 = vld [vmem:[%s1628 + $0x3c] sm:$0xf]
        %v1646 = vunpack.c.l.b16 %v379
        %v1647 = vpack.c.b16 %v1646, %v1646
        %v1649 = vshrl.u32 %v1367, 16
        %v1651 = vshll.u32 %v1367, 16
        %v1653 = vrot.slane %v1651, 1
        %v1654 = vor.u32 %v1649, %v1653
        %v1656 = vshll.u32 %v1368, 16
        %v1658 = vrot.slane %v1656, 1
        %v1659 = vsel %vm494, %v1654, %v1658
        %v1660 = vshrl.u32 %v1368, 16
        %v1662 = vor.u32 %v1660, %v1658
        %v1664 = vshll.u32 %v1369, 16
        %v1666 = vrot.slane %v1664, 1
        %v1667 = vsel %vm494, %v1662, %v1666
        %v1668 = vshrl.u32 %v1369, 16
        %v1670 = vor.u32 %v1668, %v1666
        %v1672 = vshll.u32 %v1370, 16
        %v1674 = vrot.slane %v1672, 1
        %v1675 = vsel %vm494, %v1670, %v1674
        %v1676 = vshrl.u32 %v1370, 16
        %v1678 = vor.u32 %v1676, %v1674
        %v1680 = vshll.u32 %v1371, 16
        %v1682 = vrot.slane %v1680, 1
        %v1683 = vsel %vm494, %v1678, %v1682
        %v1684 = vshrl.u32 %v1371, 16
        %v1686 = vor.u32 %v1684, %v1682
        %v1688 = vshll.u32 %v1372, 16
        %v1690 = vrot.slane %v1688, 1
        %v1691 = vsel %vm494, %v1686, %v1690
        %v1692 = vshrl.u32 %v1372, 16
        %v1694 = vor.u32 %v1692, %v1690
        %v1696 = vshll.u32 %v1373, 16
        %v1698 = vrot.slane %v1696, 1
        %v1699 = vsel %vm494, %v1694, %v1698
        %v1700 = vshrl.u32 %v1373, 16
        %v1702 = vor.u32 %v1700, %v1698
        %v1704 = vshll.u32 %v1374, 16
        %v1706 = vrot.slane %v1704, 1
        %v1707 = vsel %vm494, %v1702, %v1706
        %v1708 = vshrl.u32 %v1374, 16
        %v1710 = vor.u32 %v1708, %v1706
        %v1712 = vshll.u32 %v1375, 16
        %v1714 = vrot.slane %v1712, 1
        %v1715 = vsel %vm494, %v1710, %v1714
        %v1716 = vshrl.u32 %v1375, 16
        %v1718 = vor.u32 %v1716, %v1714
        %v1720 = vshll.u32 %v1376, 16
        %v1722 = vrot.slane %v1720, 1
        %v1723 = vsel %vm494, %v1718, %v1722
        %v1724 = vshrl.u32 %v1376, 16
        %v1726 = vor.u32 %v1724, %v1722
        %v1728 = vshll.u32 %v1377, 16
        %v1730 = vrot.slane %v1728, 1
        %v1731 = vsel %vm494, %v1726, %v1730
        %v1732 = vshrl.u32 %v1377, 16
        %v1734 = vor.u32 %v1732, %v1730
        %v1736 = vshll.u32 %v1378, 16
        %v1738 = vrot.slane %v1736, 1
        %v1739 = vsel %vm494, %v1734, %v1738
        %v1740 = vshrl.u32 %v1378, 16
        %v1742 = vor.u32 %v1740, %v1738
        %v1744 = vshll.u32 %v1379, 16
        %v1746 = vrot.slane %v1744, 1
        %v1747 = vsel %vm494, %v1742, %v1746
        %v1748 = vshrl.u32 %v1379, 16
        %v1750 = vor.u32 %v1748, %v1746
        %v1752 = vshll.u32 %v1380, 16
        %v1754 = vrot.slane %v1752, 1
        %v1755 = vsel %vm494, %v1750, %v1754
        %v1756 = vshrl.u32 %v1380, 16
        %v1758 = vor.u32 %v1756, %v1754
        %v1760 = vshll.u32 %v1381, 16
        %v1762 = vrot.slane %v1760, 1
        %v1763 = vsel %vm494, %v1758, %v1762
        %v1764 = vshrl.u32 %v1381, 16
        %v1766 = vor.u32 %v1764, %v1762
        %v1768 = vshll.u32 %v1647, 16
        %v1770 = vrot.slane %v1768, 1
        %v1771 = vsel %vm494, %v1766, %v1770
        %v1803 = vunpack.c.l.b16 %v1629
        %v1804 = vunpack.c.l.b16 %v1630
        %v1805 = vunpack.c.l.b16 %v1631
        %v1806 = vunpack.c.l.b16 %v1632
        %v1807 = vunpack.c.l.b16 %v1633
        %v1808 = vunpack.c.l.b16 %v1634
        %v1809 = vunpack.c.l.b16 %v1635
        %v1810 = vunpack.c.l.b16 %v1636
        %v1811 = vunpack.c.l.b16 %v1637
        %v1812 = vunpack.c.l.b16 %v1638
        %v1813 = vunpack.c.l.b16 %v1639
        %v1814 = vunpack.c.l.b16 %v1640
        %v1815 = vunpack.c.l.b16 %v1641
        %v1816 = vunpack.c.l.b16 %v1642
        %v1817 = vunpack.c.l.b16 %v1643
        %v1818 = vunpack.c.l.b16 %v1644
        %v1819 = vpack.c.b16 %v1804, %v1803
        %v1820 = vpack.c.b16 %v1806, %v1805
        %v1821 = vpack.c.b16 %v1808, %v1807
        %v1822 = vpack.c.b16 %v1810, %v1809
        %v1823 = vpack.c.b16 %v1812, %v1811
        %v1824 = vpack.c.b16 %v1814, %v1813
        %v1825 = vpack.c.b16 %v1816, %v1815
        %v1826 = vpack.c.b16 %v1818, %v1817
        %1835 = vmatprep.subr.bf16.mxu0 0
        %1836 = vmatpush1.bf16.msra.mxu0 %v1819
        %1837 = vmatprep.subr.bf16.mxu0 0
        %1838 = vmatpush1.bf16.msra.mxu0 %v1820
        %1839 = vmatprep.subr.bf16.mxu0 0
        %1840 = vmatpush1.bf16.msra.mxu0 %v1821
        %1841 = vmatprep.subr.bf16.mxu0 0
        %1842 = vmatpush1.bf16.msra.mxu0 %v1822
        %1843 = vmatprep.subr.bf16.mxu0 0
        %1844 = vmatpush1.bf16.msra.mxu0 %v1823
        %1845 = vmatprep.subr.bf16.mxu0 0
        %1846 = vmatpush1.bf16.msra.mxu0 %v1824
        %1847 = vmatprep.subr.bf16.mxu0 0
        %1848 = vmatpush1.bf16.msra.mxu0 %v1825
        %1849 = vmatprep.subr.bf16.mxu0 0
        %1850 = vmatpush1.bf16.msra.mxu0 %v1826
        %1851 = vmatprep.subr.bf16.mxu0 0
        %1852 = vmatpush1.bf16.msra.mxu0 0
        %1853 = vmatprep.subr.bf16.mxu0 0
        %1854 = vmatpush1.bf16.msra.mxu0 0
        %1855 = vmatprep.subr.bf16.mxu0 0
        %1856 = vmatpush1.bf16.msra.mxu0 0
        %1857 = vmatprep.subr.bf16.mxu0 0
        %1858 = vmatpush1.bf16.msra.mxu0 0
        %1859 = vmatprep.subr.bf16.mxu0 0
        %1860 = vmatpush1.bf16.msra.mxu0 0
        %1861 = vmatprep.subr.bf16.mxu0 0
        %1862 = vmatpush1.bf16.msra.mxu0 0
        %1863 = vmatprep.subr.bf16.mxu0 0
        %1864 = vmatpush1.bf16.msra.mxu0 0
        %1865 = vmatprep.subr.bf16.mxu0 0
        %1866 = vmatpush1.bf16.msra.mxu0 0
        %1867 = vmatprep.mubr.bf16.mxu0 0
        %1868 = vmatmul.mubr.bf16.gmra.mrb[0].mxu0 %v1659
        %v1869 = vpop.f32.mrb[0].mxu0
        %v1870 = vadd.f32 0.0, %v1869
        %v1871 = vpop.f32.mrb[0].mxu0
        %v1872 = vpop.f32.mrb[0].mxu0
        %v1873 = vadd.f32 0.0, %v1872
        %v1874 = vpop.f32.mrb[0].mxu0
        %1875 = vmatprep.mubr.bf16.mxu0 0
        %1876 = vmatmul.mubr.bf16.gmra.mrb[0].mxu0 %v1667
        %v1877 = vpop.f32.mrb[0].mxu0
        %v1878 = vadd.f32 0.0, %v1877
        %v1879 = vpop.f32.mrb[0].mxu0
        %v1880 = vpop.f32.mrb[0].mxu0
        %v1881 = vadd.f32 0.0, %v1880
        %v1882 = vpop.f32.mrb[0].mxu0
        %1883 = vmatprep.mubr.bf16.mxu0 0
        %1884 = vmatmul.mubr.bf16.gmra.mrb[0].mxu0 %v1675
        %v1885 = vpop.f32.mrb[0].mxu0
        %v1886 = vadd.f32 0.0, %v1885
        %v1887 = vpop.f32.mrb[0].mxu0
        %v1888 = vpop.f32.mrb[0].mxu0
        %v1889 = vadd.f32 0.0, %v1888
        %v1890 = vpop.f32.mrb[0].mxu0
        %1891 = vmatprep.mubr.bf16.mxu0 0
        %1892 = vmatmul.mubr.bf16.gmra.mrb[0].mxu0 %v1683
        %v1893 = vpop.f32.mrb[0].mxu0
        %v1894 = vadd.f32 0.0, %v1893
        %v1895 = vpop.f32.mrb[0].mxu0
        %v1896 = vpop.f32.mrb[0].mxu0
        %v1897 = vadd.f32 0.0, %v1896
        %v1898 = vpop.f32.mrb[0].mxu0
        %1899 = vmatprep.mubr.bf16.mxu0 0
        %1900 = vmatmul.mubr.bf16.gmra.mrb[0].mxu0 %v1691
        %v1901 = vpop.f32.mrb[0].mxu0
        %v1902 = vadd.f32 0.0, %v1901
        %v1903 = vpop.f32.mrb[0].mxu0
        %v1904 = vpop.f32.mrb[0].mxu0
        %v1905 = vadd.f32 0.0, %v1904
        %v1906 = vpop.f32.mrb[0].mxu0
        %1907 = vmatprep.mubr.bf16.mxu0 0
        %1908 = vmatmul.mubr.bf16.gmra.mrb[0].mxu0 %v1699
        %v1909 = vpop.f32.mrb[0].mxu0
        %v1910 = vadd.f32 0.0, %v1909
        %v1911 = vpop.f32.mrb[0].mxu0
        %v1912 = vpop.f32.mrb[0].mxu0
        %v1913 = vadd.f32 0.0, %v1912
        %v1914 = vpop.f32.mrb[0].mxu0
        %1915 = vmatprep.mubr.bf16.mxu0 0
        %1916 = vmatmul.mubr.bf16.gmra.mrb[0].mxu0 %v1707
        %v1917 = vpop.f32.mrb[0].mxu0
        %v1918 = vadd.f32 0.0, %v1917
        %v1919 = vpop.f32.mrb[0].mxu0
        %v1920 = vpop.f32.mrb[0].mxu0
        %v1921 = vadd.f32 0.0, %v1920
        %v1922 = vpop.f32.mrb[0].mxu0
        %1923 = vmatprep.mubr.bf16.mxu0 0
        %1924 = vmatmul.mubr.bf16.gmra.mrb[0].mxu0 %v1715
        %v1925 = vpop.f32.mrb[0].mxu0
        %v1926 = vadd.f32 0.0, %v1925
        %v1927 = vpop.f32.mrb[0].mxu0
        %v1928 = vpop.f32.mrb[0].mxu0
        %v1929 = vadd.f32 0.0, %v1928
        %v1930 = vpop.f32.mrb[0].mxu0
        %1931 = vmatprep.mubr.bf16.mxu0 0
        %1932 = vmatmul.mubr.bf16.gmra.mrb[0].mxu0 %v1723
        %v1933 = vpop.f32.mrb[0].mxu0
        %v1934 = vadd.f32 0.0, %v1933
        %v1935 = vpop.f32.mrb[0].mxu0
        %v1936 = vpop.f32.mrb[0].mxu0
        %v1937 = vadd.f32 0.0, %v1936
        %v1938 = vpop.f32.mrb[0].mxu0
        %1939 = vmatprep.mubr.bf16.mxu0 0
        %1940 = vmatmul.mubr.bf16.gmra.mrb[0].mxu0 %v1731
        %v1941 = vpop.f32.mrb[0].mxu0
        %v1942 = vadd.f32 0.0, %v1941
        %v1943 = vpop.f32.mrb[0].mxu0
        %v1944 = vpop.f32.mrb[0].mxu0
        %v1945 = vadd.f32 0.0, %v1944
        %v1946 = vpop.f32.mrb[0].mxu0
        %1947 = vmatprep.mubr.bf16.mxu0 0
        %1948 = vmatmul.mubr.bf16.gmra.mrb[0].mxu0 %v1739
        %v1949 = vpop.f32.mrb[0].mxu0
        %v1950 = vadd.f32 0.0, %v1949
        %v1951 = vpop.f32.mrb[0].mxu0
        %v1952 = vpop.f32.mrb[0].mxu0
        %v1953 = vadd.f32 0.0, %v1952
        %v1954 = vpop.f32.mrb[0].mxu0
        %1955 = vmatprep.mubr.bf16.mxu0 0
        %1956 = vmatmul.mubr.bf16.gmra.mrb[0].mxu0 %v1747
        %v1957 = vpop.f32.mrb[0].mxu0
        %v1958 = vadd.f32 0.0, %v1957
        %v1959 = vpop.f32.mrb[0].mxu0
        %v1960 = vpop.f32.mrb[0].mxu0
        %v1961 = vadd.f32 0.0, %v1960
        %v1962 = vpop.f32.mrb[0].mxu0
        %1963 = vmatprep.mubr.bf16.mxu0 0
        %1964 = vmatmul.mubr.bf16.gmra.mrb[0].mxu0 %v1755
        %v1965 = vpop.f32.mrb[0].mxu0
        %v1966 = vadd.f32 0.0, %v1965
        %v1967 = vpop.f32.mrb[0].mxu0
        %v1968 = vpop.f32.mrb[0].mxu0
        %v1969 = vadd.f32 0.0, %v1968
        %v1970 = vpop.f32.mrb[0].mxu0
        %1971 = vmatprep.mubr.bf16.mxu0 0
        %1972 = vmatmul.mubr.bf16.gmra.mrb[0].mxu0 %v1763
        %v1973 = vpop.f32.mrb[0].mxu0
        %v1974 = vadd.f32 0.0, %v1973
        %v1975 = vpop.f32.mrb[0].mxu0
        %v1976 = vpop.f32.mrb[0].mxu0
        %v1977 = vadd.f32 0.0, %v1976
        %v1978 = vpop.f32.mrb[0].mxu0
        %1979 = vmatprep.mubr.bf16.mxu0 0
        %1980 = vmatmul.mubr.bf16.gmra.mrb[0].mxu0 %v1771
        %v1981 = vpop.f32.mrb[0].mxu0
        %v1982 = vadd.f32 0.0, %v1981
        %v1983 = vpop.f32.mrb[0].mxu0
        %v1984 = vpop.f32.mrb[0].mxu0
        %v1985 = vadd.f32 0.0, %v1984
        %v1986 = vpop.f32.mrb[0].mxu0
        %1987 = vdwg.mxu0
        %v1988 = vadd.f32 %v1598, %v1870
        %v1989 = vadd.f32 %v1599, %v1873
        %v1990 = vadd.f32 %v1600, %v1878
        %v1991 = vadd.f32 %v1601, %v1881
        %v1992 = vadd.f32 %v1602, %v1886
        %v1993 = vadd.f32 %v1603, %v1889
        %v1994 = vadd.f32 %v1604, %v1894
        %v1995 = vadd.f32 %v1605, %v1897
        %v1996 = vadd.f32 %v1606, %v1902
        %v1997 = vadd.f32 %v1607, %v1905
        %v1998 = vadd.f32 %v1608, %v1910
        %v1999 = vadd.f32 %v1609, %v1913
        %v2000 = vadd.f32 %v1610, %v1918
        %v2001 = vadd.f32 %v1611, %v1921
        %v2002 = vadd.f32 %v1612, %v1926
        %v2003 = vadd.f32 %v1613, %v1929
        %v2004 = vadd.f32 %v1614, %v1934
        %v2005 = vadd.f32 %v1615, %v1937
        %v2006 = vadd.f32 %v1616, %v1942
        %v2007 = vadd.f32 %v1617, %v1945
        %v2008 = vadd.f32 %v1618, %v1950
        %v2009 = vadd.f32 %v1619, %v1953
        %v2010 = vadd.f32 %v1620, %v1958
        %v2011 = vadd.f32 %v1621, %v1961
        %v2012 = vadd.f32 %v1622, %v1966
        %v2013 = vadd.f32 %v1623, %v1969
        %v2014 = vadd.f32 %v1624, %v1974
        %v2015 = vadd.f32 %v1625, %v1977
        %v2016 = vadd.f32 %v1626, %v1982
        %v2017 = vadd.f32 %v1627, %v1985
        %s2018 = scalar_lea.vmem [#allocation5], 320
        %v2019 = vld [vmem:[%s2018] sm:$0xf]
        %v2020 = vld [vmem:[%s2018 + $0x4] sm:$0xf]
        %v2021 = vld [vmem:[%s2018 + $0x8] sm:$0xf]
        %v2022 = vld [vmem:[%s2018 + $0xc] sm:$0xf]
        %v2023 = vld [vmem:[%s2018 + $0x10] sm:$0xf]
        %v2024 = vld [vmem:[%s2018 + $0x14] sm:$0xf]
        %v2025 = vld [vmem:[%s2018 + $0x18] sm:$0xf]
        %v2026 = vld [vmem:[%s2018 + $0x1c] sm:$0xf]
        %v2027 = vld [vmem:[%s2018 + $0x20] sm:$0xf]
        %v2028 = vld [vmem:[%s2018 + $0x24] sm:$0xf]
        %v2029 = vld [vmem:[%s2018 + $0x28] sm:$0xf]
        %v2030 = vld [vmem:[%s2018 + $0x2c] sm:$0xf]
        %v2031 = vld [vmem:[%s2018 + $0x30] sm:$0xf]
        %v2032 = vld [vmem:[%s2018 + $0x34] sm:$0xf]
        %v2033 = vld [vmem:[%s2018 + $0x38] sm:$0xf]
        %v2034 = vld [vmem:[%s2018 + $0x3c] sm:$0xf]
        %v2035 = vrot.slane %v1367, 1
        %v2036 = vrot.slane %v1368, 1
        %v2037 = vsel %vm1068, %v2035, %v2036
        %v2038 = vrot.slane %v1369, 1
        %v2039 = vsel %vm1068, %v2036, %v2038
        %v2040 = vrot.slane %v1370, 1
        %v2041 = vsel %vm1068, %v2038, %v2040
        %v2042 = vrot.slane %v1371, 1
        %v2043 = vsel %vm1068, %v2040, %v2042
        %v2044 = vrot.slane %v1372, 1
        %v2045 = vsel %vm1068, %v2042, %v2044
        %v2046 = vrot.slane %v1373, 1
        %v2047 = vsel %vm1068, %v2044, %v2046
        %v2048 = vrot.slane %v1374, 1
        %v2049 = vsel %vm1068, %v2046, %v2048
        %v2050 = vrot.slane %v1375, 1
        %v2051 = vsel %vm1068, %v2048, %v2050
        %v2052 = vrot.slane %v1376, 1
        %v2053 = vsel %vm1068, %v2050, %v2052
        %v2054 = vrot.slane %v1377, 1
        %v2055 = vsel %vm1068, %v2052, %v2054
        %v2056 = vrot.slane %v1378, 1
        %v2057 = vsel %vm1068, %v2054, %v2056
        %v2058 = vrot.slane %v1379, 1
        %v2059 = vsel %vm1068, %v2056, %v2058
        %v2060 = vrot.slane %v1380, 1
        %v2061 = vsel %vm1068, %v2058, %v2060
        %v2062 = vrot.slane %v1381, 1
        %v2063 = vsel %vm1068, %v2060, %v2062
        %v2064 = vrot.slane %v1647, 1
        %v2065 = vsel %vm1068, %v2062, %v2064
        %v2097 = vunpack.c.l.b16 %v2019
        %v2098 = vunpack.c.l.b16 %v2020
        %v2099 = vunpack.c.l.b16 %v2021
        %v2100 = vunpack.c.l.b16 %v2022
        %v2101 = vunpack.c.l.b16 %v2023
        %v2102 = vunpack.c.l.b16 %v2024
        %v2103 = vunpack.c.l.b16 %v2025
        %v2104 = vunpack.c.l.b16 %v2026
        %v2105 = vunpack.c.l.b16 %v2027
        %v2106 = vunpack.c.l.b16 %v2028
        %v2107 = vunpack.c.l.b16 %v2029
        %v2108 = vunpack.c.l.b16 %v2030
        %v2109 = vunpack.c.l.b16 %v2031
        %v2110 = vunpack.c.l.b16 %v2032
        %v2111 = vunpack.c.l.b16 %v2033
        %v2112 = vunpack.c.l.b16 %v2034
        %v2113 = vpack.c.b16 %v2098, %v2097
        %v2114 = vpack.c.b16 %v2100, %v2099
        %v2115 = vpack.c.b16 %v2102, %v2101
        %v2116 = vpack.c.b16 %v2104, %v2103
        %v2117 = vpack.c.b16 %v2106, %v2105
        %v2118 = vpack.c.b16 %v2108, %v2107
        %v2119 = vpack.c.b16 %v2110, %v2109
        %v2120 = vpack.c.b16 %v2112, %v2111
        %2129 = vmatprep.subr.bf16.mxu0 0
        %2130 = vmatpush1.bf16.msra.mxu0 %v2113
        %2131 = vmatprep.subr.bf16.mxu0 0
        %2132 = vmatpush1.bf16.msra.mxu0 %v2114
        %2133 = vmatprep.subr.bf16.mxu0 0
        %2134 = vmatpush1.bf16.msra.mxu0 %v2115
        %2135 = vmatprep.subr.bf16.mxu0 0
        %2136 = vmatpush1.bf16.msra.mxu0 %v2116
        %2137 = vmatprep.subr.bf16.mxu0 0
        %2138 = vmatpush1.bf16.msra.mxu0 %v2117
        %2139 = vmatprep.subr.bf16.mxu0 0
        %2140 = vmatpush1.bf16.msra.mxu0 %v2118
        %2141 = vmatprep.subr.bf16.mxu0 0
        %2142 = vmatpush1.bf16.msra.mxu0 %v2119
        %2143 = vmatprep.subr.bf16.mxu0 0
        %2144 = vmatpush1.bf16.msra.mxu0 %v2120
        %2145 = vmatprep.subr.bf16.mxu0 0
        %2146 = vmatpush1.bf16.msra.mxu0 0
        %2147 = vmatprep.subr.bf16.mxu0 0
        %2148 = vmatpush1.bf16.msra.mxu0 0
        %2149 = vmatprep.subr.bf16.mxu0 0
        %2150 = vmatpush1.bf16.msra.mxu0 0
        %2151 = vmatprep.subr.bf16.mxu0 0
        %2152 = vmatpush1.bf16.msra.mxu0 0
        %2153 = vmatprep.subr.bf16.mxu0 0
        %2154 = vmatpush1.bf16.msra.mxu0 0
        %2155 = vmatprep.subr.bf16.mxu0 0
        %2156 = vmatpush1.bf16.msra.mxu0 0
        %2157 = vmatprep.subr.bf16.mxu0 0
        %2158 = vmatpush1.bf16.msra.mxu0 0
        %2159 = vmatprep.subr.bf16.mxu0 0
        %2160 = vmatpush1.bf16.msra.mxu0 0
        %2161 = vmatprep.mubr.bf16.mxu0 0
        %2162 = vmatmul.mubr.bf16.gmra.mrb[0].mxu0 %v2037
        %v2163 = vpop.f32.mrb[0].mxu0
        %v2164 = vadd.f32 0.0, %v2163
        %v2165 = vpop.f32.mrb[0].mxu0
        %v2166 = vpop.f32.mrb[0].mxu0
        %v2167 = vadd.f32 0.0, %v2166
        %v2168 = vpop.f32.mrb[0].mxu0
        %2169 = vmatprep.mubr.bf16.mxu0 0
        %2170 = vmatmul.mubr.bf16.gmra.mrb[0].mxu0 %v2039
        %v2171 = vpop.f32.mrb[0].mxu0
        %v2172 = vadd.f32 0.0, %v2171
        %v2173 = vpop.f32.mrb[0].mxu0
        %v2174 = vpop.f32.mrb[0].mxu0
        %v2175 = vadd.f32 0.0, %v2174
        %v2176 = vpop.f32.mrb[0].mxu0
        %2177 = vmatprep.mubr.bf16.mxu0 0
        %2178 = vmatmul.mubr.bf16.gmra.mrb[0].mxu0 %v2041
        %v2179 = vpop.f32.mrb[0].mxu0
        %v2180 = vadd.f32 0.0, %v2179
        %v2181 = vpop.f32.mrb[0].mxu0
        %v2182 = vpop.f32.mrb[0].mxu0
        %v2183 = vadd.f32 0.0, %v2182
        %v2184 = vpop.f32.mrb[0].mxu0
        %2185 = vmatprep.mubr.bf16.mxu0 0
        %2186 = vmatmul.mubr.bf16.gmra.mrb[0].mxu0 %v2043
        %v2187 = vpop.f32.mrb[0].mxu0
        %v2188 = vadd.f32 0.0, %v2187
        %v2189 = vpop.f32.mrb[0].mxu0
        %v2190 = vpop.f32.mrb[0].mxu0
        %v2191 = vadd.f32 0.0, %v2190
        %v2192 = vpop.f32.mrb[0].mxu0
        %2193 = vmatprep.mubr.bf16.mxu0 0
        %2194 = vmatmul.mubr.bf16.gmra.mrb[0].mxu0 %v2045
        %v2195 = vpop.f32.mrb[0].mxu0
        %v2196 = vadd.f32 0.0, %v2195
        %v2197 = vpop.f32.mrb[0].mxu0
        %v2198 = vpop.f32.mrb[0].mxu0
        %v2199 = vadd.f32 0.0, %v2198
        %v2200 = vpop.f32.mrb[0].mxu0
        %2201 = vmatprep.mubr.bf16.mxu0 0
        %2202 = vmatmul.mubr.bf16.gmra.mrb[0].mxu0 %v2047
        %v2203 = vpop.f32.mrb[0].mxu0
        %v2204 = vadd.f32 0.0, %v2203
        %v2205 = vpop.f32.mrb[0].mxu0
        %v2206 = vpop.f32.mrb[0].mxu0
        %v2207 = vadd.f32 0.0, %v2206
        %v2208 = vpop.f32.mrb[0].mxu0
        %2209 = vmatprep.mubr.bf16.mxu0 0
        %2210 = vmatmul.mubr.bf16.gmra.mrb[0].mxu0 %v2049
        %v2211 = vpop.f32.mrb[0].mxu0
        %v2212 = vadd.f32 0.0, %v2211
        %v2213 = vpop.f32.mrb[0].mxu0
        %v2214 = vpop.f32.mrb[0].mxu0
        %v2215 = vadd.f32 0.0, %v2214
        %v2216 = vpop.f32.mrb[0].mxu0
        %2217 = vmatprep.mubr.bf16.mxu0 0
        %2218 = vmatmul.mubr.bf16.gmra.mrb[0].mxu0 %v2051
        %v2219 = vpop.f32.mrb[0].mxu0
        %v2220 = vadd.f32 0.0, %v2219
        %v2221 = vpop.f32.mrb[0].mxu0
        %v2222 = vpop.f32.mrb[0].mxu0
        %v2223 = vadd.f32 0.0, %v2222
        %v2224 = vpop.f32.mrb[0].mxu0
        %2225 = vmatprep.mubr.bf16.mxu0 0
        %2226 = vmatmul.mubr.bf16.gmra.mrb[0].mxu0 %v2053
        %v2227 = vpop.f32.mrb[0].mxu0
        %v2228 = vadd.f32 0.0, %v2227
        %v2229 = vpop.f32.mrb[0].mxu0
        %v2230 = vpop.f32.mrb[0].mxu0
        %v2231 = vadd.f32 0.0, %v2230
        %v2232 = vpop.f32.mrb[0].mxu0
        %2233 = vmatprep.mubr.bf16.mxu0 0
        %2234 = vmatmul.mubr.bf16.gmra.mrb[0].mxu0 %v2055
        %v2235 = vpop.f32.mrb[0].mxu0
        %v2236 = vadd.f32 0.0, %v2235
        %v2237 = vpop.f32.mrb[0].mxu0
        %v2238 = vpop.f32.mrb[0].mxu0
        %v2239 = vadd.f32 0.0, %v2238
        %v2240 = vpop.f32.mrb[0].mxu0
        %2241 = vmatprep.mubr.bf16.mxu0 0
        %2242 = vmatmul.mubr.bf16.gmra.mrb[0].mxu0 %v2057
        %v2243 = vpop.f32.mrb[0].mxu0
        %v2244 = vadd.f32 0.0, %v2243
        %v2245 = vpop.f32.mrb[0].mxu0
        %v2246 = vpop.f32.mrb[0].mxu0
        %v2247 = vadd.f32 0.0, %v2246
        %v2248 = vpop.f32.mrb[0].mxu0
        %2249 = vmatprep.mubr.bf16.mxu0 0
        %2250 = vmatmul.mubr.bf16.gmra.mrb[0].mxu0 %v2059
        %v2251 = vpop.f32.mrb[0].mxu0
        %v2252 = vadd.f32 0.0, %v2251
        %v2253 = vpop.f32.mrb[0].mxu0
        %v2254 = vpop.f32.mrb[0].mxu0
        %v2255 = vadd.f32 0.0, %v2254
        %v2256 = vpop.f32.mrb[0].mxu0
        %2257 = vmatprep.mubr.bf16.mxu0 0
        %2258 = vmatmul.mubr.bf16.gmra.mrb[0].mxu0 %v2061
        %v2259 = vpop.f32.mrb[0].mxu0
        %v2260 = vadd.f32 0.0, %v2259
        %v2261 = vpop.f32.mrb[0].mxu0
        %v2262 = vpop.f32.mrb[0].mxu0
        %v2263 = vadd.f32 0.0, %v2262
        %v2264 = vpop.f32.mrb[0].mxu0
        %2265 = vmatprep.mubr.bf16.mxu0 0
        %2266 = vmatmul.mubr.bf16.gmra.mrb[0].mxu0 %v2063
        %v2267 = vpop.f32.mrb[0].mxu0
        %v2268 = vadd.f32 0.0, %v2267
        %v2269 = vpop.f32.mrb[0].mxu0
        %v2270 = vpop.f32.mrb[0].mxu0
        %v2271 = vadd.f32 0.0, %v2270
        %v2272 = vpop.f32.mrb[0].mxu0
        %2273 = vmatprep.mubr.bf16.mxu0 0
        %2274 = vmatmul.mubr.bf16.gmra.mrb[0].mxu0 %v2065
        %v2275 = vpop.f32.mrb[0].mxu0
        %v2276 = vadd.f32 0.0, %v2275
        %v2277 = vpop.f32.mrb[0].mxu0
        %v2278 = vpop.f32.mrb[0].mxu0
        %v2279 = vadd.f32 0.0, %v2278
        %v2280 = vpop.f32.mrb[0].mxu0
        %2281 = vdwg.mxu0
        %v2282 = vadd.f32 %v1988, %v2164
        %v2283 = vadd.f32 %v1989, %v2167
        %v2284 = vadd.f32 %v1990, %v2172
        %v2285 = vadd.f32 %v1991, %v2175
        %v2286 = vadd.f32 %v1992, %v2180
        %v2287 = vadd.f32 %v1993, %v2183
        %v2288 = vadd.f32 %v1994, %v2188
        %v2289 = vadd.f32 %v1995, %v2191
        %v2290 = vadd.f32 %v1996, %v2196
        %v2291 = vadd.f32 %v1997, %v2199
        %v2292 = vadd.f32 %v1998, %v2204
        %v2293 = vadd.f32 %v1999, %v2207
        %v2294 = vadd.f32 %v2000, %v2212
        %v2295 = vadd.f32 %v2001, %v2215
        %v2296 = vadd.f32 %v2002, %v2220
        %v2297 = vadd.f32 %v2003, %v2223
        %v2298 = vadd.f32 %v2004, %v2228
        %v2299 = vadd.f32 %v2005, %v2231
        %v2300 = vadd.f32 %v2006, %v2236
        %v2301 = vadd.f32 %v2007, %v2239
        %v2302 = vadd.f32 %v2008, %v2244
        %v2303 = vadd.f32 %v2009, %v2247
        %v2304 = vadd.f32 %v2010, %v2252
        %v2305 = vadd.f32 %v2011, %v2255
        %v2306 = vadd.f32 %v2012, %v2260
        %v2307 = vadd.f32 %v2013, %v2263
        %v2308 = vadd.f32 %v2014, %v2268
        %v2309 = vadd.f32 %v2015, %v2271
        %v2310 = vadd.f32 %v2016, %v2276
        %v2311 = vadd.f32 %v2017, %v2279
        %s2312 = scalar_lea.vmem [#allocation5], 384
        %v2313 = vld [vmem:[%s2312] sm:$0xf]
        %v2314 = vld [vmem:[%s2312 + $0x4] sm:$0xf]
        %v2315 = vld [vmem:[%s2312 + $0x8] sm:$0xf]
        %v2316 = vld [vmem:[%s2312 + $0xc] sm:$0xf]
        %v2317 = vld [vmem:[%s2312 + $0x10] sm:$0xf]
        %v2318 = vld [vmem:[%s2312 + $0x14] sm:$0xf]
        %v2319 = vld [vmem:[%s2312 + $0x18] sm:$0xf]
        %v2320 = vld [vmem:[%s2312 + $0x1c] sm:$0xf]
        %v2321 = vld [vmem:[%s2312 + $0x20] sm:$0xf]
        %v2322 = vld [vmem:[%s2312 + $0x24] sm:$0xf]
        %v2323 = vld [vmem:[%s2312 + $0x28] sm:$0xf]
        %v2324 = vld [vmem:[%s2312 + $0x2c] sm:$0xf]
        %v2325 = vld [vmem:[%s2312 + $0x30] sm:$0xf]
        %v2326 = vld [vmem:[%s2312 + $0x34] sm:$0xf]
        %v2327 = vld [vmem:[%s2312 + $0x38] sm:$0xf]
        %v2328 = vld [vmem:[%s2312 + $0x3c] sm:$0xf]
        %v2331 = vunpack.c.l.b16 %v380
        %v2332 = vunpack.c.l.b16 %v381
        %v2333 = vpack.c.b16 %v1365, %v477
        %v2334 = vpack.c.b16 %v1646, %v1366
        %v2335 = vpack.c.b16 %v2332, %v2331
        %v2355 = vunpack.c.l.b16 %v2313
        %v2356 = vunpack.c.l.b16 %v2314
        %v2357 = vunpack.c.l.b16 %v2315
        %v2358 = vunpack.c.l.b16 %v2316
        %v2359 = vunpack.c.l.b16 %v2317
        %v2360 = vunpack.c.l.b16 %v2318
        %v2361 = vunpack.c.l.b16 %v2319
        %v2362 = vunpack.c.l.b16 %v2320
        %v2363 = vunpack.c.l.b16 %v2321
        %v2364 = vunpack.c.l.b16 %v2322
        %v2365 = vunpack.c.l.b16 %v2323
        %v2366 = vunpack.c.l.b16 %v2324
        %v2367 = vunpack.c.l.b16 %v2325
        %v2368 = vunpack.c.l.b16 %v2326
        %v2369 = vunpack.c.l.b16 %v2327
        %v2370 = vunpack.c.l.b16 %v2328
        %v2371 = vpack.c.b16 %v2356, %v2355
        %v2372 = vpack.c.b16 %v2358, %v2357
        %v2373 = vpack.c.b16 %v2360, %v2359
        %v2374 = vpack.c.b16 %v2362, %v2361
        %v2375 = vpack.c.b16 %v2364, %v2363
        %v2376 = vpack.c.b16 %v2366, %v2365
        %v2377 = vpack.c.b16 %v2368, %v2367
        %v2378 = vpack.c.b16 %v2370, %v2369
        %2387 = vmatprep.subr.bf16.mxu0 0
        %2388 = vmatpush1.bf16.msra.mxu0 %v2371
        %2389 = vmatprep.subr.bf16.mxu0 0
        %2390 = vmatpush1.bf16.msra.mxu0 %v2372
        %2391 = vmatprep.subr.bf16.mxu0 0
        %2392 = vmatpush1.bf16.msra.mxu0 %v2373
        %2393 = vmatprep.subr.bf16.mxu0 0
        %2394 = vmatpush1.bf16.msra.mxu0 %v2374
        %2395 = vmatprep.subr.bf16.mxu0 0
        %2396 = vmatpush1.bf16.msra.mxu0 %v2375
        %2397 = vmatprep.subr.bf16.mxu0 0
        %2398 = vmatpush1.bf16.msra.mxu0 %v2376
        %2399 = vmatprep.subr.bf16.mxu0 0
        %2400 = vmatpush1.bf16.msra.mxu0 %v2377
        %2401 = vmatprep.subr.bf16.mxu0 0
        %2402 = vmatpush1.bf16.msra.mxu0 %v2378
        %2403 = vmatprep.subr.bf16.mxu0 0
        %2404 = vmatpush1.bf16.msra.mxu0 0
        %2405 = vmatprep.subr.bf16.mxu0 0
        %2406 = vmatpush1.bf16.msra.mxu0 0
        %2407 = vmatprep.subr.bf16.mxu0 0
        %2408 = vmatpush1.bf16.msra.mxu0 0
        %2409 = vmatprep.subr.bf16.mxu0 0
        %2410 = vmatpush1.bf16.msra.mxu0 0
        %2411 = vmatprep.subr.bf16.mxu0 0
        %2412 = vmatpush1.bf16.msra.mxu0 0
        %2413 = vmatprep.subr.bf16.mxu0 0
        %2414 = vmatpush1.bf16.msra.mxu0 0
        %2415 = vmatprep.subr.bf16.mxu0 0
        %2416 = vmatpush1.bf16.msra.mxu0 0
        %2417 = vmatprep.subr.bf16.mxu0 0
        %2418 = vmatpush1.bf16.msra.mxu0 0
        %2419 = vmatprep.mubr.bf16.mxu0 0
        %2420 = vmatmul.mubr.bf16.gmra.mrb[0].mxu0 %v481
        %v2421 = vpop.f32.mrb[0].mxu0
        %v2422 = vadd.f32 0.0, %v2421
        %v2423 = vpop.f32.mrb[0].mxu0
        %v2424 = vpop.f32.mrb[0].mxu0
        %v2425 = vadd.f32 0.0, %v2424
        %v2426 = vpop.f32.mrb[0].mxu0
        %2427 = vmatprep.mubr.bf16.mxu0 0
        %2428 = vmatmul.mubr.bf16.gmra.mrb[0].mxu0 %v482
        %v2429 = vpop.f32.mrb[0].mxu0
        %v2430 = vadd.f32 0.0, %v2429
        %v2431 = vpop.f32.mrb[0].mxu0
        %v2432 = vpop.f32.mrb[0].mxu0
        %v2433 = vadd.f32 0.0, %v2432
        %v2434 = vpop.f32.mrb[0].mxu0
        %2435 = vmatprep.mubr.bf16.mxu0 0
        %2436 = vmatmul.mubr.bf16.gmra.mrb[0].mxu0 %v483
        %v2437 = vpop.f32.mrb[0].mxu0
        %v2438 = vadd.f32 0.0, %v2437
        %v2439 = vpop.f32.mrb[0].mxu0
        %v2440 = vpop.f32.mrb[0].mxu0
        %v2441 = vadd.f32 0.0, %v2440
        %v2442 = vpop.f32.mrb[0].mxu0
        %2443 = vmatprep.mubr.bf16.mxu0 0
        %2444 = vmatmul.mubr.bf16.gmra.mrb[0].mxu0 %v484
        %v2445 = vpop.f32.mrb[0].mxu0
        %v2446 = vadd.f32 0.0, %v2445
        %v2447 = vpop.f32.mrb[0].mxu0
        %v2448 = vpop.f32.mrb[0].mxu0
        %v2449 = vadd.f32 0.0, %v2448
        %v2450 = vpop.f32.mrb[0].mxu0
        %2451 = vmatprep.mubr.bf16.mxu0 0
        %2452 = vmatmul.mubr.bf16.gmra.mrb[0].mxu0 %v485
        %v2453 = vpop.f32.mrb[0].mxu0
        %v2454 = vadd.f32 0.0, %v2453
        %v2455 = vpop.f32.mrb[0].mxu0
        %v2456 = vpop.f32.mrb[0].mxu0
        %v2457 = vadd.f32 0.0, %v2456
        %v2458 = vpop.f32.mrb[0].mxu0
        %2459 = vmatprep.mubr.bf16.mxu0 0
        %2460 = vmatmul.mubr.bf16.gmra.mrb[0].mxu0 %v486
        %v2461 = vpop.f32.mrb[0].mxu0
        %v2462 = vadd.f32 0.0, %v2461
        %v2463 = vpop.f32.mrb[0].mxu0
        %v2464 = vpop.f32.mrb[0].mxu0
        %v2465 = vadd.f32 0.0, %v2464
        %v2466 = vpop.f32.mrb[0].mxu0
        %2467 = vmatprep.mubr.bf16.mxu0 0
        %2468 = vmatmul.mubr.bf16.gmra.mrb[0].mxu0 %v487
        %v2469 = vpop.f32.mrb[0].mxu0
        %v2470 = vadd.f32 0.0, %v2469
        %v2471 = vpop.f32.mrb[0].mxu0
        %v2472 = vpop.f32.mrb[0].mxu0
        %v2473 = vadd.f32 0.0, %v2472
        %v2474 = vpop.f32.mrb[0].mxu0
        %2475 = vmatprep.mubr.bf16.mxu0 0
        %2476 = vmatmul.mubr.bf16.gmra.mrb[0].mxu0 %v488
        %v2477 = vpop.f32.mrb[0].mxu0
        %v2478 = vadd.f32 0.0, %v2477
        %v2479 = vpop.f32.mrb[0].mxu0
        %v2480 = vpop.f32.mrb[0].mxu0
        %v2481 = vadd.f32 0.0, %v2480
        %v2482 = vpop.f32.mrb[0].mxu0
        %2483 = vmatprep.mubr.bf16.mxu0 0
        %2484 = vmatmul.mubr.bf16.gmra.mrb[0].mxu0 %v489
        %v2485 = vpop.f32.mrb[0].mxu0
        %v2486 = vadd.f32 0.0, %v2485
        %v2487 = vpop.f32.mrb[0].mxu0
        %v2488 = vpop.f32.mrb[0].mxu0
        %v2489 = vadd.f32 0.0, %v2488
        %v2490 = vpop.f32.mrb[0].mxu0
        %2491 = vmatprep.mubr.bf16.mxu0 0
        %2492 = vmatmul.mubr.bf16.gmra.mrb[0].mxu0 %v490
        %v2493 = vpop.f32.mrb[0].mxu0
        %v2494 = vadd.f32 0.0, %v2493
        %v2495 = vpop.f32.mrb[0].mxu0
        %v2496 = vpop.f32.mrb[0].mxu0
        %v2497 = vadd.f32 0.0, %v2496
        %v2498 = vpop.f32.mrb[0].mxu0
        %2499 = vmatprep.mubr.bf16.mxu0 0
        %2500 = vmatmul.mubr.bf16.gmra.mrb[0].mxu0 %v491
        %v2501 = vpop.f32.mrb[0].mxu0
        %v2502 = vadd.f32 0.0, %v2501
        %v2503 = vpop.f32.mrb[0].mxu0
        %v2504 = vpop.f32.mrb[0].mxu0
        %v2505 = vadd.f32 0.0, %v2504
        %v2506 = vpop.f32.mrb[0].mxu0
        %2507 = vmatprep.mubr.bf16.mxu0 0
        %2508 = vmatmul.mubr.bf16.gmra.mrb[0].mxu0 %v492
        %v2509 = vpop.f32.mrb[0].mxu0
        %v2510 = vadd.f32 0.0, %v2509
        %v2511 = vpop.f32.mrb[0].mxu0
        %v2512 = vpop.f32.mrb[0].mxu0
        %v2513 = vadd.f32 0.0, %v2512
        %v2514 = vpop.f32.mrb[0].mxu0
        %2515 = vmatprep.mubr.bf16.mxu0 0
        %2516 = vmatmul.mubr.bf16.gmra.mrb[0].mxu0 %v2333
        %v2517 = vpop.f32.mrb[0].mxu0
        %v2518 = vadd.f32 0.0, %v2517
        %v2519 = vpop.f32.mrb[0].mxu0
        %v2520 = vpop.f32.mrb[0].mxu0
        %v2521 = vadd.f32 0.0, %v2520
        %v2522 = vpop.f32.mrb[0].mxu0
        %2523 = vmatprep.mubr.bf16.mxu0 0
        %2524 = vmatmul.mubr.bf16.gmra.mrb[0].mxu0 %v2334
        %v2525 = vpop.f32.mrb[0].mxu0
        %v2526 = vadd.f32 0.0, %v2525
        %v2527 = vpop.f32.mrb[0].mxu0
        %v2528 = vpop.f32.mrb[0].mxu0
        %v2529 = vadd.f32 0.0, %v2528
        %v2530 = vpop.f32.mrb[0].mxu0
        %2531 = vmatprep.mubr.bf16.mxu0 0
        %2532 = vmatmul.mubr.bf16.gmra.mrb[0].mxu0 %v2335
        %v2533 = vpop.f32.mrb[0].mxu0
        %v2534 = vadd.f32 0.0, %v2533
        %v2535 = vpop.f32.mrb[0].mxu0
        %v2536 = vpop.f32.mrb[0].mxu0
        %v2537 = vadd.f32 0.0, %v2536
        %v2538 = vpop.f32.mrb[0].mxu0
        %2539 = vdwg.mxu0
        %v2540 = vadd.f32 %v2282, %v2422
        %v2541 = vadd.f32 %v2283, %v2425
        %v2542 = vadd.f32 %v2284, %v2430
        %v2543 = vadd.f32 %v2285, %v2433
        %v2544 = vadd.f32 %v2286, %v2438
        %v2545 = vadd.f32 %v2287, %v2441
        %v2546 = vadd.f32 %v2288, %v2446
        %v2547 = vadd.f32 %v2289, %v2449
        %v2548 = vadd.f32 %v2290, %v2454
        %v2549 = vadd.f32 %v2291, %v2457
        %v2550 = vadd.f32 %v2292, %v2462
        %v2551 = vadd.f32 %v2293, %v2465
        %v2552 = vadd.f32 %v2294, %v2470
        %v2553 = vadd.f32 %v2295, %v2473
        %v2554 = vadd.f32 %v2296, %v2478
        %v2555 = vadd.f32 %v2297, %v2481
        %v2556 = vadd.f32 %v2298, %v2486
        %v2557 = vadd.f32 %v2299, %v2489
        %v2558 = vadd.f32 %v2300, %v2494
        %v2559 = vadd.f32 %v2301, %v2497
        %v2560 = vadd.f32 %v2302, %v2502
        %v2561 = vadd.f32 %v2303, %v2505
        %v2562 = vadd.f32 %v2304, %v2510
        %v2563 = vadd.f32 %v2305, %v2513
        %v2564 = vadd.f32 %v2306, %v2518
        %v2565 = vadd.f32 %v2307, %v2521
        %v2566 = vadd.f32 %v2308, %v2526
        %v2567 = vadd.f32 %v2309, %v2529
        %v2568 = vadd.f32 %v2310, %v2534
        %v2569 = vadd.f32 %v2311, %v2537
        %s2570 = scalar_lea.vmem [#allocation5], 448
        %v2571 = vld [vmem:[%s2570] sm:$0xf]
        %v2572 = vld [vmem:[%s2570 + $0x4] sm:$0xf]
        %v2573 = vld [vmem:[%s2570 + $0x8] sm:$0xf]
        %v2574 = vld [vmem:[%s2570 + $0xc] sm:$0xf]
        %v2575 = vld [vmem:[%s2570 + $0x10] sm:$0xf]
        %v2576 = vld [vmem:[%s2570 + $0x14] sm:$0xf]
        %v2577 = vld [vmem:[%s2570 + $0x18] sm:$0xf]
        %v2578 = vld [vmem:[%s2570 + $0x1c] sm:$0xf]
        %v2579 = vld [vmem:[%s2570 + $0x20] sm:$0xf]
        %v2580 = vld [vmem:[%s2570 + $0x24] sm:$0xf]
        %v2581 = vld [vmem:[%s2570 + $0x28] sm:$0xf]
        %v2582 = vld [vmem:[%s2570 + $0x2c] sm:$0xf]
        %v2583 = vld [vmem:[%s2570 + $0x30] sm:$0xf]
        %v2584 = vld [vmem:[%s2570 + $0x34] sm:$0xf]
        %v2585 = vld [vmem:[%s2570 + $0x38] sm:$0xf]
        %v2586 = vld [vmem:[%s2570 + $0x3c] sm:$0xf]
        %v2588 = vunpack.c.l.b16 %v382
        %v2589 = vpack.c.b16 %v2588, %v2588
        %v2591 = vshll.u32 %v2333, 16
        %v2593 = vrot.slane %v2591, 1
        %v2594 = vsel %vm494, %v613, %v2593
        %v2595 = vshrl.u32 %v2333, 16
        %v2597 = vor.u32 %v2595, %v2593
        %v2599 = vshll.u32 %v2334, 16
        %v2601 = vrot.slane %v2599, 1
        %v2602 = vsel %vm494, %v2597, %v2601
        %v2603 = vshrl.u32 %v2334, 16
        %v2605 = vor.u32 %v2603, %v2601
        %v2607 = vshll.u32 %v2335, 16
        %v2609 = vrot.slane %v2607, 1
        %v2610 = vsel %vm494, %v2605, %v2609
        %v2611 = vshrl.u32 %v2335, 16
        %v2613 = vor.u32 %v2611, %v2609
        %v2615 = vshll.u32 %v2589, 16
        %v2617 = vrot.slane %v2615, 1
        %v2618 = vsel %vm494, %v2613, %v2617
        %v2639 = vunpack.c.l.b16 %v2571
        %v2640 = vunpack.c.l.b16 %v2572
        %v2641 = vunpack.c.l.b16 %v2573
        %v2642 = vunpack.c.l.b16 %v2574
        %v2643 = vunpack.c.l.b16 %v2575
        %v2644 = vunpack.c.l.b16 %v2576
        %v2645 = vunpack.c.l.b16 %v2577
        %v2646 = vunpack.c.l.b16 %v2578
        %v2647 = vunpack.c.l.b16 %v2579
        %v2648 = vunpack.c.l.b16 %v2580
        %v2649 = vunpack.c.l.b16 %v2581
        %v2650 = vunpack.c.l.b16 %v2582
        %v2651 = vunpack.c.l.b16 %v2583
        %v2652 = vunpack.c.l.b16 %v2584
        %v2653 = vunpack.c.l.b16 %v2585
        %v2654 = vunpack.c.l.b16 %v2586
        %v2655 = vpack.c.b16 %v2640, %v2639
        %v2656 = vpack.c.b16 %v2642, %v2641
        %v2657 = vpack.c.b16 %v2644, %v2643
        %v2658 = vpack.c.b16 %v2646, %v2645
        %v2659 = vpack.c.b16 %v2648, %v2647
        %v2660 = vpack.c.b16 %v2650, %v2649
        %v2661 = vpack.c.b16 %v2652, %v2651
        %v2662 = vpack.c.b16 %v2654, %v2653
        %2671 = vmatprep.subr.bf16.mxu0 0
        %2672 = vmatpush1.bf16.msra.mxu0 %v2655
        %2673 = vmatprep.subr.bf16.mxu0 0
        %2674 = vmatpush1.bf16.msra.mxu0 %v2656
        %2675 = vmatprep.subr.bf16.mxu0 0
        %2676 = vmatpush1.bf16.msra.mxu0 %v2657
        %2677 = vmatprep.subr.bf16.mxu0 0
        %2678 = vmatpush1.bf16.msra.mxu0 %v2658
        %2679 = vmatprep.subr.bf16.mxu0 0
        %2680 = vmatpush1.bf16.msra.mxu0 %v2659
        %2681 = vmatprep.subr.bf16.mxu0 0
        %2682 = vmatpush1.bf16.msra.mxu0 %v2660
        %2683 = vmatprep.subr.bf16.mxu0 0
        %2684 = vmatpush1.bf16.msra.mxu0 %v2661
        %2685 = vmatprep.subr.bf16.mxu0 0
        %2686 = vmatpush1.bf16.msra.mxu0 %v2662
        %2687 = vmatprep.subr.bf16.mxu0 0
        %2688 = vmatpush1.bf16.msra.mxu0 0
        %2689 = vmatprep.subr.bf16.mxu0 0
        %2690 = vmatpush1.bf16.msra.mxu0 0
        %2691 = vmatprep.subr.bf16.mxu0 0
        %2692 = vmatpush1.bf16.msra.mxu0 0
        %2693 = vmatprep.subr.bf16.mxu0 0
        %2694 = vmatpush1.bf16.msra.mxu0 0
        %2695 = vmatprep.subr.bf16.mxu0 0
        %2696 = vmatpush1.bf16.msra.mxu0 0
        %2697 = vmatprep.subr.bf16.mxu0 0
        %2698 = vmatpush1.bf16.msra.mxu0 0
        %2699 = vmatprep.subr.bf16.mxu0 0
        %2700 = vmatpush1.bf16.msra.mxu0 0
        %2701 = vmatprep.subr.bf16.mxu0 0
        %2702 = vmatpush1.bf16.msra.mxu0 0
        %2703 = vmatprep.mubr.bf16.mxu0 0
        %2704 = vmatmul.mubr.bf16.gmra.mrb[0].mxu0 %v530
        %v2705 = vpop.f32.mrb[0].mxu0
        %v2706 = vadd.f32 0.0, %v2705
        %v2707 = vpop.f32.mrb[0].mxu0
        %v2708 = vpop.f32.mrb[0].mxu0
        %v2709 = vadd.f32 0.0, %v2708
        %v2710 = vpop.f32.mrb[0].mxu0
        %2711 = vmatprep.mubr.bf16.mxu0 0
        %2712 = vmatmul.mubr.bf16.gmra.mrb[0].mxu0 %v538
        %v2713 = vpop.f32.mrb[0].mxu0
        %v2714 = vadd.f32 0.0, %v2713
        %v2715 = vpop.f32.mrb[0].mxu0
        %v2716 = vpop.f32.mrb[0].mxu0
        %v2717 = vadd.f32 0.0, %v2716
        %v2718 = vpop.f32.mrb[0].mxu0
        %2719 = vmatprep.mubr.bf16.mxu0 0
        %2720 = vmatmul.mubr.bf16.gmra.mrb[0].mxu0 %v546
        %v2721 = vpop.f32.mrb[0].mxu0
        %v2722 = vadd.f32 0.0, %v2721
        %v2723 = vpop.f32.mrb[0].mxu0
        %v2724 = vpop.f32.mrb[0].mxu0
        %v2725 = vadd.f32 0.0, %v2724
        %v2726 = vpop.f32.mrb[0].mxu0
        %2727 = vmatprep.mubr.bf16.mxu0 0
        %2728 = vmatmul.mubr.bf16.gmra.mrb[0].mxu0 %v554
        %v2729 = vpop.f32.mrb[0].mxu0
        %v2730 = vadd.f32 0.0, %v2729
        %v2731 = vpop.f32.mrb[0].mxu0
        %v2732 = vpop.f32.mrb[0].mxu0
        %v2733 = vadd.f32 0.0, %v2732
        %v2734 = vpop.f32.mrb[0].mxu0
        %2735 = vmatprep.mubr.bf16.mxu0 0
        %2736 = vmatmul.mubr.bf16.gmra.mrb[0].mxu0 %v562
        %v2737 = vpop.f32.mrb[0].mxu0
        %v2738 = vadd.f32 0.0, %v2737
        %v2739 = vpop.f32.mrb[0].mxu0
        %v2740 = vpop.f32.mrb[0].mxu0
        %v2741 = vadd.f32 0.0, %v2740
        %v2742 = vpop.f32.mrb[0].mxu0
        %2743 = vmatprep.mubr.bf16.mxu0 0
        %2744 = vmatmul.mubr.bf16.gmra.mrb[0].mxu0 %v570
        %v2745 = vpop.f32.mrb[0].mxu0
        %v2746 = vadd.f32 0.0, %v2745
        %v2747 = vpop.f32.mrb[0].mxu0
        %v2748 = vpop.f32.mrb[0].mxu0
        %v2749 = vadd.f32 0.0, %v2748
        %v2750 = vpop.f32.mrb[0].mxu0
        %2751 = vmatprep.mubr.bf16.mxu0 0
        %2752 = vmatmul.mubr.bf16.gmra.mrb[0].mxu0 %v578
        %v2753 = vpop.f32.mrb[0].mxu0
        %v2754 = vadd.f32 0.0, %v2753
        %v2755 = vpop.f32.mrb[0].mxu0
        %v2756 = vpop.f32.mrb[0].mxu0
        %v2757 = vadd.f32 0.0, %v2756
        %v2758 = vpop.f32.mrb[0].mxu0
        %2759 = vmatprep.mubr.bf16.mxu0 0
        %2760 = vmatmul.mubr.bf16.gmra.mrb[0].mxu0 %v586
        %v2761 = vpop.f32.mrb[0].mxu0
        %v2762 = vadd.f32 0.0, %v2761
        %v2763 = vpop.f32.mrb[0].mxu0
        %v2764 = vpop.f32.mrb[0].mxu0
        %v2765 = vadd.f32 0.0, %v2764
        %v2766 = vpop.f32.mrb[0].mxu0
        %2767 = vmatprep.mubr.bf16.mxu0 0
        %2768 = vmatmul.mubr.bf16.gmra.mrb[0].mxu0 %v594
        %v2769 = vpop.f32.mrb[0].mxu0
        %v2770 = vadd.f32 0.0, %v2769
        %v2771 = vpop.f32.mrb[0].mxu0
        %v2772 = vpop.f32.mrb[0].mxu0
        %v2773 = vadd.f32 0.0, %v2772
        %v2774 = vpop.f32.mrb[0].mxu0
        %2775 = vmatprep.mubr.bf16.mxu0 0
        %2776 = vmatmul.mubr.bf16.gmra.mrb[0].mxu0 %v602
        %v2777 = vpop.f32.mrb[0].mxu0
        %v2778 = vadd.f32 0.0, %v2777
        %v2779 = vpop.f32.mrb[0].mxu0
        %v2780 = vpop.f32.mrb[0].mxu0
        %v2781 = vadd.f32 0.0, %v2780
        %v2782 = vpop.f32.mrb[0].mxu0
        %2783 = vmatprep.mubr.bf16.mxu0 0
        %2784 = vmatmul.mubr.bf16.gmra.mrb[0].mxu0 %v610
        %v2785 = vpop.f32.mrb[0].mxu0
        %v2786 = vadd.f32 0.0, %v2785
        %v2787 = vpop.f32.mrb[0].mxu0
        %v2788 = vpop.f32.mrb[0].mxu0
        %v2789 = vadd.f32 0.0, %v2788
        %v2790 = vpop.f32.mrb[0].mxu0
        %2791 = vmatprep.mubr.bf16.mxu0 0
        %2792 = vmatmul.mubr.bf16.gmra.mrb[0].mxu0 %v2594
        %v2793 = vpop.f32.mrb[0].mxu0
        %v2794 = vadd.f32 0.0, %v2793
        %v2795 = vpop.f32.mrb[0].mxu0
        %v2796 = vpop.f32.mrb[0].mxu0
        %v2797 = vadd.f32 0.0, %v2796
        %v2798 = vpop.f32.mrb[0].mxu0
        %2799 = vmatprep.mubr.bf16.mxu0 0
        %2800 = vmatmul.mubr.bf16.gmra.mrb[0].mxu0 %v2602
        %v2801 = vpop.f32.mrb[0].mxu0
        %v2802 = vadd.f32 0.0, %v2801
        %v2803 = vpop.f32.mrb[0].mxu0
        %v2804 = vpop.f32.mrb[0].mxu0
        %v2805 = vadd.f32 0.0, %v2804
        %v2806 = vpop.f32.mrb[0].mxu0
        %2807 = vmatprep.mubr.bf16.mxu0 0
        %2808 = vmatmul.mubr.bf16.gmra.mrb[0].mxu0 %v2610
        %v2809 = vpop.f32.mrb[0].mxu0
        %v2810 = vadd.f32 0.0, %v2809
        %v2811 = vpop.f32.mrb[0].mxu0
        %v2812 = vpop.f32.mrb[0].mxu0
        %v2813 = vadd.f32 0.0, %v2812
        %v2814 = vpop.f32.mrb[0].mxu0
        %2815 = vmatprep.mubr.bf16.mxu0 0
        %2816 = vmatmul.mubr.bf16.gmra.mrb[0].mxu0 %v2618
        %v2817 = vpop.f32.mrb[0].mxu0
        %v2818 = vadd.f32 0.0, %v2817
        %v2819 = vpop.f32.mrb[0].mxu0
        %v2820 = vpop.f32.mrb[0].mxu0
        %v2821 = vadd.f32 0.0, %v2820
        %v2822 = vpop.f32.mrb[0].mxu0
        %2823 = vdwg.mxu0
        %v2824 = vadd.f32 %v2540, %v2706
        %v2825 = vadd.f32 %v2541, %v2709
        %v2826 = vadd.f32 %v2542, %v2714
        %v2827 = vadd.f32 %v2543, %v2717
        %v2828 = vadd.f32 %v2544, %v2722
        %v2829 = vadd.f32 %v2545, %v2725
        %v2830 = vadd.f32 %v2546, %v2730
        %v2831 = vadd.f32 %v2547, %v2733
        %v2832 = vadd.f32 %v2548, %v2738
        %v2833 = vadd.f32 %v2549, %v2741
        %v2834 = vadd.f32 %v2550, %v2746
        %v2835 = vadd.f32 %v2551, %v2749
        %v2836 = vadd.f32 %v2552, %v2754
        %v2837 = vadd.f32 %v2553, %v2757
        %v2838 = vadd.f32 %v2554, %v2762
        %v2839 = vadd.f32 %v2555, %v2765
        %v2840 = vadd.f32 %v2556, %v2770
        %v2841 = vadd.f32 %v2557, %v2773
        %v2842 = vadd.f32 %v2558, %v2778
        %v2843 = vadd.f32 %v2559, %v2781
        %v2844 = vadd.f32 %v2560, %v2786
        %v2845 = vadd.f32 %v2561, %v2789
        %v2846 = vadd.f32 %v2562, %v2794
        %v2847 = vadd.f32 %v2563, %v2797
        %v2848 = vadd.f32 %v2564, %v2802
        %v2849 = vadd.f32 %v2565, %v2805
        %v2850 = vadd.f32 %v2566, %v2810
        %v2851 = vadd.f32 %v2567, %v2813
        %v2852 = vadd.f32 %v2568, %v2818
        %v2853 = vadd.f32 %v2569, %v2821
        %s2854 = scalar_lea.vmem [#allocation5], 512
        %v2855 = vld [vmem:[%s2854] sm:$0xf]
        %v2856 = vld [vmem:[%s2854 + $0x4] sm:$0xf]
        %v2857 = vld [vmem:[%s2854 + $0x8] sm:$0xf]
        %v2858 = vld [vmem:[%s2854 + $0xc] sm:$0xf]
        %v2859 = vld [vmem:[%s2854 + $0x10] sm:$0xf]
        %v2860 = vld [vmem:[%s2854 + $0x14] sm:$0xf]
        %v2861 = vld [vmem:[%s2854 + $0x18] sm:$0xf]
        %v2862 = vld [vmem:[%s2854 + $0x1c] sm:$0xf]
        %v2863 = vld [vmem:[%s2854 + $0x20] sm:$0xf]
        %v2864 = vld [vmem:[%s2854 + $0x24] sm:$0xf]
        %v2865 = vld [vmem:[%s2854 + $0x28] sm:$0xf]
        %v2866 = vld [vmem:[%s2854 + $0x2c] sm:$0xf]
        %v2867 = vld [vmem:[%s2854 + $0x30] sm:$0xf]
        %v2868 = vld [vmem:[%s2854 + $0x34] sm:$0xf]
        %v2869 = vld [vmem:[%s2854 + $0x38] sm:$0xf]
        %v2870 = vld [vmem:[%s2854 + $0x3c] sm:$0xf]
        %v2871 = vrot.slane %v2333, 1
        %v2872 = vsel %vm1068, %v1096, %v2871
        %v2873 = vrot.slane %v2334, 1
        %v2874 = vsel %vm1068, %v2871, %v2873
        %v2875 = vrot.slane %v2335, 1
        %v2876 = vsel %vm1068, %v2873, %v2875
        %v2877 = vrot.slane %v2589, 1
        %v2878 = vsel %vm1068, %v2875, %v2877
        %v2899 = vunpack.c.l.b16 %v2855
        %v2900 = vunpack.c.l.b16 %v2856
        %v2901 = vunpack.c.l.b16 %v2857
        %v2902 = vunpack.c.l.b16 %v2858
        %v2903 = vunpack.c.l.b16 %v2859
        %v2904 = vunpack.c.l.b16 %v2860
        %v2905 = vunpack.c.l.b16 %v2861
        %v2906 = vunpack.c.l.b16 %v2862
        %v2907 = vunpack.c.l.b16 %v2863
        %v2908 = vunpack.c.l.b16 %v2864
        %v2909 = vunpack.c.l.b16 %v2865
        %v2910 = vunpack.c.l.b16 %v2866
        %v2911 = vunpack.c.l.b16 %v2867
        %v2912 = vunpack.c.l.b16 %v2868
        %v2913 = vunpack.c.l.b16 %v2869
        %v2914 = vunpack.c.l.b16 %v2870
        %v2915 = vpack.c.b16 %v2900, %v2899
        %v2916 = vpack.c.b16 %v2902, %v2901
        %v2917 = vpack.c.b16 %v2904, %v2903
        %v2918 = vpack.c.b16 %v2906, %v2905
        %v2919 = vpack.c.b16 %v2908, %v2907
        %v2920 = vpack.c.b16 %v2910, %v2909
        %v2921 = vpack.c.b16 %v2912, %v2911
        %v2922 = vpack.c.b16 %v2914, %v2913
        %2931 = vmatprep.subr.bf16.mxu0 0
        %2932 = vmatpush1.bf16.msra.mxu0 %v2915
        %2933 = vmatprep.subr.bf16.mxu0 0
        %2934 = vmatpush1.bf16.msra.mxu0 %v2916
        %2935 = vmatprep.subr.bf16.mxu0 0
        %2936 = vmatpush1.bf16.msra.mxu0 %v2917
        %2937 = vmatprep.subr.bf16.mxu0 0
        %2938 = vmatpush1.bf16.msra.mxu0 %v2918
        %2939 = vmatprep.subr.bf16.mxu0 0
        %2940 = vmatpush1.bf16.msra.mxu0 %v2919
        %2941 = vmatprep.subr.bf16.mxu0 0
        %2942 = vmatpush1.bf16.msra.mxu0 %v2920
        %2943 = vmatprep.subr.bf16.mxu0 0
        %2944 = vmatpush1.bf16.msra.mxu0 %v2921
        %2945 = vmatprep.subr.bf16.mxu0 0
        %2946 = vmatpush1.bf16.msra.mxu0 %v2922
        %2947 = vmatprep.subr.bf16.mxu0 0
        %2948 = vmatpush1.bf16.msra.mxu0 0
        %2949 = vmatprep.subr.bf16.mxu0 0
        %2950 = vmatpush1.bf16.msra.mxu0 0
        %2951 = vmatprep.subr.bf16.mxu0 0
        %2952 = vmatpush1.bf16.msra.mxu0 0
        %2953 = vmatprep.subr.bf16.mxu0 0
        %2954 = vmatpush1.bf16.msra.mxu0 0
        %2955 = vmatprep.subr.bf16.mxu0 0
        %2956 = vmatpush1.bf16.msra.mxu0 0
        %2957 = vmatprep.subr.bf16.mxu0 0
        %2958 = vmatpush1.bf16.msra.mxu0 0
        %2959 = vmatprep.subr.bf16.mxu0 0
        %2960 = vmatpush1.bf16.msra.mxu0 0
        %2961 = vmatprep.subr.bf16.mxu0 0
        %2962 = vmatpush1.bf16.msra.mxu0 0
        %2963 = vmatprep.mubr.bf16.mxu0 0
        %2964 = vmatmul.mubr.bf16.gmra.mrb[0].mxu0 %v1077
        %v2965 = vpop.f32.mrb[0].mxu0
        %v2966 = vadd.f32 0.0, %v2965
        %v2967 = vpop.f32.mrb[0].mxu0
        %v2968 = vpop.f32.mrb[0].mxu0
        %v2969 = vadd.f32 0.0, %v2968
        %v2970 = vpop.f32.mrb[0].mxu0
        %2971 = vmatprep.mubr.bf16.mxu0 0
        %2972 = vmatmul.mubr.bf16.gmra.mrb[0].mxu0 %v1079
        %v2973 = vpop.f32.mrb[0].mxu0
        %v2974 = vadd.f32 0.0, %v2973
        %v2975 = vpop.f32.mrb[0].mxu0
        %v2976 = vpop.f32.mrb[0].mxu0
        %v2977 = vadd.f32 0.0, %v2976
        %v2978 = vpop.f32.mrb[0].mxu0
        %2979 = vmatprep.mubr.bf16.mxu0 0
        %2980 = vmatmul.mubr.bf16.gmra.mrb[0].mxu0 %v1081
        %v2981 = vpop.f32.mrb[0].mxu0
        %v2982 = vadd.f32 0.0, %v2981
        %v2983 = vpop.f32.mrb[0].mxu0
        %v2984 = vpop.f32.mrb[0].mxu0
        %v2985 = vadd.f32 0.0, %v2984
        %v2986 = vpop.f32.mrb[0].mxu0
        %2987 = vmatprep.mubr.bf16.mxu0 0
        %2988 = vmatmul.mubr.bf16.gmra.mrb[0].mxu0 %v1083
        %v2989 = vpop.f32.mrb[0].mxu0
        %v2990 = vadd.f32 0.0, %v2989
        %v2991 = vpop.f32.mrb[0].mxu0
        %v2992 = vpop.f32.mrb[0].mxu0
        %v2993 = vadd.f32 0.0, %v2992
        %v2994 = vpop.f32.mrb[0].mxu0
        %2995 = vmatprep.mubr.bf16.mxu0 0
        %2996 = vmatmul.mubr.bf16.gmra.mrb[0].mxu0 %v1085
        %v2997 = vpop.f32.mrb[0].mxu0
        %v2998 = vadd.f32 0.0, %v2997
        %v2999 = vpop.f32.mrb[0].mxu0
        %v3000 = vpop.f32.mrb[0].mxu0
        %v3001 = vadd.f32 0.0, %v3000
        %v3002 = vpop.f32.mrb[0].mxu0
        %3003 = vmatprep.mubr.bf16.mxu0 0
        %3004 = vmatmul.mubr.bf16.gmra.mrb[0].mxu0 %v1087
        %v3005 = vpop.f32.mrb[0].mxu0
        %v3006 = vadd.f32 0.0, %v3005
        %v3007 = vpop.f32.mrb[0].mxu0
        %v3008 = vpop.f32.mrb[0].mxu0
        %v3009 = vadd.f32 0.0, %v3008
        %v3010 = vpop.f32.mrb[0].mxu0
        %3011 = vmatprep.mubr.bf16.mxu0 0
        %3012 = vmatmul.mubr.bf16.gmra.mrb[0].mxu0 %v1089
        %v3013 = vpop.f32.mrb[0].mxu0
        %v3014 = vadd.f32 0.0, %v3013
        %v3015 = vpop.f32.mrb[0].mxu0
        %v3016 = vpop.f32.mrb[0].mxu0
        %v3017 = vadd.f32 0.0, %v3016
        %v3018 = vpop.f32.mrb[0].mxu0
        %3019 = vmatprep.mubr.bf16.mxu0 0
        %3020 = vmatmul.mubr.bf16.gmra.mrb[0].mxu0 %v1091
        %v3021 = vpop.f32.mrb[0].mxu0
        %v3022 = vadd.f32 0.0, %v3021
        %v3023 = vpop.f32.mrb[0].mxu0
        %v3024 = vpop.f32.mrb[0].mxu0
        %v3025 = vadd.f32 0.0, %v3024
        %v3026 = vpop.f32.mrb[0].mxu0
        %3027 = vmatprep.mubr.bf16.mxu0 0
        %3028 = vmatmul.mubr.bf16.gmra.mrb[0].mxu0 %v1093
        %v3029 = vpop.f32.mrb[0].mxu0
        %v3030 = vadd.f32 0.0, %v3029
        %v3031 = vpop.f32.mrb[0].mxu0
        %v3032 = vpop.f32.mrb[0].mxu0
        %v3033 = vadd.f32 0.0, %v3032
        %v3034 = vpop.f32.mrb[0].mxu0
        %3035 = vmatprep.mubr.bf16.mxu0 0
        %3036 = vmatmul.mubr.bf16.gmra.mrb[0].mxu0 %v1095
        %v3037 = vpop.f32.mrb[0].mxu0
        %v3038 = vadd.f32 0.0, %v3037
        %v3039 = vpop.f32.mrb[0].mxu0
        %v3040 = vpop.f32.mrb[0].mxu0
        %v3041 = vadd.f32 0.0, %v3040
        %v3042 = vpop.f32.mrb[0].mxu0
        %3043 = vmatprep.mubr.bf16.mxu0 0
        %3044 = vmatmul.mubr.bf16.gmra.mrb[0].mxu0 %v1097
        %v3045 = vpop.f32.mrb[0].mxu0
        %v3046 = vadd.f32 0.0, %v3045
        %v3047 = vpop.f32.mrb[0].mxu0
        %v3048 = vpop.f32.mrb[0].mxu0
        %v3049 = vadd.f32 0.0, %v3048
        %v3050 = vpop.f32.mrb[0].mxu0
        %3051 = vmatprep.mubr.bf16.mxu0 0
        %3052 = vmatmul.mubr.bf16.gmra.mrb[0].mxu0 %v2872
        %v3053 = vpop.f32.mrb[0].mxu0
        %v3054 = vadd.f32 0.0, %v3053
        %v3055 = vpop.f32.mrb[0].mxu0
        %v3056 = vpop.f32.mrb[0].mxu0
        %v3057 = vadd.f32 0.0, %v3056
        %v3058 = vpop.f32.mrb[0].mxu0
        %3059 = vmatprep.mubr.bf16.mxu0 0
        %3060 = vmatmul.mubr.bf16.gmra.mrb[0].mxu0 %v2874
        %v3061 = vpop.f32.mrb[0].mxu0
        %v3062 = vadd.f32 0.0, %v3061
        %v3063 = vpop.f32.mrb[0].mxu0
        %v3064 = vpop.f32.mrb[0].mxu0
        %v3065 = vadd.f32 0.0, %v3064
        %v3066 = vpop.f32.mrb[0].mxu0
        %3067 = vmatprep.mubr.bf16.mxu0 0
        %3068 = vmatmul.mubr.bf16.gmra.mrb[0].mxu0 %v2876
        %v3069 = vpop.f32.mrb[0].mxu0
        %v3070 = vadd.f32 0.0, %v3069
        %v3071 = vpop.f32.mrb[0].mxu0
        %v3072 = vpop.f32.mrb[0].mxu0
        %v3073 = vadd.f32 0.0, %v3072
        %v3074 = vpop.f32.mrb[0].mxu0
        %3075 = vmatprep.mubr.bf16.mxu0 0
        %3076 = vmatmul.mubr.bf16.gmra.mrb[0].mxu0 %v2878
        %v3077 = vpop.f32.mrb[0].mxu0
        %v3078 = vadd.f32 0.0, %v3077
        %v3079 = vpop.f32.mrb[0].mxu0
        %v3080 = vpop.f32.mrb[0].mxu0
        %v3081 = vadd.f32 0.0, %v3080
        %v3082 = vpop.f32.mrb[0].mxu0
        %3083 = vdwg.mxu0
        %v3084 = vadd.f32 %v2824, %v2966
        %v3085 = vadd.f32 %v2825, %v2969
        %v3086 = vadd.f32 %v2826, %v2974
        %v3087 = vadd.f32 %v2827, %v2977
        %v3088 = vadd.f32 %v2828, %v2982
        %v3089 = vadd.f32 %v2829, %v2985
        %v3090 = vadd.f32 %v2830, %v2990
        %v3091 = vadd.f32 %v2831, %v2993
        %v3092 = vadd.f32 %v2832, %v2998
        %v3093 = vadd.f32 %v2833, %v3001
        %v3094 = vadd.f32 %v2834, %v3006
        %v3095 = vadd.f32 %v2835, %v3009
        %v3096 = vadd.f32 %v2836, %v3014
        %v3097 = vadd.f32 %v2837, %v3017
        %v3098 = vadd.f32 %v2838, %v3022
        %v3099 = vadd.f32 %v2839, %v3025
        %v3100 = vadd.f32 %v2840, %v3030
        %v3101 = vadd.f32 %v2841, %v3033
        %v3102 = vadd.f32 %v2842, %v3038
        %v3103 = vadd.f32 %v2843, %v3041
        %v3104 = vadd.f32 %v2844, %v3046
        %v3105 = vadd.f32 %v2845, %v3049
        %v3106 = vadd.f32 %v2846, %v3054
        %v3107 = vadd.f32 %v2847, %v3057
        %v3108 = vadd.f32 %v2848, %v3062
        %v3109 = vadd.f32 %v2849, %v3065
        %v3110 = vadd.f32 %v2850, %v3070
        %v3111 = vadd.f32 %v2851, %v3073
        %v3112 = vadd.f32 %v2852, %v3078
        %v3113 = vadd.f32 %v2853, %v3081
        %v3114 = vld [vmem:[%s2] sm:$0x1]
        %v3116 = vlaneseq
        %v3117 = vshrl.u32 %v3116, 7
        %v3118 = vsub.s32 0, %v3117
        %v3119 = vrot.slane %v3114, %v3118
        %v3121 = vadd.f32 %v3084, %v3119
        %v3122 = vadd.f32 %v3085, %v3119
        %v3123 = vadd.f32 %v3086, %v3119
        %v3124 = vadd.f32 %v3087, %v3119
        %v3125 = vadd.f32 %v3088, %v3119
        %v3126 = vadd.f32 %v3089, %v3119
        %v3127 = vadd.f32 %v3090, %v3119
        %v3128 = vadd.f32 %v3091, %v3119
        %v3129 = vadd.f32 %v3092, %v3119
        %v3130 = vadd.f32 %v3093, %v3119
        %v3131 = vadd.f32 %v3094, %v3119
        %v3132 = vadd.f32 %v3095, %v3119
        %v3133 = vadd.f32 %v3096, %v3119
        %v3134 = vadd.f32 %v3097, %v3119
        %v3135 = vadd.f32 %v3098, %v3119
        %v3136 = vadd.f32 %v3099, %v3119
        %v3137 = vadd.f32 %v3100, %v3119
        %v3138 = vadd.f32 %v3101, %v3119
        %v3139 = vadd.f32 %v3102, %v3119
        %v3140 = vadd.f32 %v3103, %v3119
        %v3141 = vadd.f32 %v3104, %v3119
        %v3142 = vadd.f32 %v3105, %v3119
        %v3143 = vadd.f32 %v3106, %v3119
        %v3144 = vadd.f32 %v3107, %v3119
        %v3145 = vadd.f32 %v3108, %v3119
        %v3146 = vadd.f32 %v3109, %v3119
        %v3147 = vadd.f32 %v3110, %v3119
        %v3148 = vadd.f32 %v3111, %v3119
        %v3149 = vadd.f32 %v3112, %v3119
        %v3150 = vadd.f32 %v3113, %v3119
        %v3151 = vmax.f32 %v3121, 0.0
        %v3152 = vmax.f32 %v3122, 0.0
        %v3153 = vmax.f32 %v3123, 0.0
        %v3154 = vmax.f32 %v3124, 0.0
        %v3155 = vmax.f32 %v3125, 0.0
        %v3156 = vmax.f32 %v3126, 0.0
        %v3157 = vmax.f32 %v3127, 0.0
        %v3158 = vmax.f32 %v3128, 0.0
        %v3159 = vmax.f32 %v3129, 0.0
        %v3160 = vmax.f32 %v3130, 0.0
        %v3161 = vmax.f32 %v3131, 0.0
        %v3162 = vmax.f32 %v3132, 0.0
        %v3163 = vmax.f32 %v3133, 0.0
        %v3164 = vmax.f32 %v3134, 0.0
        %v3165 = vmax.f32 %v3135, 0.0
        %v3166 = vmax.f32 %v3136, 0.0
        %v3167 = vmax.f32 %v3137, 0.0
        %v3168 = vmax.f32 %v3138, 0.0
        %v3169 = vmax.f32 %v3139, 0.0
        %v3170 = vmax.f32 %v3140, 0.0
        %v3171 = vmax.f32 %v3141, 0.0
        %v3172 = vmax.f32 %v3142, 0.0
        %v3173 = vmax.f32 %v3143, 0.0
        %v3174 = vmax.f32 %v3144, 0.0
        %v3175 = vmax.f32 %v3145, 0.0
        %v3176 = vmax.f32 %v3146, 0.0
        %v3177 = vmax.f32 %v3147, 0.0
        %v3178 = vmax.f32 %v3148, 0.0
        %v3179 = vmax.f32 %v3149, 0.0
        %v3180 = vmax.f32 %v3150, 0.0
        %v3181 = vld [vmem:[#allocation10] sm:$0xff]
        %v3182 = vld [vmem:[#allocation10 + $0x8] sm:$0xff]
        %v3183 = vld [vmem:[#allocation10 + $0x10] sm:$0xff]
        %v3184 = vld [vmem:[#allocation10 + $0x18] sm:$0xff]
        %v3185 = vld [vmem:[#allocation10 + $0x20] sm:$0xff]
        %v3186 = vld [vmem:[#allocation10 + $0x28] sm:$0xff]
        %v3187 = vld [vmem:[#allocation10 + $0x30] sm:$0xff]
        %v3188 = vld [vmem:[#allocation10 + $0x38] sm:$0xff]
        %v3189 = vld [vmem:[#allocation10 + $0x40] sm:$0xff]
        %v3190 = vld [vmem:[#allocation10 + $0x48] sm:$0xff]
        %v3191 = vld [vmem:[#allocation10 + $0x50] sm:$0xff]
        %v3192 = vld [vmem:[#allocation10 + $0x58] sm:$0xff]
        %v3193 = vld [vmem:[#allocation10 + $0x60] sm:$0xff]
        %v3194 = vld [vmem:[#allocation10 + $0x68] sm:$0xff]
        %v3195 = vld [vmem:[#allocation10 + $0x70] sm:$0xff]
        %v3196 = vld [vmem:[#allocation10 + $0x78] sm:$0xff]
        %v3197 = vld [vmem:[#allocation10 + $0x80] sm:$0xff]
        %v3198 = vld [vmem:[#allocation10 + $0x88] sm:$0xff]
        %v3199 = vld [vmem:[#allocation10 + $0x90] sm:$0xff]
        %v3200 = vld [vmem:[#allocation10 + $0x98] sm:$0xff]
        %v3201 = vld [vmem:[#allocation10 + $0xa0] sm:$0xff]
        %v3202 = vld [vmem:[#allocation10 + $0xa8] sm:$0xff]
        %v3203 = vld [vmem:[#allocation10 + $0xb0] sm:$0xff]
        %v3204 = vld [vmem:[#allocation10 + $0xb8] sm:$0xff]
        %v3205 = vld [vmem:[#allocation10 + $0xc0] sm:$0xff]
        %v3206 = vld [vmem:[#allocation10 + $0xc8] sm:$0xff]
        %v3207 = vld [vmem:[#allocation10 + $0xd0] sm:$0xff]
        %v3208 = vld [vmem:[#allocation10 + $0xd8] sm:$0xff]
        %v3209 = vld [vmem:[#allocation10 + $0xe0] sm:$0xff]
        %v3210 = vld [vmem:[#allocation10 + $0xe8] sm:$0xff]
        %v3211 = vmul.f32 %v3151, %v3181
        %v3212 = vmul.f32 %v3152, %v3182
        %v3213 = vmul.f32 %v3153, %v3183
        %v3214 = vmul.f32 %v3154, %v3184
        %v3215 = vmul.f32 %v3155, %v3185
        %v3216 = vmul.f32 %v3156, %v3186
        %v3217 = vmul.f32 %v3157, %v3187
        %v3218 = vmul.f32 %v3158, %v3188
        %v3219 = vmul.f32 %v3159, %v3189
        %v3220 = vmul.f32 %v3160, %v3190
        %v3221 = vmul.f32 %v3161, %v3191
        %v3222 = vmul.f32 %v3162, %v3192
        %v3223 = vmul.f32 %v3163, %v3193
        %v3224 = vmul.f32 %v3164, %v3194
        %v3225 = vmul.f32 %v3165, %v3195
        %v3226 = vmul.f32 %v3166, %v3196
        %v3227 = vmul.f32 %v3167, %v3197
        %v3228 = vmul.f32 %v3168, %v3198
        %v3229 = vmul.f32 %v3169, %v3199
        %v3230 = vmul.f32 %v3170, %v3200
        %v3231 = vmul.f32 %v3171, %v3201
        %v3232 = vmul.f32 %v3172, %v3202
        %v3233 = vmul.f32 %v3173, %v3203
        %v3234 = vmul.f32 %v3174, %v3204
        %v3235 = vmul.f32 %v3175, %v3205
        %v3236 = vmul.f32 %v3176, %v3206
        %v3237 = vmul.f32 %v3177, %v3207
        %v3238 = vmul.f32 %v3178, %v3208
        %v3239 = vmul.f32 %v3179, %v3209
        %v3240 = vmul.f32 %v3180, %v3210
        %v3241 = vpack.c.bf16 %v3212, %v3211
        %v3242 = vpack.c.bf16 %v3214, %v3213
        %v3243 = vpack.c.bf16 %v3216, %v3215
        %v3244 = vpack.c.bf16 %v3218, %v3217
        %v3245 = vpack.c.bf16 %v3220, %v3219
        %v3246 = vpack.c.bf16 %v3222, %v3221
        %v3247 = vpack.c.bf16 %v3224, %v3223
        %v3248 = vpack.c.bf16 %v3226, %v3225
        %v3249 = vpack.c.bf16 %v3228, %v3227
        %v3250 = vpack.c.bf16 %v3230, %v3229
        %v3251 = vpack.c.bf16 %v3232, %v3231
        %v3252 = vpack.c.bf16 %v3234, %v3233
        %v3253 = vpack.c.bf16 %v3236, %v3235
        %v3254 = vpack.c.bf16 %v3238, %v3237
        %v3255 = vpack.c.bf16 %v3240, %v3239
        %v3271 = vunpack.c.l.b16 %v3241
        %v3272 = vunpack.c.h.b16 %v3241
        %v3273 = vunpack.c.l.b16 %v3242
        %v3274 = vunpack.c.h.b16 %v3242
        %v3275 = vunpack.c.l.b16 %v3243
        %v3276 = vunpack.c.h.b16 %v3243
        %v3277 = vunpack.c.l.b16 %v3244
        %v3278 = vunpack.c.h.b16 %v3244
        %v3279 = vunpack.c.l.b16 %v3245
        %v3280 = vunpack.c.h.b16 %v3245
        %v3281 = vunpack.c.l.b16 %v3246
        %v3282 = vunpack.c.h.b16 %v3246
        %v3283 = vunpack.c.l.b16 %v3247
        %v3284 = vunpack.c.h.b16 %v3247
        %v3285 = vunpack.c.l.b16 %v3248
        %v3286 = vunpack.c.h.b16 %v3248
        %v3287 = vunpack.c.l.b16 %v3249
        %v3288 = vunpack.c.h.b16 %v3249
        %v3289 = vunpack.c.l.b16 %v3250
        %v3290 = vunpack.c.h.b16 %v3250
        %v3291 = vunpack.c.l.b16 %v3251
        %v3292 = vunpack.c.h.b16 %v3251
        %v3293 = vunpack.c.l.b16 %v3252
        %v3294 = vunpack.c.h.b16 %v3252
        %v3295 = vunpack.c.l.b16 %v3253
        %v3296 = vunpack.c.h.b16 %v3253
        %v3297 = vunpack.c.l.b16 %v3254
        %v3298 = vunpack.c.h.b16 %v3254
        %v3299 = vunpack.c.l.b16 %v3255
        %v3300 = vunpack.c.h.b16 %v3255
        %v3301 = vpack.c.b16 %v3271, %v3271
        %v3302 = vpack.c.b16 %v3272, %v3272
        %v3303 = vpack.c.b16 %v3273, %v3273
        %v3304 = vpack.c.b16 %v3274, %v3274
        %v3305 = vpack.c.b16 %v3275, %v3275
        %v3306 = vpack.c.b16 %v3276, %v3276
        %v3307 = vpack.c.b16 %v3277, %v3277
        %v3308 = vpack.c.b16 %v3278, %v3278
        %v3309 = vpack.c.b16 %v3279, %v3279
        %v3310 = vpack.c.b16 %v3280, %v3280
        %v3311 = vpack.c.b16 %v3281, %v3281
        %v3312 = vpack.c.b16 %v3282, %v3282
        %v3313 = vpack.c.b16 %v3283, %v3283
        %v3314 = vpack.c.b16 %v3284, %v3284
        %v3315 = vpack.c.b16 %v3285, %v3285
        %v3316 = vpack.c.b16 %v3286, %v3286
        %v3317 = vpack.c.b16 %v3287, %v3287
        %v3318 = vpack.c.b16 %v3288, %v3288
        %v3319 = vpack.c.b16 %v3289, %v3289
        %v3320 = vpack.c.b16 %v3290, %v3290
        %v3321 = vpack.c.b16 %v3291, %v3291
        %v3322 = vpack.c.b16 %v3292, %v3292
        %v3323 = vpack.c.b16 %v3293, %v3293
        %v3324 = vpack.c.b16 %v3294, %v3294
        %v3325 = vpack.c.b16 %v3295, %v3295
        %v3326 = vpack.c.b16 %v3296, %v3296
        %v3327 = vpack.c.b16 %v3297, %v3297
        %v3328 = vpack.c.b16 %v3298, %v3298
        %v3329 = vpack.c.b16 %v3299, %v3299
        %v3330 = vpack.c.b16 %v3300, %v3300
        %3361 = vst [vmem:[#allocation3 + $0x8] sm:$0xf] %v3301
        %3362 = vst [vmem:[#allocation3 + $0xc] sm:$0xf] %v3302
        %3363 = vst [vmem:[#allocation3 + $0x10] sm:$0xf] %v3303
        %3364 = vst [vmem:[#allocation3 + $0x14] sm:$0xf] %v3304
        %3365 = vst [vmem:[#allocation3 + $0x18] sm:$0xf] %v3305
        %3366 = vst [vmem:[#allocation3 + $0x1c] sm:$0xf] %v3306
        %3367 = vst [vmem:[#allocation3 + $0x20] sm:$0xf] %v3307
        %3368 = vst [vmem:[#allocation3 + $0x24] sm:$0xf] %v3308
        %3369 = vst [vmem:[#allocation3 + $0x28] sm:$0xf] %v3309
        %3370 = vst [vmem:[#allocation3 + $0x2c] sm:$0xf] %v3310
        %3371 = vst [vmem:[#allocation3 + $0x30] sm:$0xf] %v3311
        %3372 = vst [vmem:[#allocation3 + $0x34] sm:$0xf] %v3312
        %3373 = vst [vmem:[#allocation3 + $0x38] sm:$0xf] %v3313
        %3374 = vst [vmem:[#allocation3 + $0x3c] sm:$0xf] %v3314
        %3375 = vst [vmem:[#allocation3 + $0x40] sm:$0xf] %v3315
        %3376 = vst [vmem:[#allocation3 + $0x44] sm:$0xf] %v3316
        %3377 = vst [vmem:[#allocation3 + $0x48] sm:$0xf] %v3317
        %3378 = vst [vmem:[#allocation3 + $0x4c] sm:$0xf] %v3318
        %3379 = vst [vmem:[#allocation3 + $0x50] sm:$0xf] %v3319
        %3380 = vst [vmem:[#allocation3 + $0x54] sm:$0xf] %v3320
        %3381 = vst [vmem:[#allocation3 + $0x58] sm:$0xf] %v3321
        %3382 = vst [vmem:[#allocation3 + $0x5c] sm:$0xf] %v3322
        %3383 = vst [vmem:[#allocation3 + $0x60] sm:$0xf] %v3323
        %3384 = vst [vmem:[#allocation3 + $0x64] sm:$0xf] %v3324
        %3385 = vst [vmem:[#allocation3 + $0x68] sm:$0xf] %v3325
        %3386 = vst [vmem:[#allocation3 + $0x6c] sm:$0xf] %v3326
        %3387 = vst [vmem:[#allocation3 + $0x70] sm:$0xf] %v3327
        %3388 = vst [vmem:[#allocation3 + $0x74] sm:$0xf] %v3328
        %3389 = vst [vmem:[#allocation3 + $0x78] sm:$0xf] %v3329
        %3390 = vst [vmem:[#allocation3 + $0x7c] sm:$0xf] %v3330
        // Predicated region
        $region69: #{tpu_custom_call.1} parent=39 // pred_check
          %p3391 = pneg %p276
        $region70: #{tpu_custom_call.1} parent=39 // pred_check_branch
          %3393 = sbr.rel (%p3391) target = $region72
        $region71: #{tpu_custom_call.1} parent=39 // pred_region
          %3394 = vst [vmem:[#allocation3 + $0x8] sm:$0xf] 0
          %3395 = vst [vmem:[#allocation3 + $0xc] sm:$0xf] 0
          %3396 = vst [vmem:[#allocation3 + $0x10] sm:$0xf] 0
        $region72: #{tpu_custom_call.1} parent=39 // pred_fallthru
          _
        %s3397 = smul.u32 %s307, 8
        %s3398 = sadd.s32 %s3397, 4294967281
        %p3399 = scmp.gt.s32.totalorder %s3398, 0
        // Predicated region
        $region73: #{tpu_custom_call.1} parent=39 // pred_check
          %p3400 = pneg %p3399
        $region74: #{tpu_custom_call.1} parent=39 // pred_check_branch
          %3402 = sbr.rel (%p3400) target = $region76
        $region75: #{tpu_custom_call.1} parent=39 // pred_region
          %s3403 = smul.u32 %s3398, 24
          %s3404 = ssub.s32 256, %s3403
          %s3405 = sshra.s32 %s3404, 3
          %s3406 = sand.u32 %s3404, 7
          %s3407 = smul.addr %s3405, 4
          %s3408 = scalar_lea.vmem [#allocation3], %s3407
          %3409 = vst [vmem:[%s3408] sm:$0xf] 0
          %3410 = vst [vmem:[%s3408 + $0x4] sm:$0xf] 0
          %3411 = vst [vmem:[%s3408 + $0x8] sm:$0xf] 0
        $region76: #{tpu_custom_call.1} parent=39 // pred_fallthru
          _
        %v3412 = vld [vmem:[#allocation3 + $0x4] sm:$0xf]
        %v3413 = vld [vmem:[#allocation3 + $0x8] sm:$0xf]
        %v3414 = vld [vmem:[#allocation3 + $0xc] sm:$0xf]
        %v3415 = vld [vmem:[#allocation3 + $0x10] sm:$0xf]
        %v3416 = vld [vmem:[#allocation3 + $0x14] sm:$0xf]
        %v3417 = vld [vmem:[#allocation3 + $0x18] sm:$0xf]
        %v3418 = vld [vmem:[#allocation3 + $0x1c] sm:$0xf]
        %v3419 = vld [vmem:[#allocation3 + $0x20] sm:$0xf]
        %v3420 = vld [vmem:[#allocation3 + $0x24] sm:$0xf]
        %v3421 = vld [vmem:[#allocation3 + $0x28] sm:$0xf]
        %v3422 = vld [vmem:[#allocation3 + $0x2c] sm:$0xf]
        %v3423 = vld [vmem:[#allocation3 + $0x30] sm:$0xf]
        %v3424 = vld [vmem:[#allocation3 + $0x34] sm:$0xf]
        %v3425 = vld [vmem:[#allocation3 + $0x38] sm:$0xf]
        %v3426 = vld [vmem:[#allocation3 + $0x3c] sm:$0xf]
        %v3427 = vld [vmem:[#allocation3 + $0x40] sm:$0xf]
        %v3428 = vld [vmem:[#allocation3 + $0x44] sm:$0xf]
        %v3429 = vld [vmem:[#allocation3 + $0x48] sm:$0xf]
        %v3430 = vld [vmem:[#allocation3 + $0x4c] sm:$0xf]
        %v3431 = vld [vmem:[#allocation3 + $0x50] sm:$0xf]
        %v3432 = vld [vmem:[#allocation3 + $0x54] sm:$0xf]
        %v3433 = vld [vmem:[#allocation3 + $0x58] sm:$0xf]
        %v3434 = vld [vmem:[#allocation3 + $0x5c] sm:$0xf]
        %v3435 = vld [vmem:[#allocation3 + $0x60] sm:$0xf]
        %v3436 = vld [vmem:[#allocation3 + $0x64] sm:$0xf]
        %v3437 = vld [vmem:[#allocation3 + $0x68] sm:$0xf]
        %v3438 = vld [vmem:[#allocation3 + $0x6c] sm:$0xf]
        %v3439 = vld [vmem:[#allocation3 + $0x70] sm:$0xf]
        %v3440 = vld [vmem:[#allocation3 + $0x74] sm:$0xf]
        %v3441 = vld [vmem:[#allocation3 + $0x78] sm:$0xf]
        %v3442 = vld [vmem:[#allocation3 + $0x7c] sm:$0xf]
        %v3443 = vld [vmem:[#allocation3 + $0x80] sm:$0xf]
        %v3444 = vld [vmem:[#allocation8] sm:$0xf]
        %v3445 = vld [vmem:[#allocation8 + $0x4] sm:$0xf]
        %v3446 = vld [vmem:[#allocation8 + $0x8] sm:$0xf]
        %v3447 = vld [vmem:[#allocation8 + $0xc] sm:$0xf]
        %v3448 = vld [vmem:[#allocation8 + $0x10] sm:$0xf]
        %v3449 = vld [vmem:[#allocation8 + $0x14] sm:$0xf]
        %v3450 = vld [vmem:[#allocation8 + $0x18] sm:$0xf]
        %v3451 = vld [vmem:[#allocation8 + $0x1c] sm:$0xf]
        %v3452 = vld [vmem:[#allocation8 + $0x20] sm:$0xf]
        %v3453 = vld [vmem:[#allocation8 + $0x24] sm:$0xf]
        %v3454 = vld [vmem:[#allocation8 + $0x28] sm:$0xf]
        %v3455 = vld [vmem:[#allocation8 + $0x2c] sm:$0xf]
        %v3456 = vld [vmem:[#allocation8 + $0x30] sm:$0xf]
        %v3457 = vld [vmem:[#allocation8 + $0x34] sm:$0xf]
        %v3458 = vld [vmem:[#allocation8 + $0x38] sm:$0xf]
        %v3459 = vld [vmem:[#allocation8 + $0x3c] sm:$0xf]
        %s3460 = scalar_lea.vmem [#allocation8], 64
        %v3461 = vld [vmem:[%s3460] sm:$0xf]
        %v3462 = vld [vmem:[%s3460 + $0x4] sm:$0xf]
        %v3463 = vld [vmem:[%s3460 + $0x8] sm:$0xf]
        %v3464 = vld [vmem:[%s3460 + $0xc] sm:$0xf]
        %v3465 = vld [vmem:[%s3460 + $0x10] sm:$0xf]
        %v3466 = vld [vmem:[%s3460 + $0x14] sm:$0xf]
        %v3467 = vld [vmem:[%s3460 + $0x18] sm:$0xf]
        %v3468 = vld [vmem:[%s3460 + $0x1c] sm:$0xf]
        %v3469 = vld [vmem:[%s3460 + $0x20] sm:$0xf]
        %v3470 = vld [vmem:[%s3460 + $0x24] sm:$0xf]
        %v3471 = vld [vmem:[%s3460 + $0x28] sm:$0xf]
        %v3472 = vld [vmem:[%s3460 + $0x2c] sm:$0xf]
        %v3473 = vld [vmem:[%s3460 + $0x30] sm:$0xf]
        %v3474 = vld [vmem:[%s3460 + $0x34] sm:$0xf]
        %v3475 = vld [vmem:[%s3460 + $0x38] sm:$0xf]
        %v3476 = vld [vmem:[%s3460 + $0x3c] sm:$0xf]
        %v3501 = vunpack.c.l.b16 %v3413
        %v3502 = vunpack.c.l.b16 %v3414
        %v3503 = vunpack.c.l.b16 %v3415
        %v3504 = vunpack.c.l.b16 %v3416
        %v3505 = vunpack.c.l.b16 %v3417
        %v3506 = vunpack.c.l.b16 %v3418
        %v3507 = vunpack.c.l.b16 %v3419
        %v3508 = vunpack.c.l.b16 %v3420
        %v3509 = vunpack.c.l.b16 %v3421
        %v3510 = vunpack.c.l.b16 %v3422
        %v3511 = vunpack.c.l.b16 %v3423
        %v3512 = vunpack.c.l.b16 %v3424
        %v3513 = vunpack.c.l.b16 %v3425
        %v3514 = vunpack.c.l.b16 %v3426
        %v3515 = vunpack.c.l.b16 %v3427
        %v3516 = vunpack.c.l.b16 %v3428
        %v3517 = vunpack.c.l.b16 %v3429
        %v3518 = vunpack.c.l.b16 %v3430
        %v3519 = vunpack.c.l.b16 %v3431
        %v3520 = vunpack.c.l.b16 %v3432
        %v3521 = vunpack.c.l.b16 %v3433
        %v3522 = vunpack.c.l.b16 %v3434
        %v3523 = vunpack.c.l.b16 %v3435
        %v3524 = vunpack.c.l.b16 %v3436
        %v3525 = vpack.c.b16 %v3502, %v3501
        %v3526 = vpack.c.b16 %v3504, %v3503
        %v3527 = vpack.c.b16 %v3506, %v3505
        %v3528 = vpack.c.b16 %v3508, %v3507
        %v3529 = vpack.c.b16 %v3510, %v3509
        %v3530 = vpack.c.b16 %v3512, %v3511
        %v3531 = vpack.c.b16 %v3514, %v3513
        %v3532 = vpack.c.b16 %v3516, %v3515
        %v3533 = vpack.c.b16 %v3518, %v3517
        %v3534 = vpack.c.b16 %v3520, %v3519
        %v3535 = vpack.c.b16 %v3522, %v3521
        %v3536 = vpack.c.b16 %v3524, %v3523
        %v3565 = vunpack.c.l.b16 %v3461
        %v3566 = vunpack.c.l.b16 %v3462
        %v3567 = vunpack.c.l.b16 %v3463
        %v3568 = vunpack.c.l.b16 %v3464
        %v3569 = vunpack.c.l.b16 %v3465
        %v3570 = vunpack.c.l.b16 %v3466
        %v3571 = vunpack.c.l.b16 %v3467
        %v3572 = vunpack.c.l.b16 %v3468
        %v3573 = vunpack.c.l.b16 %v3469
        %v3574 = vunpack.c.l.b16 %v3470
        %v3575 = vunpack.c.l.b16 %v3471
        %v3576 = vunpack.c.l.b16 %v3472
        %v3577 = vunpack.c.l.b16 %v3473
        %v3578 = vunpack.c.l.b16 %v3474
        %v3579 = vunpack.c.l.b16 %v3475
        %v3580 = vunpack.c.l.b16 %v3476
        %v3581 = vpack.c.b16 %v3566, %v3565
        %v3582 = vpack.c.b16 %v3568, %v3567
        %v3583 = vpack.c.b16 %v3570, %v3569
        %v3584 = vpack.c.b16 %v3572, %v3571
        %v3585 = vpack.c.b16 %v3574, %v3573
        %v3586 = vpack.c.b16 %v3576, %v3575
        %v3587 = vpack.c.b16 %v3578, %v3577
        %v3588 = vpack.c.b16 %v3580, %v3579
        %3597 = vmatprep.subr.bf16.mxu0 0
        %3598 = vmatpush1.bf16.msra.mxu0 %v3581
        %3599 = vmatprep.subr.bf16.mxu0 0
        %3600 = vmatpush1.bf16.msra.mxu0 %v3582
        %3601 = vmatprep.subr.bf16.mxu0 0
        %3602 = vmatpush1.bf16.msra.mxu0 %v3583
        %3603 = vmatprep.subr.bf16.mxu0 0
        %3604 = vmatpush1.bf16.msra.mxu0 %v3584
        %3605 = vmatprep.subr.bf16.mxu0 0
        %3606 = vmatpush1.bf16.msra.mxu0 %v3585
        %3607 = vmatprep.subr.bf16.mxu0 0
        %3608 = vmatpush1.bf16.msra.mxu0 %v3586
        %3609 = vmatprep.subr.bf16.mxu0 0
        %3610 = vmatpush1.bf16.msra.mxu0 %v3587
        %3611 = vmatprep.subr.bf16.mxu0 0
        %3612 = vmatpush1.bf16.msra.mxu0 %v3588
        %3613 = vmatprep.subr.bf16.mxu0 0
        %3614 = vmatpush1.bf16.msra.mxu0 0
        %3615 = vmatprep.subr.bf16.mxu0 0
        %3616 = vmatpush1.bf16.msra.mxu0 0
        %3617 = vmatprep.subr.bf16.mxu0 0
        %3618 = vmatpush1.bf16.msra.mxu0 0
        %3619 = vmatprep.subr.bf16.mxu0 0
        %3620 = vmatpush1.bf16.msra.mxu0 0
        %3621 = vmatprep.subr.bf16.mxu0 0
        %3622 = vmatpush1.bf16.msra.mxu0 0
        %3623 = vmatprep.subr.bf16.mxu0 0
        %3624 = vmatpush1.bf16.msra.mxu0 0
        %3625 = vmatprep.subr.bf16.mxu0 0
        %3626 = vmatpush1.bf16.msra.mxu0 0
        %3627 = vmatprep.subr.bf16.mxu0 0
        %3628 = vmatpush1.bf16.msra.mxu0 0
        %3629 = vmatprep.mubr.bf16.mxu0 0
        %3630 = vmatmul.mubr.bf16.gmra.mrb[0].mxu0 %v3525
        %v3631 = vpop.f32.mrb[0].mxu0
        %v3632 = vadd.f32 0.0, %v3631
        %v3633 = vpop.f32.mrb[0].mxu0
        %v3634 = vpop.f32.mrb[0].mxu0
        %v3635 = vadd.f32 0.0, %v3634
        %v3636 = vpop.f32.mrb[0].mxu0
        %3637 = vmatprep.mubr.bf16.mxu0 0
        %3638 = vmatmul.mubr.bf16.gmra.mrb[0].mxu0 %v3526
        %v3639 = vpop.f32.mrb[0].mxu0
        %v3640 = vadd.f32 0.0, %v3639
        %v3641 = vpop.f32.mrb[0].mxu0
        %v3642 = vpop.f32.mrb[0].mxu0
        %v3643 = vadd.f32 0.0, %v3642
        %v3644 = vpop.f32.mrb[0].mxu0
        %3645 = vmatprep.mubr.bf16.mxu0 0
        %3646 = vmatmul.mubr.bf16.gmra.mrb[0].mxu0 %v3527
        %v3647 = vpop.f32.mrb[0].mxu0
        %v3648 = vadd.f32 0.0, %v3647
        %v3649 = vpop.f32.mrb[0].mxu0
        %v3650 = vpop.f32.mrb[0].mxu0
        %v3651 = vadd.f32 0.0, %v3650
        %v3652 = vpop.f32.mrb[0].mxu0
        %3653 = vmatprep.mubr.bf16.mxu0 0
        %3654 = vmatmul.mubr.bf16.gmra.mrb[0].mxu0 %v3528
        %v3655 = vpop.f32.mrb[0].mxu0
        %v3656 = vadd.f32 0.0, %v3655
        %v3657 = vpop.f32.mrb[0].mxu0
        %v3658 = vpop.f32.mrb[0].mxu0
        %v3659 = vadd.f32 0.0, %v3658
        %v3660 = vpop.f32.mrb[0].mxu0
        %3661 = vmatprep.mubr.bf16.mxu0 0
        %3662 = vmatmul.mubr.bf16.gmra.mrb[0].mxu0 %v3529
        %v3663 = vpop.f32.mrb[0].mxu0
        %v3664 = vadd.f32 0.0, %v3663
        %v3665 = vpop.f32.mrb[0].mxu0
        %v3666 = vpop.f32.mrb[0].mxu0
        %v3667 = vadd.f32 0.0, %v3666
        %v3668 = vpop.f32.mrb[0].mxu0
        %3669 = vmatprep.mubr.bf16.mxu0 0
        %3670 = vmatmul.mubr.bf16.gmra.mrb[0].mxu0 %v3530
        %v3671 = vpop.f32.mrb[0].mxu0
        %v3672 = vadd.f32 0.0, %v3671
        %v3673 = vpop.f32.mrb[0].mxu0
        %v3674 = vpop.f32.mrb[0].mxu0
        %v3675 = vadd.f32 0.0, %v3674
        %v3676 = vpop.f32.mrb[0].mxu0
        %3677 = vmatprep.mubr.bf16.mxu0 0
        %3678 = vmatmul.mubr.bf16.gmra.mrb[0].mxu0 %v3531
        %v3679 = vpop.f32.mrb[0].mxu0
        %v3680 = vadd.f32 0.0, %v3679
        %v3681 = vpop.f32.mrb[0].mxu0
        %v3682 = vpop.f32.mrb[0].mxu0
        %v3683 = vadd.f32 0.0, %v3682
        %v3684 = vpop.f32.mrb[0].mxu0
        %3685 = vmatprep.mubr.bf16.mxu0 0
        %3686 = vmatmul.mubr.bf16.gmra.mrb[0].mxu0 %v3532
        %v3687 = vpop.f32.mrb[0].mxu0
        %v3688 = vadd.f32 0.0, %v3687
        %v3689 = vpop.f32.mrb[0].mxu0
        %v3690 = vpop.f32.mrb[0].mxu0
        %v3691 = vadd.f32 0.0, %v3690
        %v3692 = vpop.f32.mrb[0].mxu0
        %3693 = vmatprep.mubr.bf16.mxu0 0
        %3694 = vmatmul.mubr.bf16.gmra.mrb[0].mxu0 %v3533
        %v3695 = vpop.f32.mrb[0].mxu0
        %v3696 = vadd.f32 0.0, %v3695
        %v3697 = vpop.f32.mrb[0].mxu0
        %v3698 = vpop.f32.mrb[0].mxu0
        %v3699 = vadd.f32 0.0, %v3698
        %v3700 = vpop.f32.mrb[0].mxu0
        %3701 = vmatprep.mubr.bf16.mxu0 0
        %3702 = vmatmul.mubr.bf16.gmra.mrb[0].mxu0 %v3534
        %v3703 = vpop.f32.mrb[0].mxu0
        %v3704 = vadd.f32 0.0, %v3703
        %v3705 = vpop.f32.mrb[0].mxu0
        %v3706 = vpop.f32.mrb[0].mxu0
        %v3707 = vadd.f32 0.0, %v3706
        %v3708 = vpop.f32.mrb[0].mxu0
        %3709 = vmatprep.mubr.bf16.mxu0 0
        %3710 = vmatmul.mubr.bf16.gmra.mrb[0].mxu0 %v3535
        %v3711 = vpop.f32.mrb[0].mxu0
        %v3712 = vadd.f32 0.0, %v3711
        %v3713 = vpop.f32.mrb[0].mxu0
        %v3714 = vpop.f32.mrb[0].mxu0
        %v3715 = vadd.f32 0.0, %v3714
        %v3716 = vpop.f32.mrb[0].mxu0
        %3717 = vmatprep.mubr.bf16.mxu0 0
        %3718 = vmatmul.mubr.bf16.gmra.mrb[0].mxu0 %v3536
        %v3719 = vpop.f32.mrb[0].mxu0
        %v3720 = vadd.f32 0.0, %v3719
        %v3721 = vpop.f32.mrb[0].mxu0
        %v3722 = vpop.f32.mrb[0].mxu0
        %v3723 = vadd.f32 0.0, %v3722
        %v3724 = vpop.f32.mrb[0].mxu0
        %3725 = vdwg.mxu0
        %v3727 = vunpack.c.l.b16 %v3412
        %v3728 = vpack.c.b16 %v3501, %v3727
        %v3729 = vpack.c.b16 %v3503, %v3502
        %v3730 = vpack.c.b16 %v3505, %v3504
        %v3731 = vpack.c.b16 %v3507, %v3506
        %v3732 = vpack.c.b16 %v3509, %v3508
        %v3733 = vpack.c.b16 %v3511, %v3510
        %v3734 = vpack.c.b16 %v3513, %v3512
        %v3735 = vpack.c.b16 %v3515, %v3514
        %v3736 = vpack.c.b16 %v3517, %v3516
        %v3737 = vpack.c.b16 %v3519, %v3518
        %v3738 = vpack.c.b16 %v3521, %v3520
        %v3739 = vpack.c.b16 %v3523, %v3522
        %v3740 = vpack.c.b16 %v3524, %v3524
        %vm3741 = vsmask.f32 4352
        %v3743 = vshrl.u32 %v3728, 16
        %v3745 = vrot.slane %v3743, 3
        %v3746 = vshll.u32 %v3728, 16
        %v3748 = vrot.slane %v3746, 4
        %v3749 = vor.u32 %v3745, %v3748
        %v3751 = vshrl.u32 %v3729, 16
        %v3753 = vrot.slane %v3751, 3
        %v3754 = vshll.u32 %v3729, 16
        %v3756 = vrot.slane %v3754, 4
        %v3757 = vor.u32 %v3753, %v3756
        %v3758 = vsel %vm3741, %v3749, %v3757
        %v3760 = vshrl.u32 %v3730, 16
        %v3762 = vrot.slane %v3760, 3
        %v3763 = vshll.u32 %v3730, 16
        %v3765 = vrot.slane %v3763, 4
        %v3766 = vor.u32 %v3762, %v3765
        %v3767 = vsel %vm3741, %v3757, %v3766
        %v3769 = vshrl.u32 %v3731, 16
        %v3771 = vrot.slane %v3769, 3
        %v3772 = vshll.u32 %v3731, 16
        %v3774 = vrot.slane %v3772, 4
        %v3775 = vor.u32 %v3771, %v3774
        %v3776 = vsel %vm3741, %v3766, %v3775
        %v3778 = vshrl.u32 %v3732, 16
        %v3780 = vrot.slane %v3778, 3
        %v3781 = vshll.u32 %v3732, 16
        %v3783 = vrot.slane %v3781, 4
        %v3784 = vor.u32 %v3780, %v3783
        %v3785 = vsel %vm3741, %v3775, %v3784
        %v3787 = vshrl.u32 %v3733, 16
        %v3789 = vrot.slane %v3787, 3
        %v3790 = vshll.u32 %v3733, 16
        %v3792 = vrot.slane %v3790, 4
        %v3793 = vor.u32 %v3789, %v3792
        %v3794 = vsel %vm3741, %v3784, %v3793
        %v3796 = vshrl.u32 %v3734, 16
        %v3798 = vrot.slane %v3796, 3
        %v3799 = vshll.u32 %v3734, 16
        %v3801 = vrot.slane %v3799, 4
        %v3802 = vor.u32 %v3798, %v3801
        %v3803 = vsel %vm3741, %v3793, %v3802
        %v3805 = vshrl.u32 %v3735, 16
        %v3807 = vrot.slane %v3805, 3
        %v3808 = vshll.u32 %v3735, 16
        %v3810 = vrot.slane %v3808, 4
        %v3811 = vor.u32 %v3807, %v3810
        %v3812 = vsel %vm3741, %v3802, %v3811
        %v3814 = vshrl.u32 %v3736, 16
        %v3816 = vrot.slane %v3814, 3
        %v3817 = vshll.u32 %v3736, 16
        %v3819 = vrot.slane %v3817, 4
        %v3820 = vor.u32 %v3816, %v3819
        %v3821 = vsel %vm3741, %v3811, %v3820
        %v3823 = vshrl.u32 %v3737, 16
        %v3825 = vrot.slane %v3823, 3
        %v3826 = vshll.u32 %v3737, 16
        %v3828 = vrot.slane %v3826, 4
        %v3829 = vor.u32 %v3825, %v3828
        %v3830 = vsel %vm3741, %v3820, %v3829
        %v3832 = vshrl.u32 %v3738, 16
        %v3834 = vrot.slane %v3832, 3
        %v3835 = vshll.u32 %v3738, 16
        %v3837 = vrot.slane %v3835, 4
        %v3838 = vor.u32 %v3834, %v3837
        %v3839 = vsel %vm3741, %v3829, %v3838
        %v3841 = vshrl.u32 %v3739, 16
        %v3843 = vrot.slane %v3841, 3
        %v3844 = vshll.u32 %v3739, 16
        %v3846 = vrot.slane %v3844, 4
        %v3847 = vor.u32 %v3843, %v3846
        %v3848 = vsel %vm3741, %v3838, %v3847
        %v3850 = vshrl.u32 %v3740, 16
        %v3852 = vrot.slane %v3850, 3
        %v3853 = vshll.u32 %v3740, 16
        %v3855 = vrot.slane %v3853, 4
        %v3856 = vor.u32 %v3852, %v3855
        %v3857 = vsel %vm3741, %v3847, %v3856
        %v3886 = vunpack.c.l.b16 %v3444
        %v3887 = vunpack.c.l.b16 %v3445
        %v3888 = vunpack.c.l.b16 %v3446
        %v3889 = vunpack.c.l.b16 %v3447
        %v3890 = vunpack.c.l.b16 %v3448
        %v3891 = vunpack.c.l.b16 %v3449
        %v3892 = vunpack.c.l.b16 %v3450
        %v3893 = vunpack.c.l.b16 %v3451
        %v3894 = vunpack.c.l.b16 %v3452
        %v3895 = vunpack.c.l.b16 %v3453
        %v3896 = vunpack.c.l.b16 %v3454
        %v3897 = vunpack.c.l.b16 %v3455
        %v3898 = vunpack.c.l.b16 %v3456
        %v3899 = vunpack.c.l.b16 %v3457
        %v3900 = vunpack.c.l.b16 %v3458
        %v3901 = vunpack.c.l.b16 %v3459
        %v3902 = vpack.c.b16 %v3887, %v3886
        %v3903 = vpack.c.b16 %v3889, %v3888
        %v3904 = vpack.c.b16 %v3891, %v3890
        %v3905 = vpack.c.b16 %v3893, %v3892
        %v3906 = vpack.c.b16 %v3895, %v3894
        %v3907 = vpack.c.b16 %v3897, %v3896
        %v3908 = vpack.c.b16 %v3899, %v3898
        %v3909 = vpack.c.b16 %v3901, %v3900
        %3918 = vmatprep.subr.bf16.mxu0 0
        %3919 = vmatpush1.bf16.msra.mxu0 %v3902
        %3920 = vmatprep.subr.bf16.mxu0 0
        %3921 = vmatpush1.bf16.msra.mxu0 %v3903
        %3922 = vmatprep.subr.bf16.mxu0 0
        %3923 = vmatpush1.bf16.msra.mxu0 %v3904
        %3924 = vmatprep.subr.bf16.mxu0 0
        %3925 = vmatpush1.bf16.msra.mxu0 %v3905
        %3926 = vmatprep.subr.bf16.mxu0 0
        %3927 = vmatpush1.bf16.msra.mxu0 %v3906
        %3928 = vmatprep.subr.bf16.mxu0 0
        %3929 = vmatpush1.bf16.msra.mxu0 %v3907
        %3930 = vmatprep.subr.bf16.mxu0 0
        %3931 = vmatpush1.bf16.msra.mxu0 %v3908
        %3932 = vmatprep.subr.bf16.mxu0 0
        %3933 = vmatpush1.bf16.msra.mxu0 %v3909
        %3934 = vmatprep.subr.bf16.mxu0 0
        %3935 = vmatpush1.bf16.msra.mxu0 0
        %3936 = vmatprep.subr.bf16.mxu0 0
        %3937 = vmatpush1.bf16.msra.mxu0 0
        %3938 = vmatprep.subr.bf16.mxu0 0
        %3939 = vmatpush1.bf16.msra.mxu0 0
        %3940 = vmatprep.subr.bf16.mxu0 0
        %3941 = vmatpush1.bf16.msra.mxu0 0
        %3942 = vmatprep.subr.bf16.mxu0 0
        %3943 = vmatpush1.bf16.msra.mxu0 0
        %3944 = vmatprep.subr.bf16.mxu0 0
        %3945 = vmatpush1.bf16.msra.mxu0 0
        %3946 = vmatprep.subr.bf16.mxu0 0
        %3947 = vmatpush1.bf16.msra.mxu0 0
        %3948 = vmatprep.subr.bf16.mxu0 0
        %3949 = vmatpush1.bf16.msra.mxu0 0
        %3950 = vmatprep.mubr.bf16.mxu0 0
        %3951 = vmatmul.mubr.bf16.gmra.mrb[0].mxu0 %v3758
        %v3952 = vpop.f32.mrb[0].mxu0
        %v3953 = vadd.f32 %v3632, %v3952
        %v3954 = vpop.f32.mrb[0].mxu0
        %v3955 = vpop.f32.mrb[0].mxu0
        %v3956 = vadd.f32 %v3635, %v3955
        %v3957 = vpop.f32.mrb[0].mxu0
        %3958 = vmatprep.mubr.bf16.mxu0 0
        %3959 = vmatmul.mubr.bf16.gmra.mrb[0].mxu0 %v3767
        %v3960 = vpop.f32.mrb[0].mxu0
        %v3961 = vadd.f32 %v3640, %v3960
        %v3962 = vpop.f32.mrb[0].mxu0
        %v3963 = vpop.f32.mrb[0].mxu0
        %v3964 = vadd.f32 %v3643, %v3963
        %v3965 = vpop.f32.mrb[0].mxu0
        %3966 = vmatprep.mubr.bf16.mxu0 0
        %3967 = vmatmul.mubr.bf16.gmra.mrb[0].mxu0 %v3776
        %v3968 = vpop.f32.mrb[0].mxu0
        %v3969 = vadd.f32 %v3648, %v3968
        %v3970 = vpop.f32.mrb[0].mxu0
        %v3971 = vpop.f32.mrb[0].mxu0
        %v3972 = vadd.f32 %v3651, %v3971
        %v3973 = vpop.f32.mrb[0].mxu0
        %3974 = vmatprep.mubr.bf16.mxu0 0
        %3975 = vmatmul.mubr.bf16.gmra.mrb[0].mxu0 %v3785
        %v3976 = vpop.f32.mrb[0].mxu0
        %v3977 = vadd.f32 %v3656, %v3976
        %v3978 = vpop.f32.mrb[0].mxu0
        %v3979 = vpop.f32.mrb[0].mxu0
        %v3980 = vadd.f32 %v3659, %v3979
        %v3981 = vpop.f32.mrb[0].mxu0
        %3982 = vmatprep.mubr.bf16.mxu0 0
        %3983 = vmatmul.mubr.bf16.gmra.mrb[0].mxu0 %v3794
        %v3984 = vpop.f32.mrb[0].mxu0
        %v3985 = vadd.f32 %v3664, %v3984
        %v3986 = vpop.f32.mrb[0].mxu0
        %v3987 = vpop.f32.mrb[0].mxu0
        %v3988 = vadd.f32 %v3667, %v3987
        %v3989 = vpop.f32.mrb[0].mxu0
        %3990 = vmatprep.mubr.bf16.mxu0 0
        %3991 = vmatmul.mubr.bf16.gmra.mrb[0].mxu0 %v3803
        %v3992 = vpop.f32.mrb[0].mxu0
        %v3993 = vadd.f32 %v3672, %v3992
        %v3994 = vpop.f32.mrb[0].mxu0
        %v3995 = vpop.f32.mrb[0].mxu0
        %v3996 = vadd.f32 %v3675, %v3995
        %v3997 = vpop.f32.mrb[0].mxu0
        %3998 = vmatprep.mubr.bf16.mxu0 0
        %3999 = vmatmul.mubr.bf16.gmra.mrb[0].mxu0 %v3812
        %v4000 = vpop.f32.mrb[0].mxu0
        %v4001 = vadd.f32 %v3680, %v4000
        %v4002 = vpop.f32.mrb[0].mxu0
        %v4003 = vpop.f32.mrb[0].mxu0
        %v4004 = vadd.f32 %v3683, %v4003
        %v4005 = vpop.f32.mrb[0].mxu0
        %4006 = vmatprep.mubr.bf16.mxu0 0
        %4007 = vmatmul.mubr.bf16.gmra.mrb[0].mxu0 %v3821
        %v4008 = vpop.f32.mrb[0].mxu0
        %v4009 = vadd.f32 %v3688, %v4008
        %v4010 = vpop.f32.mrb[0].mxu0
        %v4011 = vpop.f32.mrb[0].mxu0
        %v4012 = vadd.f32 %v3691, %v4011
        %v4013 = vpop.f32.mrb[0].mxu0
        %4014 = vmatprep.mubr.bf16.mxu0 0
        %4015 = vmatmul.mubr.bf16.gmra.mrb[0].mxu0 %v3830
        %v4016 = vpop.f32.mrb[0].mxu0
        %v4017 = vadd.f32 %v3696, %v4016
        %v4018 = vpop.f32.mrb[0].mxu0
        %v4019 = vpop.f32.mrb[0].mxu0
        %v4020 = vadd.f32 %v3699, %v4019
        %v4021 = vpop.f32.mrb[0].mxu0
        %4022 = vmatprep.mubr.bf16.mxu0 0
        %4023 = vmatmul.mubr.bf16.gmra.mrb[0].mxu0 %v3839
        %v4024 = vpop.f32.mrb[0].mxu0
        %v4025 = vadd.f32 %v3704, %v4024
        %v4026 = vpop.f32.mrb[0].mxu0
        %v4027 = vpop.f32.mrb[0].mxu0
        %v4028 = vadd.f32 %v3707, %v4027
        %v4029 = vpop.f32.mrb[0].mxu0
        %4030 = vmatprep.mubr.bf16.mxu0 0
        %4031 = vmatmul.mubr.bf16.gmra.mrb[0].mxu0 %v3848
        %v4032 = vpop.f32.mrb[0].mxu0
        %v4033 = vadd.f32 %v3712, %v4032
        %v4034 = vpop.f32.mrb[0].mxu0
        %v4035 = vpop.f32.mrb[0].mxu0
        %v4036 = vadd.f32 %v3715, %v4035
        %v4037 = vpop.f32.mrb[0].mxu0
        %4038 = vmatprep.mubr.bf16.mxu0 0
        %4039 = vmatmul.mubr.bf16.gmra.mrb[0].mxu0 %v3857
        %v4040 = vpop.f32.mrb[0].mxu0
        %v4041 = vadd.f32 %v3720, %v4040
        %v4042 = vpop.f32.mrb[0].mxu0
        %v4043 = vpop.f32.mrb[0].mxu0
        %v4044 = vadd.f32 %v3723, %v4043
        %v4045 = vpop.f32.mrb[0].mxu0
        %4046 = vdwg.mxu0
        %s4047 = scalar_lea.vmem [#allocation8], 128
        %v4048 = vld [vmem:[%s4047] sm:$0xf]
        %v4049 = vld [vmem:[%s4047 + $0x4] sm:$0xf]
        %v4050 = vld [vmem:[%s4047 + $0x8] sm:$0xf]
        %v4051 = vld [vmem:[%s4047 + $0xc] sm:$0xf]
        %v4052 = vld [vmem:[%s4047 + $0x10] sm:$0xf]
        %v4053 = vld [vmem:[%s4047 + $0x14] sm:$0xf]
        %v4054 = vld [vmem:[%s4047 + $0x18] sm:$0xf]
        %v4055 = vld [vmem:[%s4047 + $0x1c] sm:$0xf]
        %v4056 = vld [vmem:[%s4047 + $0x20] sm:$0xf]
        %v4057 = vld [vmem:[%s4047 + $0x24] sm:$0xf]
        %v4058 = vld [vmem:[%s4047 + $0x28] sm:$0xf]
        %v4059 = vld [vmem:[%s4047 + $0x2c] sm:$0xf]
        %v4060 = vld [vmem:[%s4047 + $0x30] sm:$0xf]
        %v4061 = vld [vmem:[%s4047 + $0x34] sm:$0xf]
        %v4062 = vld [vmem:[%s4047 + $0x38] sm:$0xf]
        %v4063 = vld [vmem:[%s4047 + $0x3c] sm:$0xf]
        %v4065 = vunpack.c.l.b16 %v3437
        %v4066 = vpack.c.b16 %v4065, %v4065
        %v4068 = vshrl.u32 %v3525, 16
        %v4070 = vshll.u32 %v3525, 16
        %v4072 = vrot.slane %v4070, 1
        %v4073 = vor.u32 %v4068, %v4072
        %v4075 = vshll.u32 %v3526, 16
        %v4077 = vrot.slane %v4075, 1
        %v4078 = vsel %vm494, %v4073, %v4077
        %v4079 = vshrl.u32 %v3526, 16
        %v4081 = vor.u32 %v4079, %v4077
        %v4083 = vshll.u32 %v3527, 16
        %v4085 = vrot.slane %v4083, 1
        %v4086 = vsel %vm494, %v4081, %v4085
        %v4087 = vshrl.u32 %v3527, 16
        %v4089 = vor.u32 %v4087, %v4085
        %v4091 = vshll.u32 %v3528, 16
        %v4093 = vrot.slane %v4091, 1
        %v4094 = vsel %vm494, %v4089, %v4093
        %v4095 = vshrl.u32 %v3528, 16
        %v4097 = vor.u32 %v4095, %v4093
        %v4099 = vshll.u32 %v3529, 16
        %v4101 = vrot.slane %v4099, 1
        %v4102 = vsel %vm494, %v4097, %v4101
        %v4103 = vshrl.u32 %v3529, 16
        %v4105 = vor.u32 %v4103, %v4101
        %v4107 = vshll.u32 %v3530, 16
        %v4109 = vrot.slane %v4107, 1
        %v4110 = vsel %vm494, %v4105, %v4109
        %v4111 = vshrl.u32 %v3530, 16
        %v4113 = vor.u32 %v4111, %v4109
        %v4115 = vshll.u32 %v3531, 16
        %v4117 = vrot.slane %v4115, 1
        %v4118 = vsel %vm494, %v4113, %v4117
        %v4119 = vshrl.u32 %v3531, 16
        %v4121 = vor.u32 %v4119, %v4117
        %v4123 = vshll.u32 %v3532, 16
        %v4125 = vrot.slane %v4123, 1
        %v4126 = vsel %vm494, %v4121, %v4125
        %v4127 = vshrl.u32 %v3532, 16
        %v4129 = vor.u32 %v4127, %v4125
        %v4131 = vshll.u32 %v3533, 16
        %v4133 = vrot.slane %v4131, 1
        %v4134 = vsel %vm494, %v4129, %v4133
        %v4135 = vshrl.u32 %v3533, 16
        %v4137 = vor.u32 %v4135, %v4133
        %v4139 = vshll.u32 %v3534, 16
        %v4141 = vrot.slane %v4139, 1
        %v4142 = vsel %vm494, %v4137, %v4141
        %v4143 = vshrl.u32 %v3534, 16
        %v4145 = vor.u32 %v4143, %v4141
        %v4147 = vshll.u32 %v3535, 16
        %v4149 = vrot.slane %v4147, 1
        %v4150 = vsel %vm494, %v4145, %v4149
        %v4151 = vshrl.u32 %v3535, 16
        %v4153 = vor.u32 %v4151, %v4149
        %v4155 = vshll.u32 %v3536, 16
        %v4157 = vrot.slane %v4155, 1
        %v4158 = vsel %vm494, %v4153, %v4157
        %v4159 = vshrl.u32 %v3536, 16
        %v4161 = vor.u32 %v4159, %v4157
        %v4163 = vshll.u32 %v4066, 16
        %v4165 = vrot.slane %v4163, 1
        %v4166 = vsel %vm494, %v4161, %v4165
        %v4195 = vunpack.c.l.b16 %v4048
        %v4196 = vunpack.c.l.b16 %v4049
        %v4197 = vunpack.c.l.b16 %v4050
        %v4198 = vunpack.c.l.b16 %v4051
        %v4199 = vunpack.c.l.b16 %v4052
        %v4200 = vunpack.c.l.b16 %v4053
        %v4201 = vunpack.c.l.b16 %v4054
        %v4202 = vunpack.c.l.b16 %v4055
        %v4203 = vunpack.c.l.b16 %v4056
        %v4204 = vunpack.c.l.b16 %v4057
        %v4205 = vunpack.c.l.b16 %v4058
        %v4206 = vunpack.c.l.b16 %v4059
        %v4207 = vunpack.c.l.b16 %v4060
        %v4208 = vunpack.c.l.b16 %v4061
        %v4209 = vunpack.c.l.b16 %v4062
        %v4210 = vunpack.c.l.b16 %v4063
        %v4211 = vpack.c.b16 %v4196, %v4195
        %v4212 = vpack.c.b16 %v4198, %v4197
        %v4213 = vpack.c.b16 %v4200, %v4199
        %v4214 = vpack.c.b16 %v4202, %v4201
        %v4215 = vpack.c.b16 %v4204, %v4203
        %v4216 = vpack.c.b16 %v4206, %v4205
        %v4217 = vpack.c.b16 %v4208, %v4207
        %v4218 = vpack.c.b16 %v4210, %v4209
        %4227 = vmatprep.subr.bf16.mxu0 0
        %4228 = vmatpush1.bf16.msra.mxu0 %v4211
        %4229 = vmatprep.subr.bf16.mxu0 0
        %4230 = vmatpush1.bf16.msra.mxu0 %v4212
        %4231 = vmatprep.subr.bf16.mxu0 0
        %4232 = vmatpush1.bf16.msra.mxu0 %v4213
        %4233 = vmatprep.subr.bf16.mxu0 0
        %4234 = vmatpush1.bf16.msra.mxu0 %v4214
        %4235 = vmatprep.subr.bf16.mxu0 0
        %4236 = vmatpush1.bf16.msra.mxu0 %v4215
        %4237 = vmatprep.subr.bf16.mxu0 0
        %4238 = vmatpush1.bf16.msra.mxu0 %v4216
        %4239 = vmatprep.subr.bf16.mxu0 0
        %4240 = vmatpush1.bf16.msra.mxu0 %v4217
        %4241 = vmatprep.subr.bf16.mxu0 0
        %4242 = vmatpush1.bf16.msra.mxu0 %v4218
        %4243 = vmatprep.subr.bf16.mxu0 0
        %4244 = vmatpush1.bf16.msra.mxu0 0
        %4245 = vmatprep.subr.bf16.mxu0 0
        %4246 = vmatpush1.bf16.msra.mxu0 0
        %4247 = vmatprep.subr.bf16.mxu0 0
        %4248 = vmatpush1.bf16.msra.mxu0 0
        %4249 = vmatprep.subr.bf16.mxu0 0
        %4250 = vmatpush1.bf16.msra.mxu0 0
        %4251 = vmatprep.subr.bf16.mxu0 0
        %4252 = vmatpush1.bf16.msra.mxu0 0
        %4253 = vmatprep.subr.bf16.mxu0 0
        %4254 = vmatpush1.bf16.msra.mxu0 0
        %4255 = vmatprep.subr.bf16.mxu0 0
        %4256 = vmatpush1.bf16.msra.mxu0 0
        %4257 = vmatprep.subr.bf16.mxu0 0
        %4258 = vmatpush1.bf16.msra.mxu0 0
        %4259 = vmatprep.mubr.bf16.mxu0 0
        %4260 = vmatmul.mubr.bf16.gmra.mrb[0].mxu0 %v4078
        %v4261 = vpop.f32.mrb[0].mxu0
        %v4262 = vadd.f32 0.0, %v4261
        %v4263 = vpop.f32.mrb[0].mxu0
        %v4264 = vpop.f32.mrb[0].mxu0
        %v4265 = vadd.f32 0.0, %v4264
        %v4266 = vpop.f32.mrb[0].mxu0
        %4267 = vmatprep.mubr.bf16.mxu0 0
        %4268 = vmatmul.mubr.bf16.gmra.mrb[0].mxu0 %v4086
        %v4269 = vpop.f32.mrb[0].mxu0
        %v4270 = vadd.f32 0.0, %v4269
        %v4271 = vpop.f32.mrb[0].mxu0
        %v4272 = vpop.f32.mrb[0].mxu0
        %v4273 = vadd.f32 0.0, %v4272
        %v4274 = vpop.f32.mrb[0].mxu0
        %4275 = vmatprep.mubr.bf16.mxu0 0
        %4276 = vmatmul.mubr.bf16.gmra.mrb[0].mxu0 %v4094
        %v4277 = vpop.f32.mrb[0].mxu0
        %v4278 = vadd.f32 0.0, %v4277
        %v4279 = vpop.f32.mrb[0].mxu0
        %v4280 = vpop.f32.mrb[0].mxu0
        %v4281 = vadd.f32 0.0, %v4280
        %v4282 = vpop.f32.mrb[0].mxu0
        %4283 = vmatprep.mubr.bf16.mxu0 0
        %4284 = vmatmul.mubr.bf16.gmra.mrb[0].mxu0 %v4102
        %v4285 = vpop.f32.mrb[0].mxu0
        %v4286 = vadd.f32 0.0, %v4285
        %v4287 = vpop.f32.mrb[0].mxu0
        %v4288 = vpop.f32.mrb[0].mxu0
        %v4289 = vadd.f32 0.0, %v4288
        %v4290 = vpop.f32.mrb[0].mxu0
        %4291 = vmatprep.mubr.bf16.mxu0 0
        %4292 = vmatmul.mubr.bf16.gmra.mrb[0].mxu0 %v4110
        %v4293 = vpop.f32.mrb[0].mxu0
        %v4294 = vadd.f32 0.0, %v4293
        %v4295 = vpop.f32.mrb[0].mxu0
        %v4296 = vpop.f32.mrb[0].mxu0
        %v4297 = vadd.f32 0.0, %v4296
        %v4298 = vpop.f32.mrb[0].mxu0
        %4299 = vmatprep.mubr.bf16.mxu0 0
        %4300 = vmatmul.mubr.bf16.gmra.mrb[0].mxu0 %v4118
        %v4301 = vpop.f32.mrb[0].mxu0
        %v4302 = vadd.f32 0.0, %v4301
        %v4303 = vpop.f32.mrb[0].mxu0
        %v4304 = vpop.f32.mrb[0].mxu0
        %v4305 = vadd.f32 0.0, %v4304
        %v4306 = vpop.f32.mrb[0].mxu0
        %4307 = vmatprep.mubr.bf16.mxu0 0
        %4308 = vmatmul.mubr.bf16.gmra.mrb[0].mxu0 %v4126
        %v4309 = vpop.f32.mrb[0].mxu0
        %v4310 = vadd.f32 0.0, %v4309
        %v4311 = vpop.f32.mrb[0].mxu0
        %v4312 = vpop.f32.mrb[0].mxu0
        %v4313 = vadd.f32 0.0, %v4312
        %v4314 = vpop.f32.mrb[0].mxu0
        %4315 = vmatprep.mubr.bf16.mxu0 0
        %4316 = vmatmul.mubr.bf16.gmra.mrb[0].mxu0 %v4134
        %v4317 = vpop.f32.mrb[0].mxu0
        %v4318 = vadd.f32 0.0, %v4317
        %v4319 = vpop.f32.mrb[0].mxu0
        %v4320 = vpop.f32.mrb[0].mxu0
        %v4321 = vadd.f32 0.0, %v4320
        %v4322 = vpop.f32.mrb[0].mxu0
        %4323 = vmatprep.mubr.bf16.mxu0 0
        %4324 = vmatmul.mubr.bf16.gmra.mrb[0].mxu0 %v4142
        %v4325 = vpop.f32.mrb[0].mxu0
        %v4326 = vadd.f32 0.0, %v4325
        %v4327 = vpop.f32.mrb[0].mxu0
        %v4328 = vpop.f32.mrb[0].mxu0
        %v4329 = vadd.f32 0.0, %v4328
        %v4330 = vpop.f32.mrb[0].mxu0
        %4331 = vmatprep.mubr.bf16.mxu0 0
        %4332 = vmatmul.mubr.bf16.gmra.mrb[0].mxu0 %v4150
        %v4333 = vpop.f32.mrb[0].mxu0
        %v4334 = vadd.f32 0.0, %v4333
        %v4335 = vpop.f32.mrb[0].mxu0
        %v4336 = vpop.f32.mrb[0].mxu0
        %v4337 = vadd.f32 0.0, %v4336
        %v4338 = vpop.f32.mrb[0].mxu0
        %4339 = vmatprep.mubr.bf16.mxu0 0
        %4340 = vmatmul.mubr.bf16.gmra.mrb[0].mxu0 %v4158
        %v4341 = vpop.f32.mrb[0].mxu0
        %v4342 = vadd.f32 0.0, %v4341
        %v4343 = vpop.f32.mrb[0].mxu0
        %v4344 = vpop.f32.mrb[0].mxu0
        %v4345 = vadd.f32 0.0, %v4344
        %v4346 = vpop.f32.mrb[0].mxu0
        %4347 = vmatprep.mubr.bf16.mxu0 0
        %4348 = vmatmul.mubr.bf16.gmra.mrb[0].mxu0 %v4166
        %v4349 = vpop.f32.mrb[0].mxu0
        %v4350 = vadd.f32 0.0, %v4349
        %v4351 = vpop.f32.mrb[0].mxu0
        %v4352 = vpop.f32.mrb[0].mxu0
        %v4353 = vadd.f32 0.0, %v4352
        %v4354 = vpop.f32.mrb[0].mxu0
        %4355 = vdwg.mxu0
        %v4356 = vadd.f32 %v3953, %v4262
        %v4357 = vadd.f32 %v3956, %v4265
        %v4358 = vadd.f32 %v3961, %v4270
        %v4359 = vadd.f32 %v3964, %v4273
        %v4360 = vadd.f32 %v3969, %v4278
        %v4361 = vadd.f32 %v3972, %v4281
        %v4362 = vadd.f32 %v3977, %v4286
        %v4363 = vadd.f32 %v3980, %v4289
        %v4364 = vadd.f32 %v3985, %v4294
        %v4365 = vadd.f32 %v3988, %v4297
        %v4366 = vadd.f32 %v3993, %v4302
        %v4367 = vadd.f32 %v3996, %v4305
        %v4368 = vadd.f32 %v4001, %v4310
        %v4369 = vadd.f32 %v4004, %v4313
        %v4370 = vadd.f32 %v4009, %v4318
        %v4371 = vadd.f32 %v4012, %v4321
        %v4372 = vadd.f32 %v4017, %v4326
        %v4373 = vadd.f32 %v4020, %v4329
        %v4374 = vadd.f32 %v4025, %v4334
        %v4375 = vadd.f32 %v4028, %v4337
        %v4376 = vadd.f32 %v4033, %v4342
        %v4377 = vadd.f32 %v4036, %v4345
        %v4378 = vadd.f32 %v4041, %v4350
        %v4379 = vadd.f32 %v4044, %v4353
        %s4380 = scalar_lea.vmem [#allocation8], 192
        %v4381 = vld [vmem:[%s4380] sm:$0xf]
        %v4382 = vld [vmem:[%s4380 + $0x4] sm:$0xf]
        %v4383 = vld [vmem:[%s4380 + $0x8] sm:$0xf]
        %v4384 = vld [vmem:[%s4380 + $0xc] sm:$0xf]
        %v4385 = vld [vmem:[%s4380 + $0x10] sm:$0xf]
        %v4386 = vld [vmem:[%s4380 + $0x14] sm:$0xf]
        %v4387 = vld [vmem:[%s4380 + $0x18] sm:$0xf]
        %v4388 = vld [vmem:[%s4380 + $0x1c] sm:$0xf]
        %v4389 = vld [vmem:[%s4380 + $0x20] sm:$0xf]
        %v4390 = vld [vmem:[%s4380 + $0x24] sm:$0xf]
        %v4391 = vld [vmem:[%s4380 + $0x28] sm:$0xf]
        %v4392 = vld [vmem:[%s4380 + $0x2c] sm:$0xf]
        %v4393 = vld [vmem:[%s4380 + $0x30] sm:$0xf]
        %v4394 = vld [vmem:[%s4380 + $0x34] sm:$0xf]
        %v4395 = vld [vmem:[%s4380 + $0x38] sm:$0xf]
        %v4396 = vld [vmem:[%s4380 + $0x3c] sm:$0xf]
        %v4399 = vunpack.c.l.b16 %v3438
        %v4400 = vunpack.c.l.b16 %v3439
        %v4401 = vpack.c.b16 %v4399, %v4065
        %v4402 = vpack.c.b16 %v4400, %v4400
        %v4403 = vrot.slane %v4079, 3
        %v4404 = vrot.slane %v4075, 4
        %v4405 = vor.u32 %v4403, %v4404
        %v4406 = vrot.slane %v4087, 3
        %v4407 = vrot.slane %v4083, 4
        %v4408 = vor.u32 %v4406, %v4407
        %v4409 = vsel %vm3741, %v4405, %v4408
        %v4410 = vrot.slane %v4095, 3
        %v4411 = vrot.slane %v4091, 4
        %v4412 = vor.u32 %v4410, %v4411
        %v4413 = vsel %vm3741, %v4408, %v4412
        %v4414 = vrot.slane %v4103, 3
        %v4415 = vrot.slane %v4099, 4
        %v4416 = vor.u32 %v4414, %v4415
        %v4417 = vsel %vm3741, %v4412, %v4416
        %v4418 = vrot.slane %v4111, 3
        %v4419 = vrot.slane %v4107, 4
        %v4420 = vor.u32 %v4418, %v4419
        %v4421 = vsel %vm3741, %v4416, %v4420
        %v4422 = vrot.slane %v4119, 3
        %v4423 = vrot.slane %v4115, 4
        %v4424 = vor.u32 %v4422, %v4423
        %v4425 = vsel %vm3741, %v4420, %v4424
        %v4426 = vrot.slane %v4127, 3
        %v4427 = vrot.slane %v4123, 4
        %v4428 = vor.u32 %v4426, %v4427
        %v4429 = vsel %vm3741, %v4424, %v4428
        %v4430 = vrot.slane %v4135, 3
        %v4431 = vrot.slane %v4131, 4
        %v4432 = vor.u32 %v4430, %v4431
        %v4433 = vsel %vm3741, %v4428, %v4432
        %v4434 = vrot.slane %v4143, 3
        %v4435 = vrot.slane %v4139, 4
        %v4436 = vor.u32 %v4434, %v4435
        %v4437 = vsel %vm3741, %v4432, %v4436
        %v4438 = vrot.slane %v4151, 3
        %v4439 = vrot.slane %v4147, 4
        %v4440 = vor.u32 %v4438, %v4439
        %v4441 = vsel %vm3741, %v4436, %v4440
        %v4442 = vrot.slane %v4159, 3
        %v4443 = vrot.slane %v4155, 4
        %v4444 = vor.u32 %v4442, %v4443
        %v4445 = vsel %vm3741, %v4440, %v4444
        %v4447 = vshrl.u32 %v4401, 16
        %v4449 = vrot.slane %v4447, 3
        %v4450 = vshll.u32 %v4401, 16
        %v4452 = vrot.slane %v4450, 4
        %v4453 = vor.u32 %v4449, %v4452
        %v4454 = vsel %vm3741, %v4444, %v4453
        %v4456 = vshrl.u32 %v4402, 16
        %v4458 = vrot.slane %v4456, 3
        %v4459 = vshll.u32 %v4402, 16
        %v4461 = vrot.slane %v4459, 4
        %v4462 = vor.u32 %v4458, %v4461
        %v4463 = vsel %vm3741, %v4453, %v4462
        %v4492 = vunpack.c.l.b16 %v4381
        %v4493 = vunpack.c.l.b16 %v4382
        %v4494 = vunpack.c.l.b16 %v4383
        %v4495 = vunpack.c.l.b16 %v4384
        %v4496 = vunpack.c.l.b16 %v4385
        %v4497 = vunpack.c.l.b16 %v4386
        %v4498 = vunpack.c.l.b16 %v4387
        %v4499 = vunpack.c.l.b16 %v4388
        %v4500 = vunpack.c.l.b16 %v4389
        %v4501 = vunpack.c.l.b16 %v4390
        %v4502 = vunpack.c.l.b16 %v4391
        %v4503 = vunpack.c.l.b16 %v4392
        %v4504 = vunpack.c.l.b16 %v4393
        %v4505 = vunpack.c.l.b16 %v4394
        %v4506 = vunpack.c.l.b16 %v4395
        %v4507 = vunpack.c.l.b16 %v4396
        %v4508 = vpack.c.b16 %v4493, %v4492
        %v4509 = vpack.c.b16 %v4495, %v4494
        %v4510 = vpack.c.b16 %v4497, %v4496
        %v4511 = vpack.c.b16 %v4499, %v4498
        %v4512 = vpack.c.b16 %v4501, %v4500
        %v4513 = vpack.c.b16 %v4503, %v4502
        %v4514 = vpack.c.b16 %v4505, %v4504
        %v4515 = vpack.c.b16 %v4507, %v4506
        %4524 = vmatprep.subr.bf16.mxu0 0
        %4525 = vmatpush1.bf16.msra.mxu0 %v4508
        %4526 = vmatprep.subr.bf16.mxu0 0
        %4527 = vmatpush1.bf16.msra.mxu0 %v4509
        %4528 = vmatprep.subr.bf16.mxu0 0
        %4529 = vmatpush1.bf16.msra.mxu0 %v4510
        %4530 = vmatprep.subr.bf16.mxu0 0
        %4531 = vmatpush1.bf16.msra.mxu0 %v4511
        %4532 = vmatprep.subr.bf16.mxu0 0
        %4533 = vmatpush1.bf16.msra.mxu0 %v4512
        %4534 = vmatprep.subr.bf16.mxu0 0
        %4535 = vmatpush1.bf16.msra.mxu0 %v4513
        %4536 = vmatprep.subr.bf16.mxu0 0
        %4537 = vmatpush1.bf16.msra.mxu0 %v4514
        %4538 = vmatprep.subr.bf16.mxu0 0
        %4539 = vmatpush1.bf16.msra.mxu0 %v4515
        %4540 = vmatprep.subr.bf16.mxu0 0
        %4541 = vmatpush1.bf16.msra.mxu0 0
        %4542 = vmatprep.subr.bf16.mxu0 0
        %4543 = vmatpush1.bf16.msra.mxu0 0
        %4544 = vmatprep.subr.bf16.mxu0 0
        %4545 = vmatpush1.bf16.msra.mxu0 0
        %4546 = vmatprep.subr.bf16.mxu0 0
        %4547 = vmatpush1.bf16.msra.mxu0 0
        %4548 = vmatprep.subr.bf16.mxu0 0
        %4549 = vmatpush1.bf16.msra.mxu0 0
        %4550 = vmatprep.subr.bf16.mxu0 0
        %4551 = vmatpush1.bf16.msra.mxu0 0
        %4552 = vmatprep.subr.bf16.mxu0 0
        %4553 = vmatpush1.bf16.msra.mxu0 0
        %4554 = vmatprep.subr.bf16.mxu0 0
        %4555 = vmatpush1.bf16.msra.mxu0 0
        %4556 = vmatprep.mubr.bf16.mxu0 0
        %4557 = vmatmul.mubr.bf16.gmra.mrb[0].mxu0 %v4409
        %v4558 = vpop.f32.mrb[0].mxu0
        %v4559 = vadd.f32 0.0, %v4558
        %v4560 = vpop.f32.mrb[0].mxu0
        %v4561 = vpop.f32.mrb[0].mxu0
        %v4562 = vadd.f32 0.0, %v4561
        %v4563 = vpop.f32.mrb[0].mxu0
        %4564 = vmatprep.mubr.bf16.mxu0 0
        %4565 = vmatmul.mubr.bf16.gmra.mrb[0].mxu0 %v4413
        %v4566 = vpop.f32.mrb[0].mxu0
        %v4567 = vadd.f32 0.0, %v4566
        %v4568 = vpop.f32.mrb[0].mxu0
        %v4569 = vpop.f32.mrb[0].mxu0
        %v4570 = vadd.f32 0.0, %v4569
        %v4571 = vpop.f32.mrb[0].mxu0
        %4572 = vmatprep.mubr.bf16.mxu0 0
        %4573 = vmatmul.mubr.bf16.gmra.mrb[0].mxu0 %v4417
        %v4574 = vpop.f32.mrb[0].mxu0
        %v4575 = vadd.f32 0.0, %v4574
        %v4576 = vpop.f32.mrb[0].mxu0
        %v4577 = vpop.f32.mrb[0].mxu0
        %v4578 = vadd.f32 0.0, %v4577
        %v4579 = vpop.f32.mrb[0].mxu0
        %4580 = vmatprep.mubr.bf16.mxu0 0
        %4581 = vmatmul.mubr.bf16.gmra.mrb[0].mxu0 %v4421
        %v4582 = vpop.f32.mrb[0].mxu0
        %v4583 = vadd.f32 0.0, %v4582
        %v4584 = vpop.f32.mrb[0].mxu0
        %v4585 = vpop.f32.mrb[0].mxu0
        %v4586 = vadd.f32 0.0, %v4585
        %v4587 = vpop.f32.mrb[0].mxu0
        %4588 = vmatprep.mubr.bf16.mxu0 0
        %4589 = vmatmul.mubr.bf16.gmra.mrb[0].mxu0 %v4425
        %v4590 = vpop.f32.mrb[0].mxu0
        %v4591 = vadd.f32 0.0, %v4590
        %v4592 = vpop.f32.mrb[0].mxu0
        %v4593 = vpop.f32.mrb[0].mxu0
        %v4594 = vadd.f32 0.0, %v4593
        %v4595 = vpop.f32.mrb[0].mxu0
        %4596 = vmatprep.mubr.bf16.mxu0 0
        %4597 = vmatmul.mubr.bf16.gmra.mrb[0].mxu0 %v4429
        %v4598 = vpop.f32.mrb[0].mxu0
        %v4599 = vadd.f32 0.0, %v4598
        %v4600 = vpop.f32.mrb[0].mxu0
        %v4601 = vpop.f32.mrb[0].mxu0
        %v4602 = vadd.f32 0.0, %v4601
        %v4603 = vpop.f32.mrb[0].mxu0
        %4604 = vmatprep.mubr.bf16.mxu0 0
        %4605 = vmatmul.mubr.bf16.gmra.mrb[0].mxu0 %v4433
        %v4606 = vpop.f32.mrb[0].mxu0
        %v4607 = vadd.f32 0.0, %v4606
        %v4608 = vpop.f32.mrb[0].mxu0
        %v4609 = vpop.f32.mrb[0].mxu0
        %v4610 = vadd.f32 0.0, %v4609
        %v4611 = vpop.f32.mrb[0].mxu0
        %4612 = vmatprep.mubr.bf16.mxu0 0
        %4613 = vmatmul.mubr.bf16.gmra.mrb[0].mxu0 %v4437
        %v4614 = vpop.f32.mrb[0].mxu0
        %v4615 = vadd.f32 0.0, %v4614
        %v4616 = vpop.f32.mrb[0].mxu0
        %v4617 = vpop.f32.mrb[0].mxu0
        %v4618 = vadd.f32 0.0, %v4617
        %v4619 = vpop.f32.mrb[0].mxu0
        %4620 = vmatprep.mubr.bf16.mxu0 0
        %4621 = vmatmul.mubr.bf16.gmra.mrb[0].mxu0 %v4441
        %v4622 = vpop.f32.mrb[0].mxu0
        %v4623 = vadd.f32 0.0, %v4622
        %v4624 = vpop.f32.mrb[0].mxu0
        %v4625 = vpop.f32.mrb[0].mxu0
        %v4626 = vadd.f32 0.0, %v4625
        %v4627 = vpop.f32.mrb[0].mxu0
        %4628 = vmatprep.mubr.bf16.mxu0 0
        %4629 = vmatmul.mubr.bf16.gmra.mrb[0].mxu0 %v4445
        %v4630 = vpop.f32.mrb[0].mxu0
        %v4631 = vadd.f32 0.0, %v4630
        %v4632 = vpop.f32.mrb[0].mxu0
        %v4633 = vpop.f32.mrb[0].mxu0
        %v4634 = vadd.f32 0.0, %v4633
        %v4635 = vpop.f32.mrb[0].mxu0
        %4636 = vmatprep.mubr.bf16.mxu0 0
        %4637 = vmatmul.mubr.bf16.gmra.mrb[0].mxu0 %v4454
        %v4638 = vpop.f32.mrb[0].mxu0
        %v4639 = vadd.f32 0.0, %v4638
        %v4640 = vpop.f32.mrb[0].mxu0
        %v4641 = vpop.f32.mrb[0].mxu0
        %v4642 = vadd.f32 0.0, %v4641
        %v4643 = vpop.f32.mrb[0].mxu0
        %4644 = vmatprep.mubr.bf16.mxu0 0
        %4645 = vmatmul.mubr.bf16.gmra.mrb[0].mxu0 %v4463
        %v4646 = vpop.f32.mrb[0].mxu0
        %v4647 = vadd.f32 0.0, %v4646
        %v4648 = vpop.f32.mrb[0].mxu0
        %v4649 = vpop.f32.mrb[0].mxu0
        %v4650 = vadd.f32 0.0, %v4649
        %v4651 = vpop.f32.mrb[0].mxu0
        %4652 = vdwg.mxu0
        %v4653 = vadd.f32 %v4356, %v4559
        %v4654 = vadd.f32 %v4357, %v4562
        %v4655 = vadd.f32 %v4358, %v4567
        %v4656 = vadd.f32 %v4359, %v4570
        %v4657 = vadd.f32 %v4360, %v4575
        %v4658 = vadd.f32 %v4361, %v4578
        %v4659 = vadd.f32 %v4362, %v4583
        %v4660 = vadd.f32 %v4363, %v4586
        %v4661 = vadd.f32 %v4364, %v4591
        %v4662 = vadd.f32 %v4365, %v4594
        %v4663 = vadd.f32 %v4366, %v4599
        %v4664 = vadd.f32 %v4367, %v4602
        %v4665 = vadd.f32 %v4368, %v4607
        %v4666 = vadd.f32 %v4369, %v4610
        %v4667 = vadd.f32 %v4370, %v4615
        %v4668 = vadd.f32 %v4371, %v4618
        %v4669 = vadd.f32 %v4372, %v4623
        %v4670 = vadd.f32 %v4373, %v4626
        %v4671 = vadd.f32 %v4374, %v4631
        %v4672 = vadd.f32 %v4375, %v4634
        %v4673 = vadd.f32 %v4376, %v4639
        %v4674 = vadd.f32 %v4377, %v4642
        %v4675 = vadd.f32 %v4378, %v4647
        %v4676 = vadd.f32 %v4379, %v4650
        %s4677 = scalar_lea.vmem [#allocation8], 256
        %v4678 = vld [vmem:[%s4677] sm:$0xf]
        %v4679 = vld [vmem:[%s4677 + $0x4] sm:$0xf]
        %v4680 = vld [vmem:[%s4677 + $0x8] sm:$0xf]
        %v4681 = vld [vmem:[%s4677 + $0xc] sm:$0xf]
        %v4682 = vld [vmem:[%s4677 + $0x10] sm:$0xf]
        %v4683 = vld [vmem:[%s4677 + $0x14] sm:$0xf]
        %v4684 = vld [vmem:[%s4677 + $0x18] sm:$0xf]
        %v4685 = vld [vmem:[%s4677 + $0x1c] sm:$0xf]
        %v4686 = vld [vmem:[%s4677 + $0x20] sm:$0xf]
        %v4687 = vld [vmem:[%s4677 + $0x24] sm:$0xf]
        %v4688 = vld [vmem:[%s4677 + $0x28] sm:$0xf]
        %v4689 = vld [vmem:[%s4677 + $0x2c] sm:$0xf]
        %v4690 = vld [vmem:[%s4677 + $0x30] sm:$0xf]
        %v4691 = vld [vmem:[%s4677 + $0x34] sm:$0xf]
        %v4692 = vld [vmem:[%s4677 + $0x38] sm:$0xf]
        %v4693 = vld [vmem:[%s4677 + $0x3c] sm:$0xf]
        %v4694 = vpack.c.b16 %v4065, %v3524
        %v4695 = vpack.c.b16 %v4400, %v4399
        %v4724 = vunpack.c.l.b16 %v4678
        %v4725 = vunpack.c.l.b16 %v4679
        %v4726 = vunpack.c.l.b16 %v4680
        %v4727 = vunpack.c.l.b16 %v4681
        %v4728 = vunpack.c.l.b16 %v4682
        %v4729 = vunpack.c.l.b16 %v4683
        %v4730 = vunpack.c.l.b16 %v4684
        %v4731 = vunpack.c.l.b16 %v4685
        %v4732 = vunpack.c.l.b16 %v4686
        %v4733 = vunpack.c.l.b16 %v4687
        %v4734 = vunpack.c.l.b16 %v4688
        %v4735 = vunpack.c.l.b16 %v4689
        %v4736 = vunpack.c.l.b16 %v4690
        %v4737 = vunpack.c.l.b16 %v4691
        %v4738 = vunpack.c.l.b16 %v4692
        %v4739 = vunpack.c.l.b16 %v4693
        %v4740 = vpack.c.b16 %v4725, %v4724
        %v4741 = vpack.c.b16 %v4727, %v4726
        %v4742 = vpack.c.b16 %v4729, %v4728
        %v4743 = vpack.c.b16 %v4731, %v4730
        %v4744 = vpack.c.b16 %v4733, %v4732
        %v4745 = vpack.c.b16 %v4735, %v4734
        %v4746 = vpack.c.b16 %v4737, %v4736
        %v4747 = vpack.c.b16 %v4739, %v4738
        %4756 = vmatprep.subr.bf16.mxu0 0
        %4757 = vmatpush1.bf16.msra.mxu0 %v4740
        %4758 = vmatprep.subr.bf16.mxu0 0
        %4759 = vmatpush1.bf16.msra.mxu0 %v4741
        %4760 = vmatprep.subr.bf16.mxu0 0
        %4761 = vmatpush1.bf16.msra.mxu0 %v4742
        %4762 = vmatprep.subr.bf16.mxu0 0
        %4763 = vmatpush1.bf16.msra.mxu0 %v4743
        %4764 = vmatprep.subr.bf16.mxu0 0
        %4765 = vmatpush1.bf16.msra.mxu0 %v4744
        %4766 = vmatprep.subr.bf16.mxu0 0
        %4767 = vmatpush1.bf16.msra.mxu0 %v4745
        %4768 = vmatprep.subr.bf16.mxu0 0
        %4769 = vmatpush1.bf16.msra.mxu0 %v4746
        %4770 = vmatprep.subr.bf16.mxu0 0
        %4771 = vmatpush1.bf16.msra.mxu0 %v4747
        %4772 = vmatprep.subr.bf16.mxu0 0
        %4773 = vmatpush1.bf16.msra.mxu0 0
        %4774 = vmatprep.subr.bf16.mxu0 0
        %4775 = vmatpush1.bf16.msra.mxu0 0
        %4776 = vmatprep.subr.bf16.mxu0 0
        %4777 = vmatpush1.bf16.msra.mxu0 0
        %4778 = vmatprep.subr.bf16.mxu0 0
        %4779 = vmatpush1.bf16.msra.mxu0 0
        %4780 = vmatprep.subr.bf16.mxu0 0
        %4781 = vmatpush1.bf16.msra.mxu0 0
        %4782 = vmatprep.subr.bf16.mxu0 0
        %4783 = vmatpush1.bf16.msra.mxu0 0
        %4784 = vmatprep.subr.bf16.mxu0 0
        %4785 = vmatpush1.bf16.msra.mxu0 0
        %4786 = vmatprep.subr.bf16.mxu0 0
        %4787 = vmatpush1.bf16.msra.mxu0 0
        %4788 = vmatprep.mubr.bf16.mxu0 0
        %4789 = vmatmul.mubr.bf16.gmra.mrb[0].mxu0 %v3730
        %v4790 = vpop.f32.mrb[0].mxu0
        %v4791 = vadd.f32 0.0, %v4790
        %v4792 = vpop.f32.mrb[0].mxu0
        %v4793 = vpop.f32.mrb[0].mxu0
        %v4794 = vadd.f32 0.0, %v4793
        %v4795 = vpop.f32.mrb[0].mxu0
        %4796 = vmatprep.mubr.bf16.mxu0 0
        %4797 = vmatmul.mubr.bf16.gmra.mrb[0].mxu0 %v3731
        %v4798 = vpop.f32.mrb[0].mxu0
        %v4799 = vadd.f32 0.0, %v4798
        %v4800 = vpop.f32.mrb[0].mxu0
        %v4801 = vpop.f32.mrb[0].mxu0
        %v4802 = vadd.f32 0.0, %v4801
        %v4803 = vpop.f32.mrb[0].mxu0
        %4804 = vmatprep.mubr.bf16.mxu0 0
        %4805 = vmatmul.mubr.bf16.gmra.mrb[0].mxu0 %v3732
        %v4806 = vpop.f32.mrb[0].mxu0
        %v4807 = vadd.f32 0.0, %v4806
        %v4808 = vpop.f32.mrb[0].mxu0
        %v4809 = vpop.f32.mrb[0].mxu0
        %v4810 = vadd.f32 0.0, %v4809
        %v4811 = vpop.f32.mrb[0].mxu0
        %4812 = vmatprep.mubr.bf16.mxu0 0
        %4813 = vmatmul.mubr.bf16.gmra.mrb[0].mxu0 %v3733
        %v4814 = vpop.f32.mrb[0].mxu0
        %v4815 = vadd.f32 0.0, %v4814
        %v4816 = vpop.f32.mrb[0].mxu0
        %v4817 = vpop.f32.mrb[0].mxu0
        %v4818 = vadd.f32 0.0, %v4817
        %v4819 = vpop.f32.mrb[0].mxu0
        %4820 = vmatprep.mubr.bf16.mxu0 0
        %4821 = vmatmul.mubr.bf16.gmra.mrb[0].mxu0 %v3734
        %v4822 = vpop.f32.mrb[0].mxu0
        %v4823 = vadd.f32 0.0, %v4822
        %v4824 = vpop.f32.mrb[0].mxu0
        %v4825 = vpop.f32.mrb[0].mxu0
        %v4826 = vadd.f32 0.0, %v4825
        %v4827 = vpop.f32.mrb[0].mxu0
        %4828 = vmatprep.mubr.bf16.mxu0 0
        %4829 = vmatmul.mubr.bf16.gmra.mrb[0].mxu0 %v3735
        %v4830 = vpop.f32.mrb[0].mxu0
        %v4831 = vadd.f32 0.0, %v4830
        %v4832 = vpop.f32.mrb[0].mxu0
        %v4833 = vpop.f32.mrb[0].mxu0
        %v4834 = vadd.f32 0.0, %v4833
        %v4835 = vpop.f32.mrb[0].mxu0
        %4836 = vmatprep.mubr.bf16.mxu0 0
        %4837 = vmatmul.mubr.bf16.gmra.mrb[0].mxu0 %v3736
        %v4838 = vpop.f32.mrb[0].mxu0
        %v4839 = vadd.f32 0.0, %v4838
        %v4840 = vpop.f32.mrb[0].mxu0
        %v4841 = vpop.f32.mrb[0].mxu0
        %v4842 = vadd.f32 0.0, %v4841
        %v4843 = vpop.f32.mrb[0].mxu0
        %4844 = vmatprep.mubr.bf16.mxu0 0
        %4845 = vmatmul.mubr.bf16.gmra.mrb[0].mxu0 %v3737
        %v4846 = vpop.f32.mrb[0].mxu0
        %v4847 = vadd.f32 0.0, %v4846
        %v4848 = vpop.f32.mrb[0].mxu0
        %v4849 = vpop.f32.mrb[0].mxu0
        %v4850 = vadd.f32 0.0, %v4849
        %v4851 = vpop.f32.mrb[0].mxu0
        %4852 = vmatprep.mubr.bf16.mxu0 0
        %4853 = vmatmul.mubr.bf16.gmra.mrb[0].mxu0 %v3738
        %v4854 = vpop.f32.mrb[0].mxu0
        %v4855 = vadd.f32 0.0, %v4854
        %v4856 = vpop.f32.mrb[0].mxu0
        %v4857 = vpop.f32.mrb[0].mxu0
        %v4858 = vadd.f32 0.0, %v4857
        %v4859 = vpop.f32.mrb[0].mxu0
        %4860 = vmatprep.mubr.bf16.mxu0 0
        %4861 = vmatmul.mubr.bf16.gmra.mrb[0].mxu0 %v3739
        %v4862 = vpop.f32.mrb[0].mxu0
        %v4863 = vadd.f32 0.0, %v4862
        %v4864 = vpop.f32.mrb[0].mxu0
        %v4865 = vpop.f32.mrb[0].mxu0
        %v4866 = vadd.f32 0.0, %v4865
        %v4867 = vpop.f32.mrb[0].mxu0
        %4868 = vmatprep.mubr.bf16.mxu0 0
        %4869 = vmatmul.mubr.bf16.gmra.mrb[0].mxu0 %v4694
        %v4870 = vpop.f32.mrb[0].mxu0
        %v4871 = vadd.f32 0.0, %v4870
        %v4872 = vpop.f32.mrb[0].mxu0
        %v4873 = vpop.f32.mrb[0].mxu0
        %v4874 = vadd.f32 0.0, %v4873
        %v4875 = vpop.f32.mrb[0].mxu0
        %4876 = vmatprep.mubr.bf16.mxu0 0
        %4877 = vmatmul.mubr.bf16.gmra.mrb[0].mxu0 %v4695
        %v4878 = vpop.f32.mrb[0].mxu0
        %v4879 = vadd.f32 0.0, %v4878
        %v4880 = vpop.f32.mrb[0].mxu0
        %v4881 = vpop.f32.mrb[0].mxu0
        %v4882 = vadd.f32 0.0, %v4881
        %v4883 = vpop.f32.mrb[0].mxu0
        %4884 = vdwg.mxu0
        %v4885 = vadd.f32 %v4653, %v4791
        %v4886 = vadd.f32 %v4654, %v4794
        %v4887 = vadd.f32 %v4655, %v4799
        %v4888 = vadd.f32 %v4656, %v4802
        %v4889 = vadd.f32 %v4657, %v4807
        %v4890 = vadd.f32 %v4658, %v4810
        %v4891 = vadd.f32 %v4659, %v4815
        %v4892 = vadd.f32 %v4660, %v4818
        %v4893 = vadd.f32 %v4661, %v4823
        %v4894 = vadd.f32 %v4662, %v4826
        %v4895 = vadd.f32 %v4663, %v4831
        %v4896 = vadd.f32 %v4664, %v4834
        %v4897 = vadd.f32 %v4665, %v4839
        %v4898 = vadd.f32 %v4666, %v4842
        %v4899 = vadd.f32 %v4667, %v4847
        %v4900 = vadd.f32 %v4668, %v4850
        %v4901 = vadd.f32 %v4669, %v4855
        %v4902 = vadd.f32 %v4670, %v4858
        %v4903 = vadd.f32 %v4671, %v4863
        %v4904 = vadd.f32 %v4672, %v4866
        %v4905 = vadd.f32 %v4673, %v4871
        %v4906 = vadd.f32 %v4674, %v4874
        %v4907 = vadd.f32 %v4675, %v4879
        %v4908 = vadd.f32 %v4676, %v4882
        %s4909 = scalar_lea.vmem [#allocation8], 320
        %v4910 = vld [vmem:[%s4909] sm:$0xf]
        %v4911 = vld [vmem:[%s4909 + $0x4] sm:$0xf]
        %v4912 = vld [vmem:[%s4909 + $0x8] sm:$0xf]
        %v4913 = vld [vmem:[%s4909 + $0xc] sm:$0xf]
        %v4914 = vld [vmem:[%s4909 + $0x10] sm:$0xf]
        %v4915 = vld [vmem:[%s4909 + $0x14] sm:$0xf]
        %v4916 = vld [vmem:[%s4909 + $0x18] sm:$0xf]
        %v4917 = vld [vmem:[%s4909 + $0x1c] sm:$0xf]
        %v4918 = vld [vmem:[%s4909 + $0x20] sm:$0xf]
        %v4919 = vld [vmem:[%s4909 + $0x24] sm:$0xf]
        %v4920 = vld [vmem:[%s4909 + $0x28] sm:$0xf]
        %v4921 = vld [vmem:[%s4909 + $0x2c] sm:$0xf]
        %v4922 = vld [vmem:[%s4909 + $0x30] sm:$0xf]
        %v4923 = vld [vmem:[%s4909 + $0x34] sm:$0xf]
        %v4924 = vld [vmem:[%s4909 + $0x38] sm:$0xf]
        %v4925 = vld [vmem:[%s4909 + $0x3c] sm:$0xf]
        %v4927 = vunpack.c.l.b16 %v3440
        %v4928 = vpack.c.b16 %v4927, %v4927
        %v4929 = vrot.slane %v3763, 1
        %v4930 = vor.u32 %v3760, %v4929
        %v4931 = vrot.slane %v3772, 1
        %v4932 = vsel %vm494, %v4930, %v4931
        %v4933 = vor.u32 %v3769, %v4931
        %v4934 = vrot.slane %v3781, 1
        %v4935 = vsel %vm494, %v4933, %v4934
        %v4936 = vor.u32 %v3778, %v4934
        %v4937 = vrot.slane %v3790, 1
        %v4938 = vsel %vm494, %v4936, %v4937
        %v4939 = vor.u32 %v3787, %v4937
        %v4940 = vrot.slane %v3799, 1
        %v4941 = vsel %vm494, %v4939, %v4940
        %v4942 = vor.u32 %v3796, %v4940
        %v4943 = vrot.slane %v3808, 1
        %v4944 = vsel %vm494, %v4942, %v4943
        %v4945 = vor.u32 %v3805, %v4943
        %v4946 = vrot.slane %v3817, 1
        %v4947 = vsel %vm494, %v4945, %v4946
        %v4948 = vor.u32 %v3814, %v4946
        %v4949 = vrot.slane %v3826, 1
        %v4950 = vsel %vm494, %v4948, %v4949
        %v4951 = vor.u32 %v3823, %v4949
        %v4952 = vrot.slane %v3835, 1
        %v4953 = vsel %vm494, %v4951, %v4952
        %v4954 = vor.u32 %v3832, %v4952
        %v4955 = vrot.slane %v3844, 1
        %v4956 = vsel %vm494, %v4954, %v4955
        %v4957 = vor.u32 %v3841, %v4955
        %v4959 = vshll.u32 %v4694, 16
        %v4961 = vrot.slane %v4959, 1
        %v4962 = vsel %vm494, %v4957, %v4961
        %v4963 = vshrl.u32 %v4694, 16
        %v4965 = vor.u32 %v4963, %v4961
        %v4967 = vshll.u32 %v4695, 16
        %v4969 = vrot.slane %v4967, 1
        %v4970 = vsel %vm494, %v4965, %v4969
        %v4971 = vshrl.u32 %v4695, 16
        %v4973 = vor.u32 %v4971, %v4969
        %v4975 = vshll.u32 %v4928, 16
        %v4977 = vrot.slane %v4975, 1
        %v4978 = vsel %vm494, %v4973, %v4977
        %v5007 = vunpack.c.l.b16 %v4910
        %v5008 = vunpack.c.l.b16 %v4911
        %v5009 = vunpack.c.l.b16 %v4912
        %v5010 = vunpack.c.l.b16 %v4913
        %v5011 = vunpack.c.l.b16 %v4914
        %v5012 = vunpack.c.l.b16 %v4915
        %v5013 = vunpack.c.l.b16 %v4916
        %v5014 = vunpack.c.l.b16 %v4917
        %v5015 = vunpack.c.l.b16 %v4918
        %v5016 = vunpack.c.l.b16 %v4919
        %v5017 = vunpack.c.l.b16 %v4920
        %v5018 = vunpack.c.l.b16 %v4921
        %v5019 = vunpack.c.l.b16 %v4922
        %v5020 = vunpack.c.l.b16 %v4923
        %v5021 = vunpack.c.l.b16 %v4924
        %v5022 = vunpack.c.l.b16 %v4925
        %v5023 = vpack.c.b16 %v5008, %v5007
        %v5024 = vpack.c.b16 %v5010, %v5009
        %v5025 = vpack.c.b16 %v5012, %v5011
        %v5026 = vpack.c.b16 %v5014, %v5013
        %v5027 = vpack.c.b16 %v5016, %v5015
        %v5028 = vpack.c.b16 %v5018, %v5017
        %v5029 = vpack.c.b16 %v5020, %v5019
        %v5030 = vpack.c.b16 %v5022, %v5021
        %5039 = vmatprep.subr.bf16.mxu0 0
        %5040 = vmatpush1.bf16.msra.mxu0 %v5023
        %5041 = vmatprep.subr.bf16.mxu0 0
        %5042 = vmatpush1.bf16.msra.mxu0 %v5024
        %5043 = vmatprep.subr.bf16.mxu0 0
        %5044 = vmatpush1.bf16.msra.mxu0 %v5025
        %5045 = vmatprep.subr.bf16.mxu0 0
        %5046 = vmatpush1.bf16.msra.mxu0 %v5026
        %5047 = vmatprep.subr.bf16.mxu0 0
        %5048 = vmatpush1.bf16.msra.mxu0 %v5027
        %5049 = vmatprep.subr.bf16.mxu0 0
        %5050 = vmatpush1.bf16.msra.mxu0 %v5028
        %5051 = vmatprep.subr.bf16.mxu0 0
        %5052 = vmatpush1.bf16.msra.mxu0 %v5029
        %5053 = vmatprep.subr.bf16.mxu0 0
        %5054 = vmatpush1.bf16.msra.mxu0 %v5030
        %5055 = vmatprep.subr.bf16.mxu0 0
        %5056 = vmatpush1.bf16.msra.mxu0 0
        %5057 = vmatprep.subr.bf16.mxu0 0
        %5058 = vmatpush1.bf16.msra.mxu0 0
        %5059 = vmatprep.subr.bf16.mxu0 0
        %5060 = vmatpush1.bf16.msra.mxu0 0
        %5061 = vmatprep.subr.bf16.mxu0 0
        %5062 = vmatpush1.bf16.msra.mxu0 0
        %5063 = vmatprep.subr.bf16.mxu0 0
        %5064 = vmatpush1.bf16.msra.mxu0 0
        %5065 = vmatprep.subr.bf16.mxu0 0
        %5066 = vmatpush1.bf16.msra.mxu0 0
        %5067 = vmatprep.subr.bf16.mxu0 0
        %5068 = vmatpush1.bf16.msra.mxu0 0
        %5069 = vmatprep.subr.bf16.mxu0 0
        %5070 = vmatpush1.bf16.msra.mxu0 0
        %5071 = vmatprep.mubr.bf16.mxu0 0
        %5072 = vmatmul.mubr.bf16.gmra.mrb[0].mxu0 %v4932
        %v5073 = vpop.f32.mrb[0].mxu0
        %v5074 = vadd.f32 0.0, %v5073
        %v5075 = vpop.f32.mrb[0].mxu0
        %v5076 = vpop.f32.mrb[0].mxu0
        %v5077 = vadd.f32 0.0, %v5076
        %v5078 = vpop.f32.mrb[0].mxu0
        %5079 = vmatprep.mubr.bf16.mxu0 0
        %5080 = vmatmul.mubr.bf16.gmra.mrb[0].mxu0 %v4935
        %v5081 = vpop.f32.mrb[0].mxu0
        %v5082 = vadd.f32 0.0, %v5081
        %v5083 = vpop.f32.mrb[0].mxu0
        %v5084 = vpop.f32.mrb[0].mxu0
        %v5085 = vadd.f32 0.0, %v5084
        %v5086 = vpop.f32.mrb[0].mxu0
        %5087 = vmatprep.mubr.bf16.mxu0 0
        %5088 = vmatmul.mubr.bf16.gmra.mrb[0].mxu0 %v4938
        %v5089 = vpop.f32.mrb[0].mxu0
        %v5090 = vadd.f32 0.0, %v5089
        %v5091 = vpop.f32.mrb[0].mxu0
        %v5092 = vpop.f32.mrb[0].mxu0
        %v5093 = vadd.f32 0.0, %v5092
        %v5094 = vpop.f32.mrb[0].mxu0
        %5095 = vmatprep.mubr.bf16.mxu0 0
        %5096 = vmatmul.mubr.bf16.gmra.mrb[0].mxu0 %v4941
        %v5097 = vpop.f32.mrb[0].mxu0
        %v5098 = vadd.f32 0.0, %v5097
        %v5099 = vpop.f32.mrb[0].mxu0
        %v5100 = vpop.f32.mrb[0].mxu0
        %v5101 = vadd.f32 0.0, %v5100
        %v5102 = vpop.f32.mrb[0].mxu0
        %5103 = vmatprep.mubr.bf16.mxu0 0
        %5104 = vmatmul.mubr.bf16.gmra.mrb[0].mxu0 %v4944
        %v5105 = vpop.f32.mrb[0].mxu0
        %v5106 = vadd.f32 0.0, %v5105
        %v5107 = vpop.f32.mrb[0].mxu0
        %v5108 = vpop.f32.mrb[0].mxu0
        %v5109 = vadd.f32 0.0, %v5108
        %v5110 = vpop.f32.mrb[0].mxu0
        %5111 = vmatprep.mubr.bf16.mxu0 0
        %5112 = vmatmul.mubr.bf16.gmra.mrb[0].mxu0 %v4947
        %v5113 = vpop.f32.mrb[0].mxu0
        %v5114 = vadd.f32 0.0, %v5113
        %v5115 = vpop.f32.mrb[0].mxu0
        %v5116 = vpop.f32.mrb[0].mxu0
        %v5117 = vadd.f32 0.0, %v5116
        %v5118 = vpop.f32.mrb[0].mxu0
        %5119 = vmatprep.mubr.bf16.mxu0 0
        %5120 = vmatmul.mubr.bf16.gmra.mrb[0].mxu0 %v4950
        %v5121 = vpop.f32.mrb[0].mxu0
        %v5122 = vadd.f32 0.0, %v5121
        %v5123 = vpop.f32.mrb[0].mxu0
        %v5124 = vpop.f32.mrb[0].mxu0
        %v5125 = vadd.f32 0.0, %v5124
        %v5126 = vpop.f32.mrb[0].mxu0
        %5127 = vmatprep.mubr.bf16.mxu0 0
        %5128 = vmatmul.mubr.bf16.gmra.mrb[0].mxu0 %v4953
        %v5129 = vpop.f32.mrb[0].mxu0
        %v5130 = vadd.f32 0.0, %v5129
        %v5131 = vpop.f32.mrb[0].mxu0
        %v5132 = vpop.f32.mrb[0].mxu0
        %v5133 = vadd.f32 0.0, %v5132
        %v5134 = vpop.f32.mrb[0].mxu0
        %5135 = vmatprep.mubr.bf16.mxu0 0
        %5136 = vmatmul.mubr.bf16.gmra.mrb[0].mxu0 %v4956
        %v5137 = vpop.f32.mrb[0].mxu0
        %v5138 = vadd.f32 0.0, %v5137
        %v5139 = vpop.f32.mrb[0].mxu0
        %v5140 = vpop.f32.mrb[0].mxu0
        %v5141 = vadd.f32 0.0, %v5140
        %v5142 = vpop.f32.mrb[0].mxu0
        %5143 = vmatprep.mubr.bf16.mxu0 0
        %5144 = vmatmul.mubr.bf16.gmra.mrb[0].mxu0 %v4962
        %v5145 = vpop.f32.mrb[0].mxu0
        %v5146 = vadd.f32 0.0, %v5145
        %v5147 = vpop.f32.mrb[0].mxu0
        %v5148 = vpop.f32.mrb[0].mxu0
        %v5149 = vadd.f32 0.0, %v5148
        %v5150 = vpop.f32.mrb[0].mxu0
        %5151 = vmatprep.mubr.bf16.mxu0 0
        %5152 = vmatmul.mubr.bf16.gmra.mrb[0].mxu0 %v4970
        %v5153 = vpop.f32.mrb[0].mxu0
        %v5154 = vadd.f32 0.0, %v5153
        %v5155 = vpop.f32.mrb[0].mxu0
        %v5156 = vpop.f32.mrb[0].mxu0
        %v5157 = vadd.f32 0.0, %v5156
        %v5158 = vpop.f32.mrb[0].mxu0
        %5159 = vmatprep.mubr.bf16.mxu0 0
        %5160 = vmatmul.mubr.bf16.gmra.mrb[0].mxu0 %v4978
        %v5161 = vpop.f32.mrb[0].mxu0
        %v5162 = vadd.f32 0.0, %v5161
        %v5163 = vpop.f32.mrb[0].mxu0
        %v5164 = vpop.f32.mrb[0].mxu0
        %v5165 = vadd.f32 0.0, %v5164
        %v5166 = vpop.f32.mrb[0].mxu0
        %5167 = vdwg.mxu0
        %v5168 = vadd.f32 %v4885, %v5074
        %v5169 = vadd.f32 %v4886, %v5077
        %v5170 = vadd.f32 %v4887, %v5082
        %v5171 = vadd.f32 %v4888, %v5085
        %v5172 = vadd.f32 %v4889, %v5090
        %v5173 = vadd.f32 %v4890, %v5093
        %v5174 = vadd.f32 %v4891, %v5098
        %v5175 = vadd.f32 %v4892, %v5101
        %v5176 = vadd.f32 %v4893, %v5106
        %v5177 = vadd.f32 %v4894, %v5109
        %v5178 = vadd.f32 %v4895, %v5114
        %v5179 = vadd.f32 %v4896, %v5117
        %v5180 = vadd.f32 %v4897, %v5122
        %v5181 = vadd.f32 %v4898, %v5125
        %v5182 = vadd.f32 %v4899, %v5130
        %v5183 = vadd.f32 %v4900, %v5133
        %v5184 = vadd.f32 %v4901, %v5138
        %v5185 = vadd.f32 %v4902, %v5141
        %v5186 = vadd.f32 %v4903, %v5146
        %v5187 = vadd.f32 %v4904, %v5149
        %v5188 = vadd.f32 %v4905, %v5154
        %v5189 = vadd.f32 %v4906, %v5157
        %v5190 = vadd.f32 %v4907, %v5162
        %v5191 = vadd.f32 %v4908, %v5165
        %s5192 = scalar_lea.vmem [#allocation8], 384
        %v5193 = vld [vmem:[%s5192] sm:$0xf]
        %v5194 = vld [vmem:[%s5192 + $0x4] sm:$0xf]
        %v5195 = vld [vmem:[%s5192 + $0x8] sm:$0xf]
        %v5196 = vld [vmem:[%s5192 + $0xc] sm:$0xf]
        %v5197 = vld [vmem:[%s5192 + $0x10] sm:$0xf]
        %v5198 = vld [vmem:[%s5192 + $0x14] sm:$0xf]
        %v5199 = vld [vmem:[%s5192 + $0x18] sm:$0xf]
        %v5200 = vld [vmem:[%s5192 + $0x1c] sm:$0xf]
        %v5201 = vld [vmem:[%s5192 + $0x20] sm:$0xf]
        %v5202 = vld [vmem:[%s5192 + $0x24] sm:$0xf]
        %v5203 = vld [vmem:[%s5192 + $0x28] sm:$0xf]
        %v5204 = vld [vmem:[%s5192 + $0x2c] sm:$0xf]
        %v5205 = vld [vmem:[%s5192 + $0x30] sm:$0xf]
        %v5206 = vld [vmem:[%s5192 + $0x34] sm:$0xf]
        %v5207 = vld [vmem:[%s5192 + $0x38] sm:$0xf]
        %v5208 = vld [vmem:[%s5192 + $0x3c] sm:$0xf]
        %v5211 = vunpack.c.l.b16 %v3441
        %v5212 = vunpack.c.l.b16 %v3442
        %v5213 = vpack.c.b16 %v5211, %v4927
        %v5214 = vpack.c.b16 %v5212, %v5212
        %v5215 = vrot.slane %v4963, 3
        %v5216 = vrot.slane %v4959, 4
        %v5217 = vor.u32 %v5215, %v5216
        %v5218 = vsel %vm3741, %v3847, %v5217
        %v5219 = vrot.slane %v4971, 3
        %v5220 = vrot.slane %v4967, 4
        %v5221 = vor.u32 %v5219, %v5220
        %v5222 = vsel %vm3741, %v5217, %v5221
        %v5224 = vshrl.u32 %v5213, 16
        %v5226 = vrot.slane %v5224, 3
        %v5227 = vshll.u32 %v5213, 16
        %v5229 = vrot.slane %v5227, 4
        %v5230 = vor.u32 %v5226, %v5229
        %v5231 = vsel %vm3741, %v5221, %v5230
        %v5233 = vshrl.u32 %v5214, 16
        %v5235 = vrot.slane %v5233, 3
        %v5236 = vshll.u32 %v5214, 16
        %v5238 = vrot.slane %v5236, 4
        %v5239 = vor.u32 %v5235, %v5238
        %v5240 = vsel %vm3741, %v5230, %v5239
        %v5261 = vunpack.c.l.b16 %v5193
        %v5262 = vunpack.c.l.b16 %v5194
        %v5263 = vunpack.c.l.b16 %v5195
        %v5264 = vunpack.c.l.b16 %v5196
        %v5265 = vunpack.c.l.b16 %v5197
        %v5266 = vunpack.c.l.b16 %v5198
        %v5267 = vunpack.c.l.b16 %v5199
        %v5268 = vunpack.c.l.b16 %v5200
        %v5269 = vunpack.c.l.b16 %v5201
        %v5270 = vunpack.c.l.b16 %v5202
        %v5271 = vunpack.c.l.b16 %v5203
        %v5272 = vunpack.c.l.b16 %v5204
        %v5273 = vunpack.c.l.b16 %v5205
        %v5274 = vunpack.c.l.b16 %v5206
        %v5275 = vunpack.c.l.b16 %v5207
        %v5276 = vunpack.c.l.b16 %v5208
        %v5277 = vpack.c.b16 %v5262, %v5261
        %v5278 = vpack.c.b16 %v5264, %v5263
        %v5279 = vpack.c.b16 %v5266, %v5265
        %v5280 = vpack.c.b16 %v5268, %v5267
        %v5281 = vpack.c.b16 %v5270, %v5269
        %v5282 = vpack.c.b16 %v5272, %v5271
        %v5283 = vpack.c.b16 %v5274, %v5273
        %v5284 = vpack.c.b16 %v5276, %v5275
        %5293 = vmatprep.subr.bf16.mxu0 0
        %5294 = vmatpush1.bf16.msra.mxu0 %v5277
        %5295 = vmatprep.subr.bf16.mxu0 0
        %5296 = vmatpush1.bf16.msra.mxu0 %v5278
        %5297 = vmatprep.subr.bf16.mxu0 0
        %5298 = vmatpush1.bf16.msra.mxu0 %v5279
        %5299 = vmatprep.subr.bf16.mxu0 0
        %5300 = vmatpush1.bf16.msra.mxu0 %v5280
        %5301 = vmatprep.subr.bf16.mxu0 0
        %5302 = vmatpush1.bf16.msra.mxu0 %v5281
        %5303 = vmatprep.subr.bf16.mxu0 0
        %5304 = vmatpush1.bf16.msra.mxu0 %v5282
        %5305 = vmatprep.subr.bf16.mxu0 0
        %5306 = vmatpush1.bf16.msra.mxu0 %v5283
        %5307 = vmatprep.subr.bf16.mxu0 0
        %5308 = vmatpush1.bf16.msra.mxu0 %v5284
        %5309 = vmatprep.subr.bf16.mxu0 0
        %5310 = vmatpush1.bf16.msra.mxu0 0
        %5311 = vmatprep.subr.bf16.mxu0 0
        %5312 = vmatpush1.bf16.msra.mxu0 0
        %5313 = vmatprep.subr.bf16.mxu0 0
        %5314 = vmatpush1.bf16.msra.mxu0 0
        %5315 = vmatprep.subr.bf16.mxu0 0
        %5316 = vmatpush1.bf16.msra.mxu0 0
        %5317 = vmatprep.subr.bf16.mxu0 0
        %5318 = vmatpush1.bf16.msra.mxu0 0
        %5319 = vmatprep.subr.bf16.mxu0 0
        %5320 = vmatpush1.bf16.msra.mxu0 0
        %5321 = vmatprep.subr.bf16.mxu0 0
        %5322 = vmatpush1.bf16.msra.mxu0 0
        %5323 = vmatprep.subr.bf16.mxu0 0
        %5324 = vmatpush1.bf16.msra.mxu0 0
        %5325 = vmatprep.mubr.bf16.mxu0 0
        %5326 = vmatmul.mubr.bf16.gmra.mrb[0].mxu0 %v3785
        %v5327 = vpop.f32.mrb[0].mxu0
        %v5328 = vadd.f32 0.0, %v5327
        %v5329 = vpop.f32.mrb[0].mxu0
        %v5330 = vpop.f32.mrb[0].mxu0
        %v5331 = vadd.f32 0.0, %v5330
        %v5332 = vpop.f32.mrb[0].mxu0
        %5333 = vmatprep.mubr.bf16.mxu0 0
        %5334 = vmatmul.mubr.bf16.gmra.mrb[0].mxu0 %v3794
        %v5335 = vpop.f32.mrb[0].mxu0
        %v5336 = vadd.f32 0.0, %v5335
        %v5337 = vpop.f32.mrb[0].mxu0
        %v5338 = vpop.f32.mrb[0].mxu0
        %v5339 = vadd.f32 0.0, %v5338
        %v5340 = vpop.f32.mrb[0].mxu0
        %5341 = vmatprep.mubr.bf16.mxu0 0
        %5342 = vmatmul.mubr.bf16.gmra.mrb[0].mxu0 %v3803
        %v5343 = vpop.f32.mrb[0].mxu0
        %v5344 = vadd.f32 0.0, %v5343
        %v5345 = vpop.f32.mrb[0].mxu0
        %v5346 = vpop.f32.mrb[0].mxu0
        %v5347 = vadd.f32 0.0, %v5346
        %v5348 = vpop.f32.mrb[0].mxu0
        %5349 = vmatprep.mubr.bf16.mxu0 0
        %5350 = vmatmul.mubr.bf16.gmra.mrb[0].mxu0 %v3812
        %v5351 = vpop.f32.mrb[0].mxu0
        %v5352 = vadd.f32 0.0, %v5351
        %v5353 = vpop.f32.mrb[0].mxu0
        %v5354 = vpop.f32.mrb[0].mxu0
        %v5355 = vadd.f32 0.0, %v5354
        %v5356 = vpop.f32.mrb[0].mxu0
        %5357 = vmatprep.mubr.bf16.mxu0 0
        %5358 = vmatmul.mubr.bf16.gmra.mrb[0].mxu0 %v3821
        %v5359 = vpop.f32.mrb[0].mxu0
        %v5360 = vadd.f32 0.0, %v5359
        %v5361 = vpop.f32.mrb[0].mxu0
        %v5362 = vpop.f32.mrb[0].mxu0
        %v5363 = vadd.f32 0.0, %v5362
        %v5364 = vpop.f32.mrb[0].mxu0
        %5365 = vmatprep.mubr.bf16.mxu0 0
        %5366 = vmatmul.mubr.bf16.gmra.mrb[0].mxu0 %v3830
        %v5367 = vpop.f32.mrb[0].mxu0
        %v5368 = vadd.f32 0.0, %v5367
        %v5369 = vpop.f32.mrb[0].mxu0
        %v5370 = vpop.f32.mrb[0].mxu0
        %v5371 = vadd.f32 0.0, %v5370
        %v5372 = vpop.f32.mrb[0].mxu0
        %5373 = vmatprep.mubr.bf16.mxu0 0
        %5374 = vmatmul.mubr.bf16.gmra.mrb[0].mxu0 %v3839
        %v5375 = vpop.f32.mrb[0].mxu0
        %v5376 = vadd.f32 0.0, %v5375
        %v5377 = vpop.f32.mrb[0].mxu0
        %v5378 = vpop.f32.mrb[0].mxu0
        %v5379 = vadd.f32 0.0, %v5378
        %v5380 = vpop.f32.mrb[0].mxu0
        %5381 = vmatprep.mubr.bf16.mxu0 0
        %5382 = vmatmul.mubr.bf16.gmra.mrb[0].mxu0 %v3848
        %v5383 = vpop.f32.mrb[0].mxu0
        %v5384 = vadd.f32 0.0, %v5383
        %v5385 = vpop.f32.mrb[0].mxu0
        %v5386 = vpop.f32.mrb[0].mxu0
        %v5387 = vadd.f32 0.0, %v5386
        %v5388 = vpop.f32.mrb[0].mxu0
        %5389 = vmatprep.mubr.bf16.mxu0 0
        %5390 = vmatmul.mubr.bf16.gmra.mrb[0].mxu0 %v5218
        %v5391 = vpop.f32.mrb[0].mxu0
        %v5392 = vadd.f32 0.0, %v5391
        %v5393 = vpop.f32.mrb[0].mxu0
        %v5394 = vpop.f32.mrb[0].mxu0
        %v5395 = vadd.f32 0.0, %v5394
        %v5396 = vpop.f32.mrb[0].mxu0
        %5397 = vmatprep.mubr.bf16.mxu0 0
        %5398 = vmatmul.mubr.bf16.gmra.mrb[0].mxu0 %v5222
        %v5399 = vpop.f32.mrb[0].mxu0
        %v5400 = vadd.f32 0.0, %v5399
        %v5401 = vpop.f32.mrb[0].mxu0
        %v5402 = vpop.f32.mrb[0].mxu0
        %v5403 = vadd.f32 0.0, %v5402
        %v5404 = vpop.f32.mrb[0].mxu0
        %5405 = vmatprep.mubr.bf16.mxu0 0
        %5406 = vmatmul.mubr.bf16.gmra.mrb[0].mxu0 %v5231
        %v5407 = vpop.f32.mrb[0].mxu0
        %v5408 = vadd.f32 0.0, %v5407
        %v5409 = vpop.f32.mrb[0].mxu0
        %v5410 = vpop.f32.mrb[0].mxu0
        %v5411 = vadd.f32 0.0, %v5410
        %v5412 = vpop.f32.mrb[0].mxu0
        %5413 = vmatprep.mubr.bf16.mxu0 0
        %5414 = vmatmul.mubr.bf16.gmra.mrb[0].mxu0 %v5240
        %v5415 = vpop.f32.mrb[0].mxu0
        %v5416 = vadd.f32 0.0, %v5415
        %v5417 = vpop.f32.mrb[0].mxu0
        %v5418 = vpop.f32.mrb[0].mxu0
        %v5419 = vadd.f32 0.0, %v5418
        %v5420 = vpop.f32.mrb[0].mxu0
        %5421 = vdwg.mxu0
        %v5422 = vadd.f32 %v5168, %v5328
        %v5423 = vadd.f32 %v5169, %v5331
        %v5424 = vadd.f32 %v5170, %v5336
        %v5425 = vadd.f32 %v5171, %v5339
        %v5426 = vadd.f32 %v5172, %v5344
        %v5427 = vadd.f32 %v5173, %v5347
        %v5428 = vadd.f32 %v5174, %v5352
        %v5429 = vadd.f32 %v5175, %v5355
        %v5430 = vadd.f32 %v5176, %v5360
        %v5431 = vadd.f32 %v5177, %v5363
        %v5432 = vadd.f32 %v5178, %v5368
        %v5433 = vadd.f32 %v5179, %v5371
        %v5434 = vadd.f32 %v5180, %v5376
        %v5435 = vadd.f32 %v5181, %v5379
        %v5436 = vadd.f32 %v5182, %v5384
        %v5437 = vadd.f32 %v5183, %v5387
        %v5438 = vadd.f32 %v5184, %v5392
        %v5439 = vadd.f32 %v5185, %v5395
        %v5440 = vadd.f32 %v5186, %v5400
        %v5441 = vadd.f32 %v5187, %v5403
        %v5442 = vadd.f32 %v5188, %v5408
        %v5443 = vadd.f32 %v5189, %v5411
        %v5444 = vadd.f32 %v5190, %v5416
        %v5445 = vadd.f32 %v5191, %v5419
        %s5446 = scalar_lea.vmem [#allocation8], 448
        %v5447 = vld [vmem:[%s5446] sm:$0xf]
        %v5448 = vld [vmem:[%s5446 + $0x4] sm:$0xf]
        %v5449 = vld [vmem:[%s5446 + $0x8] sm:$0xf]
        %v5450 = vld [vmem:[%s5446 + $0xc] sm:$0xf]
        %v5451 = vld [vmem:[%s5446 + $0x10] sm:$0xf]
        %v5452 = vld [vmem:[%s5446 + $0x14] sm:$0xf]
        %v5453 = vld [vmem:[%s5446 + $0x18] sm:$0xf]
        %v5454 = vld [vmem:[%s5446 + $0x1c] sm:$0xf]
        %v5455 = vld [vmem:[%s5446 + $0x20] sm:$0xf]
        %v5456 = vld [vmem:[%s5446 + $0x24] sm:$0xf]
        %v5457 = vld [vmem:[%s5446 + $0x28] sm:$0xf]
        %v5458 = vld [vmem:[%s5446 + $0x2c] sm:$0xf]
        %v5459 = vld [vmem:[%s5446 + $0x30] sm:$0xf]
        %v5460 = vld [vmem:[%s5446 + $0x34] sm:$0xf]
        %v5461 = vld [vmem:[%s5446 + $0x38] sm:$0xf]
        %v5462 = vld [vmem:[%s5446 + $0x3c] sm:$0xf]
        %v5463 = vpack.c.b16 %v4927, %v4400
        %v5464 = vpack.c.b16 %v5212, %v5211
        %v5484 = vunpack.c.l.b16 %v5447
        %v5485 = vunpack.c.l.b16 %v5448
        %v5486 = vunpack.c.l.b16 %v5449
        %v5487 = vunpack.c.l.b16 %v5450
        %v5488 = vunpack.c.l.b16 %v5451
        %v5489 = vunpack.c.l.b16 %v5452
        %v5490 = vunpack.c.l.b16 %v5453
        %v5491 = vunpack.c.l.b16 %v5454
        %v5492 = vunpack.c.l.b16 %v5455
        %v5493 = vunpack.c.l.b16 %v5456
        %v5494 = vunpack.c.l.b16 %v5457
        %v5495 = vunpack.c.l.b16 %v5458
        %v5496 = vunpack.c.l.b16 %v5459
        %v5497 = vunpack.c.l.b16 %v5460
        %v5498 = vunpack.c.l.b16 %v5461
        %v5499 = vunpack.c.l.b16 %v5462
        %v5500 = vpack.c.b16 %v5485, %v5484
        %v5501 = vpack.c.b16 %v5487, %v5486
        %v5502 = vpack.c.b16 %v5489, %v5488
        %v5503 = vpack.c.b16 %v5491, %v5490
        %v5504 = vpack.c.b16 %v5493, %v5492
        %v5505 = vpack.c.b16 %v5495, %v5494
        %v5506 = vpack.c.b16 %v5497, %v5496
        %v5507 = vpack.c.b16 %v5499, %v5498
        %5516 = vmatprep.subr.bf16.mxu0 0
        %5517 = vmatpush1.bf16.msra.mxu0 %v5500
        %5518 = vmatprep.subr.bf16.mxu0 0
        %5519 = vmatpush1.bf16.msra.mxu0 %v5501
        %5520 = vmatprep.subr.bf16.mxu0 0
        %5521 = vmatpush1.bf16.msra.mxu0 %v5502
        %5522 = vmatprep.subr.bf16.mxu0 0
        %5523 = vmatpush1.bf16.msra.mxu0 %v5503
        %5524 = vmatprep.subr.bf16.mxu0 0
        %5525 = vmatpush1.bf16.msra.mxu0 %v5504
        %5526 = vmatprep.subr.bf16.mxu0 0
        %5527 = vmatpush1.bf16.msra.mxu0 %v5505
        %5528 = vmatprep.subr.bf16.mxu0 0
        %5529 = vmatpush1.bf16.msra.mxu0 %v5506
        %5530 = vmatprep.subr.bf16.mxu0 0
        %5531 = vmatpush1.bf16.msra.mxu0 %v5507
        %5532 = vmatprep.subr.bf16.mxu0 0
        %5533 = vmatpush1.bf16.msra.mxu0 0
        %5534 = vmatprep.subr.bf16.mxu0 0
        %5535 = vmatpush1.bf16.msra.mxu0 0
        %5536 = vmatprep.subr.bf16.mxu0 0
        %5537 = vmatpush1.bf16.msra.mxu0 0
        %5538 = vmatprep.subr.bf16.mxu0 0
        %5539 = vmatpush1.bf16.msra.mxu0 0
        %5540 = vmatprep.subr.bf16.mxu0 0
        %5541 = vmatpush1.bf16.msra.mxu0 0
        %5542 = vmatprep.subr.bf16.mxu0 0
        %5543 = vmatpush1.bf16.msra.mxu0 0
        %5544 = vmatprep.subr.bf16.mxu0 0
        %5545 = vmatpush1.bf16.msra.mxu0 0
        %5546 = vmatprep.subr.bf16.mxu0 0
        %5547 = vmatpush1.bf16.msra.mxu0 0
        %5548 = vmatprep.mubr.bf16.mxu0 0
        %5549 = vmatmul.mubr.bf16.gmra.mrb[0].mxu0 %v3528
        %v5550 = vpop.f32.mrb[0].mxu0
        %v5551 = vadd.f32 0.0, %v5550
        %v5552 = vpop.f32.mrb[0].mxu0
        %v5553 = vpop.f32.mrb[0].mxu0
        %v5554 = vadd.f32 0.0, %v5553
        %v5555 = vpop.f32.mrb[0].mxu0
        %5556 = vmatprep.mubr.bf16.mxu0 0
        %5557 = vmatmul.mubr.bf16.gmra.mrb[0].mxu0 %v3529
        %v5558 = vpop.f32.mrb[0].mxu0
        %v5559 = vadd.f32 0.0, %v5558
        %v5560 = vpop.f32.mrb[0].mxu0
        %v5561 = vpop.f32.mrb[0].mxu0
        %v5562 = vadd.f32 0.0, %v5561
        %v5563 = vpop.f32.mrb[0].mxu0
        %5564 = vmatprep.mubr.bf16.mxu0 0
        %5565 = vmatmul.mubr.bf16.gmra.mrb[0].mxu0 %v3530
        %v5566 = vpop.f32.mrb[0].mxu0
        %v5567 = vadd.f32 0.0, %v5566
        %v5568 = vpop.f32.mrb[0].mxu0
        %v5569 = vpop.f32.mrb[0].mxu0
        %v5570 = vadd.f32 0.0, %v5569
        %v5571 = vpop.f32.mrb[0].mxu0
        %5572 = vmatprep.mubr.bf16.mxu0 0
        %5573 = vmatmul.mubr.bf16.gmra.mrb[0].mxu0 %v3531
        %v5574 = vpop.f32.mrb[0].mxu0
        %v5575 = vadd.f32 0.0, %v5574
        %v5576 = vpop.f32.mrb[0].mxu0
        %v5577 = vpop.f32.mrb[0].mxu0
        %v5578 = vadd.f32 0.0, %v5577
        %v5579 = vpop.f32.mrb[0].mxu0
        %5580 = vmatprep.mubr.bf16.mxu0 0
        %5581 = vmatmul.mubr.bf16.gmra.mrb[0].mxu0 %v3532
        %v5582 = vpop.f32.mrb[0].mxu0
        %v5583 = vadd.f32 0.0, %v5582
        %v5584 = vpop.f32.mrb[0].mxu0
        %v5585 = vpop.f32.mrb[0].mxu0
        %v5586 = vadd.f32 0.0, %v5585
        %v5587 = vpop.f32.mrb[0].mxu0
        %5588 = vmatprep.mubr.bf16.mxu0 0
        %5589 = vmatmul.mubr.bf16.gmra.mrb[0].mxu0 %v3533
        %v5590 = vpop.f32.mrb[0].mxu0
        %v5591 = vadd.f32 0.0, %v5590
        %v5592 = vpop.f32.mrb[0].mxu0
        %v5593 = vpop.f32.mrb[0].mxu0
        %v5594 = vadd.f32 0.0, %v5593
        %v5595 = vpop.f32.mrb[0].mxu0
        %5596 = vmatprep.mubr.bf16.mxu0 0
        %5597 = vmatmul.mubr.bf16.gmra.mrb[0].mxu0 %v3534
        %v5598 = vpop.f32.mrb[0].mxu0
        %v5599 = vadd.f32 0.0, %v5598
        %v5600 = vpop.f32.mrb[0].mxu0
        %v5601 = vpop.f32.mrb[0].mxu0
        %v5602 = vadd.f32 0.0, %v5601
        %v5603 = vpop.f32.mrb[0].mxu0
        %5604 = vmatprep.mubr.bf16.mxu0 0
        %5605 = vmatmul.mubr.bf16.gmra.mrb[0].mxu0 %v3535
        %v5606 = vpop.f32.mrb[0].mxu0
        %v5607 = vadd.f32 0.0, %v5606
        %v5608 = vpop.f32.mrb[0].mxu0
        %v5609 = vpop.f32.mrb[0].mxu0
        %v5610 = vadd.f32 0.0, %v5609
        %v5611 = vpop.f32.mrb[0].mxu0
        %5612 = vmatprep.mubr.bf16.mxu0 0
        %5613 = vmatmul.mubr.bf16.gmra.mrb[0].mxu0 %v3536
        %v5614 = vpop.f32.mrb[0].mxu0
        %v5615 = vadd.f32 0.0, %v5614
        %v5616 = vpop.f32.mrb[0].mxu0
        %v5617 = vpop.f32.mrb[0].mxu0
        %v5618 = vadd.f32 0.0, %v5617
        %v5619 = vpop.f32.mrb[0].mxu0
        %5620 = vmatprep.mubr.bf16.mxu0 0
        %5621 = vmatmul.mubr.bf16.gmra.mrb[0].mxu0 %v4401
        %v5622 = vpop.f32.mrb[0].mxu0
        %v5623 = vadd.f32 0.0, %v5622
        %v5624 = vpop.f32.mrb[0].mxu0
        %v5625 = vpop.f32.mrb[0].mxu0
        %v5626 = vadd.f32 0.0, %v5625
        %v5627 = vpop.f32.mrb[0].mxu0
        %5628 = vmatprep.mubr.bf16.mxu0 0
        %5629 = vmatmul.mubr.bf16.gmra.mrb[0].mxu0 %v5463
        %v5630 = vpop.f32.mrb[0].mxu0
        %v5631 = vadd.f32 0.0, %v5630
        %v5632 = vpop.f32.mrb[0].mxu0
        %v5633 = vpop.f32.mrb[0].mxu0
        %v5634 = vadd.f32 0.0, %v5633
        %v5635 = vpop.f32.mrb[0].mxu0
        %5636 = vmatprep.mubr.bf16.mxu0 0
        %5637 = vmatmul.mubr.bf16.gmra.mrb[0].mxu0 %v5464
        %v5638 = vpop.f32.mrb[0].mxu0
        %v5639 = vadd.f32 0.0, %v5638
        %v5640 = vpop.f32.mrb[0].mxu0
        %v5641 = vpop.f32.mrb[0].mxu0
        %v5642 = vadd.f32 0.0, %v5641
        %v5643 = vpop.f32.mrb[0].mxu0
        %5644 = vdwg.mxu0
        %v5645 = vadd.f32 %v5422, %v5551
        %v5646 = vadd.f32 %v5423, %v5554
        %v5647 = vadd.f32 %v5424, %v5559
        %v5648 = vadd.f32 %v5425, %v5562
        %v5649 = vadd.f32 %v5426, %v5567
        %v5650 = vadd.f32 %v5427, %v5570
        %v5651 = vadd.f32 %v5428, %v5575
        %v5652 = vadd.f32 %v5429, %v5578
        %v5653 = vadd.f32 %v5430, %v5583
        %v5654 = vadd.f32 %v5431, %v5586
        %v5655 = vadd.f32 %v5432, %v5591
        %v5656 = vadd.f32 %v5433, %v5594
        %v5657 = vadd.f32 %v5434, %v5599
        %v5658 = vadd.f32 %v5435, %v5602
        %v5659 = vadd.f32 %v5436, %v5607
        %v5660 = vadd.f32 %v5437, %v5610
        %v5661 = vadd.f32 %v5438, %v5615
        %v5662 = vadd.f32 %v5439, %v5618
        %v5663 = vadd.f32 %v5440, %v5623
        %v5664 = vadd.f32 %v5441, %v5626
        %v5665 = vadd.f32 %v5442, %v5631
        %v5666 = vadd.f32 %v5443, %v5634
        %v5667 = vadd.f32 %v5444, %v5639
        %v5668 = vadd.f32 %v5445, %v5642
        %s5669 = scalar_lea.vmem [#allocation8], 512
        %v5670 = vld [vmem:[%s5669] sm:$0xf]
        %v5671 = vld [vmem:[%s5669 + $0x4] sm:$0xf]
        %v5672 = vld [vmem:[%s5669 + $0x8] sm:$0xf]
        %v5673 = vld [vmem:[%s5669 + $0xc] sm:$0xf]
        %v5674 = vld [vmem:[%s5669 + $0x10] sm:$0xf]
        %v5675 = vld [vmem:[%s5669 + $0x14] sm:$0xf]
        %v5676 = vld [vmem:[%s5669 + $0x18] sm:$0xf]
        %v5677 = vld [vmem:[%s5669 + $0x1c] sm:$0xf]
        %v5678 = vld [vmem:[%s5669 + $0x20] sm:$0xf]
        %v5679 = vld [vmem:[%s5669 + $0x24] sm:$0xf]
        %v5680 = vld [vmem:[%s5669 + $0x28] sm:$0xf]
        %v5681 = vld [vmem:[%s5669 + $0x2c] sm:$0xf]
        %v5682 = vld [vmem:[%s5669 + $0x30] sm:$0xf]
        %v5683 = vld [vmem:[%s5669 + $0x34] sm:$0xf]
        %v5684 = vld [vmem:[%s5669 + $0x38] sm:$0xf]
        %v5685 = vld [vmem:[%s5669 + $0x3c] sm:$0xf]
        %v5687 = vunpack.c.l.b16 %v3443
        %v5688 = vpack.c.b16 %v5687, %v5687
        %v5689 = vrot.slane %v4450, 1
        %v5690 = vsel %vm494, %v4161, %v5689
        %v5691 = vor.u32 %v4447, %v5689
        %v5693 = vshll.u32 %v5463, 16
        %v5695 = vrot.slane %v5693, 1
        %v5696 = vsel %vm494, %v5691, %v5695
        %v5697 = vshrl.u32 %v5463, 16
        %v5699 = vor.u32 %v5697, %v5695
        %v5701 = vshll.u32 %v5464, 16
        %v5703 = vrot.slane %v5701, 1
        %v5704 = vsel %vm494, %v5699, %v5703
        %v5705 = vshrl.u32 %v5464, 16
        %v5707 = vor.u32 %v5705, %v5703
        %v5709 = vshll.u32 %v5688, 16
        %v5711 = vrot.slane %v5709, 1
        %v5712 = vsel %vm494, %v5707, %v5711
        %v5733 = vunpack.c.l.b16 %v5670
        %v5734 = vunpack.c.l.b16 %v5671
        %v5735 = vunpack.c.l.b16 %v5672
        %v5736 = vunpack.c.l.b16 %v5673
        %v5737 = vunpack.c.l.b16 %v5674
        %v5738 = vunpack.c.l.b16 %v5675
        %v5739 = vunpack.c.l.b16 %v5676
        %v5740 = vunpack.c.l.b16 %v5677
        %v5741 = vunpack.c.l.b16 %v5678
        %v5742 = vunpack.c.l.b16 %v5679
        %v5743 = vunpack.c.l.b16 %v5680
        %v5744 = vunpack.c.l.b16 %v5681
        %v5745 = vunpack.c.l.b16 %v5682
        %v5746 = vunpack.c.l.b16 %v5683
        %v5747 = vunpack.c.l.b16 %v5684
        %v5748 = vunpack.c.l.b16 %v5685
        %v5749 = vpack.c.b16 %v5734, %v5733
        %v5750 = vpack.c.b16 %v5736, %v5735
        %v5751 = vpack.c.b16 %v5738, %v5737
        %v5752 = vpack.c.b16 %v5740, %v5739
        %v5753 = vpack.c.b16 %v5742, %v5741
        %v5754 = vpack.c.b16 %v5744, %v5743
        %v5755 = vpack.c.b16 %v5746, %v5745
        %v5756 = vpack.c.b16 %v5748, %v5747
        %5765 = vmatprep.subr.bf16.mxu0 0
        %5766 = vmatpush1.bf16.msra.mxu0 %v5749
        %5767 = vmatprep.subr.bf16.mxu0 0
        %5768 = vmatpush1.bf16.msra.mxu0 %v5750
        %5769 = vmatprep.subr.bf16.mxu0 0
        %5770 = vmatpush1.bf16.msra.mxu0 %v5751
        %5771 = vmatprep.subr.bf16.mxu0 0
        %5772 = vmatpush1.bf16.msra.mxu0 %v5752
        %5773 = vmatprep.subr.bf16.mxu0 0
        %5774 = vmatpush1.bf16.msra.mxu0 %v5753
        %5775 = vmatprep.subr.bf16.mxu0 0
        %5776 = vmatpush1.bf16.msra.mxu0 %v5754
        %5777 = vmatprep.subr.bf16.mxu0 0
        %5778 = vmatpush1.bf16.msra.mxu0 %v5755
        %5779 = vmatprep.subr.bf16.mxu0 0
        %5780 = vmatpush1.bf16.msra.mxu0 %v5756
        %5781 = vmatprep.subr.bf16.mxu0 0
        %5782 = vmatpush1.bf16.msra.mxu0 0
        %5783 = vmatprep.subr.bf16.mxu0 0
        %5784 = vmatpush1.bf16.msra.mxu0 0
        %5785 = vmatprep.subr.bf16.mxu0 0
        %5786 = vmatpush1.bf16.msra.mxu0 0
        %5787 = vmatprep.subr.bf16.mxu0 0
        %5788 = vmatpush1.bf16.msra.mxu0 0
        %5789 = vmatprep.subr.bf16.mxu0 0
        %5790 = vmatpush1.bf16.msra.mxu0 0
        %5791 = vmatprep.subr.bf16.mxu0 0
        %5792 = vmatpush1.bf16.msra.mxu0 0
        %5793 = vmatprep.subr.bf16.mxu0 0
        %5794 = vmatpush1.bf16.msra.mxu0 0
        %5795 = vmatprep.subr.bf16.mxu0 0
        %5796 = vmatpush1.bf16.msra.mxu0 0
        %5797 = vmatprep.mubr.bf16.mxu0 0
        %5798 = vmatmul.mubr.bf16.gmra.mrb[0].mxu0 %v4102
        %v5799 = vpop.f32.mrb[0].mxu0
        %v5800 = vadd.f32 0.0, %v5799
        %v5801 = vpop.f32.mrb[0].mxu0
        %v5802 = vpop.f32.mrb[0].mxu0
        %v5803 = vadd.f32 0.0, %v5802
        %v5804 = vpop.f32.mrb[0].mxu0
        %5805 = vmatprep.mubr.bf16.mxu0 0
        %5806 = vmatmul.mubr.bf16.gmra.mrb[0].mxu0 %v4110
        %v5807 = vpop.f32.mrb[0].mxu0
        %v5808 = vadd.f32 0.0, %v5807
        %v5809 = vpop.f32.mrb[0].mxu0
        %v5810 = vpop.f32.mrb[0].mxu0
        %v5811 = vadd.f32 0.0, %v5810
        %v5812 = vpop.f32.mrb[0].mxu0
        %5813 = vmatprep.mubr.bf16.mxu0 0
        %5814 = vmatmul.mubr.bf16.gmra.mrb[0].mxu0 %v4118
        %v5815 = vpop.f32.mrb[0].mxu0
        %v5816 = vadd.f32 0.0, %v5815
        %v5817 = vpop.f32.mrb[0].mxu0
        %v5818 = vpop.f32.mrb[0].mxu0
        %v5819 = vadd.f32 0.0, %v5818
        %v5820 = vpop.f32.mrb[0].mxu0
        %5821 = vmatprep.mubr.bf16.mxu0 0
        %5822 = vmatmul.mubr.bf16.gmra.mrb[0].mxu0 %v4126
        %v5823 = vpop.f32.mrb[0].mxu0
        %v5824 = vadd.f32 0.0, %v5823
        %v5825 = vpop.f32.mrb[0].mxu0
        %v5826 = vpop.f32.mrb[0].mxu0
        %v5827 = vadd.f32 0.0, %v5826
        %v5828 = vpop.f32.mrb[0].mxu0
        %5829 = vmatprep.mubr.bf16.mxu0 0
        %5830 = vmatmul.mubr.bf16.gmra.mrb[0].mxu0 %v4134
        %v5831 = vpop.f32.mrb[0].mxu0
        %v5832 = vadd.f32 0.0, %v5831
        %v5833 = vpop.f32.mrb[0].mxu0
        %v5834 = vpop.f32.mrb[0].mxu0
        %v5835 = vadd.f32 0.0, %v5834
        %v5836 = vpop.f32.mrb[0].mxu0
        %5837 = vmatprep.mubr.bf16.mxu0 0
        %5838 = vmatmul.mubr.bf16.gmra.mrb[0].mxu0 %v4142
        %v5839 = vpop.f32.mrb[0].mxu0
        %v5840 = vadd.f32 0.0, %v5839
        %v5841 = vpop.f32.mrb[0].mxu0
        %v5842 = vpop.f32.mrb[0].mxu0
        %v5843 = vadd.f32 0.0, %v5842
        %v5844 = vpop.f32.mrb[0].mxu0
        %5845 = vmatprep.mubr.bf16.mxu0 0
        %5846 = vmatmul.mubr.bf16.gmra.mrb[0].mxu0 %v4150
        %v5847 = vpop.f32.mrb[0].mxu0
        %v5848 = vadd.f32 0.0, %v5847
        %v5849 = vpop.f32.mrb[0].mxu0
        %v5850 = vpop.f32.mrb[0].mxu0
        %v5851 = vadd.f32 0.0, %v5850
        %v5852 = vpop.f32.mrb[0].mxu0
        %5853 = vmatprep.mubr.bf16.mxu0 0
        %5854 = vmatmul.mubr.bf16.gmra.mrb[0].mxu0 %v4158
        %v5855 = vpop.f32.mrb[0].mxu0
        %v5856 = vadd.f32 0.0, %v5855
        %v5857 = vpop.f32.mrb[0].mxu0
        %v5858 = vpop.f32.mrb[0].mxu0
        %v5859 = vadd.f32 0.0, %v5858
        %v5860 = vpop.f32.mrb[0].mxu0
        %5861 = vmatprep.mubr.bf16.mxu0 0
        %5862 = vmatmul.mubr.bf16.gmra.mrb[0].mxu0 %v5690
        %v5863 = vpop.f32.mrb[0].mxu0
        %v5864 = vadd.f32 0.0, %v5863
        %v5865 = vpop.f32.mrb[0].mxu0
        %v5866 = vpop.f32.mrb[0].mxu0
        %v5867 = vadd.f32 0.0, %v5866
        %v5868 = vpop.f32.mrb[0].mxu0
        %5869 = vmatprep.mubr.bf16.mxu0 0
        %5870 = vmatmul.mubr.bf16.gmra.mrb[0].mxu0 %v5696
        %v5871 = vpop.f32.mrb[0].mxu0
        %v5872 = vadd.f32 0.0, %v5871
        %v5873 = vpop.f32.mrb[0].mxu0
        %v5874 = vpop.f32.mrb[0].mxu0
        %v5875 = vadd.f32 0.0, %v5874
        %v5876 = vpop.f32.mrb[0].mxu0
        %5877 = vmatprep.mubr.bf16.mxu0 0
        %5878 = vmatmul.mubr.bf16.gmra.mrb[0].mxu0 %v5704
        %v5879 = vpop.f32.mrb[0].mxu0
        %v5880 = vadd.f32 0.0, %v5879
        %v5881 = vpop.f32.mrb[0].mxu0
        %v5882 = vpop.f32.mrb[0].mxu0
        %v5883 = vadd.f32 0.0, %v5882
        %v5884 = vpop.f32.mrb[0].mxu0
        %5885 = vmatprep.mubr.bf16.mxu0 0
        %5886 = vmatmul.mubr.bf16.gmra.mrb[0].mxu0 %v5712
        %v5887 = vpop.f32.mrb[0].mxu0
        %v5888 = vadd.f32 0.0, %v5887
        %v5889 = vpop.f32.mrb[0].mxu0
        %v5890 = vpop.f32.mrb[0].mxu0
        %v5891 = vadd.f32 0.0, %v5890
        %v5892 = vpop.f32.mrb[0].mxu0
        %5893 = vdwg.mxu0
        %v5894 = vadd.f32 %v5645, %v5800
        %v5895 = vadd.f32 %v5646, %v5803
        %v5896 = vadd.f32 %v5647, %v5808
        %v5897 = vadd.f32 %v5648, %v5811
        %v5898 = vadd.f32 %v5649, %v5816
        %v5899 = vadd.f32 %v5650, %v5819
        %v5900 = vadd.f32 %v5651, %v5824
        %v5901 = vadd.f32 %v5652, %v5827
        %v5902 = vadd.f32 %v5653, %v5832
        %v5903 = vadd.f32 %v5654, %v5835
        %v5904 = vadd.f32 %v5655, %v5840
        %v5905 = vadd.f32 %v5656, %v5843
        %v5906 = vadd.f32 %v5657, %v5848
        %v5907 = vadd.f32 %v5658, %v5851
        %v5908 = vadd.f32 %v5659, %v5856
        %v5909 = vadd.f32 %v5660, %v5859
        %v5910 = vadd.f32 %v5661, %v5864
        %v5911 = vadd.f32 %v5662, %v5867
        %v5912 = vadd.f32 %v5663, %v5872
        %v5913 = vadd.f32 %v5664, %v5875
        %v5914 = vadd.f32 %v5665, %v5880
        %v5915 = vadd.f32 %v5666, %v5883
        %v5916 = vadd.f32 %v5667, %v5888
        %v5917 = vadd.f32 %v5668, %v5891
        %v5918 = vld [vmem:[%s4] sm:$0x1]
        %v5920 = vlaneseq
        %v5921 = vshrl.u32 %v5920, 7
        %v5922 = vsub.s32 0, %v5921
        %v5923 = vrot.slane %v5918, %v5922
        %v5925 = vadd.f32 %v5894, %v5923
        %v5926 = vadd.f32 %v5895, %v5923
        %v5927 = vadd.f32 %v5896, %v5923
        %v5928 = vadd.f32 %v5897, %v5923
        %v5929 = vadd.f32 %v5898, %v5923
        %v5930 = vadd.f32 %v5899, %v5923
        %v5931 = vadd.f32 %v5900, %v5923
        %v5932 = vadd.f32 %v5901, %v5923
        %v5933 = vadd.f32 %v5902, %v5923
        %v5934 = vadd.f32 %v5903, %v5923
        %v5935 = vadd.f32 %v5904, %v5923
        %v5936 = vadd.f32 %v5905, %v5923
        %v5937 = vadd.f32 %v5906, %v5923
        %v5938 = vadd.f32 %v5907, %v5923
        %v5939 = vadd.f32 %v5908, %v5923
        %v5940 = vadd.f32 %v5909, %v5923
        %v5941 = vadd.f32 %v5910, %v5923
        %v5942 = vadd.f32 %v5911, %v5923
        %v5943 = vadd.f32 %v5912, %v5923
        %v5944 = vadd.f32 %v5913, %v5923
        %v5945 = vadd.f32 %v5914, %v5923
        %v5946 = vadd.f32 %v5915, %v5923
        %v5947 = vadd.f32 %v5916, %v5923
        %v5948 = vadd.f32 %v5917, %v5923
        %v5949 = vunpack.c.l.bf16 %v352
        %v5950 = vunpack.c.l.bf16 %v353
        %v5951 = vunpack.c.l.bf16 %v354
        %v5952 = vunpack.c.l.bf16 %v355
        %v5953 = vunpack.c.l.bf16 %v356
        %v5954 = vunpack.c.l.bf16 %v357
        %v5955 = vunpack.c.l.bf16 %v358
        %v5956 = vunpack.c.l.bf16 %v359
        %v5957 = vunpack.c.l.bf16 %v360
        %v5958 = vunpack.c.l.bf16 %v361
        %v5959 = vunpack.c.l.bf16 %v362
        %v5960 = vunpack.c.l.bf16 %v363
        %v5961 = vunpack.c.l.bf16 %v364
        %v5962 = vunpack.c.l.bf16 %v365
        %v5963 = vunpack.c.l.bf16 %v366
        %v5964 = vunpack.c.l.bf16 %v367
        %v5965 = vunpack.c.l.bf16 %v368
        %v5966 = vunpack.c.l.bf16 %v369
        %v5967 = vunpack.c.l.bf16 %v370
        %v5968 = vunpack.c.l.bf16 %v371
        %v5969 = vunpack.c.l.bf16 %v372
        %v5970 = vunpack.c.l.bf16 %v373
        %v5971 = vunpack.c.l.bf16 %v374
        %v5972 = vunpack.c.l.bf16 %v375
        %v5973 = vunpack.c.l.bf16 %v376
        %vm5999 = vcmask 1046528
        %v6000 = vrot.slane %v5949, 1
        %v6001 = vrot.slane %v5950, 1
        %v6002 = vsel %vm5999, %v6000, %v6001
        %v6003 = vrot.slane %v5951, 1
        %v6004 = vsel %vm5999, %v6001, %v6003
        %v6005 = vrot.slane %v5952, 1
        %v6006 = vsel %vm5999, %v6003, %v6005
        %v6007 = vrot.slane %v5953, 1
        %v6008 = vsel %vm5999, %v6005, %v6007
        %v6009 = vrot.slane %v5954, 1
        %v6010 = vsel %vm5999, %v6007, %v6009
        %v6011 = vrot.slane %v5955, 1
        %v6012 = vsel %vm5999, %v6009, %v6011
        %v6013 = vrot.slane %v5956, 1
        %v6014 = vsel %vm5999, %v6011, %v6013
        %v6015 = vrot.slane %v5957, 1
        %v6016 = vsel %vm5999, %v6013, %v6015
        %v6017 = vrot.slane %v5958, 1
        %v6018 = vsel %vm5999, %v6015, %v6017
        %v6019 = vrot.slane %v5959, 1
        %v6020 = vsel %vm5999, %v6017, %v6019
        %v6021 = vrot.slane %v5960, 1
        %v6022 = vsel %vm5999, %v6019, %v6021
        %v6023 = vrot.slane %v5961, 1
        %v6024 = vsel %vm5999, %v6021, %v6023
        %v6025 = vrot.slane %v5962, 1
        %v6026 = vsel %vm5999, %v6023, %v6025
        %v6027 = vrot.slane %v5963, 1
        %v6028 = vsel %vm5999, %v6025, %v6027
        %v6029 = vrot.slane %v5964, 1
        %v6030 = vsel %vm5999, %v6027, %v6029
        %v6031 = vrot.slane %v5965, 1
        %v6032 = vsel %vm5999, %v6029, %v6031
        %v6033 = vrot.slane %v5966, 1
        %v6034 = vsel %vm5999, %v6031, %v6033
        %v6035 = vrot.slane %v5967, 1
        %v6036 = vsel %vm5999, %v6033, %v6035
        %v6037 = vrot.slane %v5968, 1
        %v6038 = vsel %vm5999, %v6035, %v6037
        %v6039 = vrot.slane %v5969, 1
        %v6040 = vsel %vm5999, %v6037, %v6039
        %v6041 = vrot.slane %v5970, 1
        %v6042 = vsel %vm5999, %v6039, %v6041
        %v6043 = vrot.slane %v5971, 1
        %v6044 = vsel %vm5999, %v6041, %v6043
        %v6045 = vrot.slane %v5972, 1
        %v6046 = vsel %vm5999, %v6043, %v6045
        %v6047 = vrot.slane %v5973, 1
        %v6048 = vsel %vm5999, %v6045, %v6047
        %v6073 = vadd.f32 %v5925, %v6002
        %v6074 = vadd.f32 %v5926, %v6004
        %v6075 = vadd.f32 %v5927, %v6006
        %v6076 = vadd.f32 %v5928, %v6008
        %v6077 = vadd.f32 %v5929, %v6010
        %v6078 = vadd.f32 %v5930, %v6012
        %v6079 = vadd.f32 %v5931, %v6014
        %v6080 = vadd.f32 %v5932, %v6016
        %v6081 = vadd.f32 %v5933, %v6018
        %v6082 = vadd.f32 %v5934, %v6020
        %v6083 = vadd.f32 %v5935, %v6022
        %v6084 = vadd.f32 %v5936, %v6024
        %v6085 = vadd.f32 %v5937, %v6026
        %v6086 = vadd.f32 %v5938, %v6028
        %v6087 = vadd.f32 %v5939, %v6030
        %v6088 = vadd.f32 %v5940, %v6032
        %v6089 = vadd.f32 %v5941, %v6034
        %v6090 = vadd.f32 %v5942, %v6036
        %v6091 = vadd.f32 %v5943, %v6038
        %v6092 = vadd.f32 %v5944, %v6040
        %v6093 = vadd.f32 %v5945, %v6042
        %v6094 = vadd.f32 %v5946, %v6044
        %v6095 = vadd.f32 %v5947, %v6046
        %v6096 = vadd.f32 %v5948, %v6048
        %6097 = vst [vmem:[%s261] sm:$0xff] %v6073
        %6098 = vst [vmem:[%s261 + $0x8] sm:$0xff] %v6074
        %6099 = vst [vmem:[%s261 + $0x10] sm:$0xff] %v6075
        %6100 = vst [vmem:[%s261 + $0x18] sm:$0xff] %v6076
        %6101 = vst [vmem:[%s261 + $0x20] sm:$0xff] %v6077
        %6102 = vst [vmem:[%s261 + $0x28] sm:$0xff] %v6078
        %6103 = vst [vmem:[%s261 + $0x30] sm:$0xff] %v6079
        %6104 = vst [vmem:[%s261 + $0x38] sm:$0xff] %v6080
        %6105 = vst [vmem:[%s261 + $0x40] sm:$0xff] %v6081
        %6106 = vst [vmem:[%s261 + $0x48] sm:$0xff] %v6082
        %6107 = vst [vmem:[%s261 + $0x50] sm:$0xff] %v6083
        %6108 = vst [vmem:[%s261 + $0x58] sm:$0xff] %v6084
        %6109 = vst [vmem:[%s261 + $0x60] sm:$0xff] %v6085
        %6110 = vst [vmem:[%s261 + $0x68] sm:$0xff] %v6086
        %6111 = vst [vmem:[%s261 + $0x70] sm:$0xff] %v6087
        %6112 = vst [vmem:[%s261 + $0x78] sm:$0xff] %v6088
        %6113 = vst [vmem:[%s261 + $0x80] sm:$0xff] %v6089
        %6114 = vst [vmem:[%s261 + $0x88] sm:$0xff] %v6090
        %6115 = vst [vmem:[%s261 + $0x90] sm:$0xff] %v6091
        %6116 = vst [vmem:[%s261 + $0x98] sm:$0xff] %v6092
        %6117 = vst [vmem:[%s261 + $0xa0] sm:$0xff] %v6093
        %6118 = vst [vmem:[%s261 + $0xa8] sm:$0xff] %v6094
        %6119 = vst [vmem:[%s261 + $0xb0] sm:$0xff] %v6095
        %6120 = vst [vmem:[%s261 + $0xb8] sm:$0xff] %v6096
        %s6121 = sand.u32 %s149, 1
        %s6122 = scalar_lea.sflag [#allocation7], %s6121
        %s6123 = sand.u32 %s149, 1
        %s6124 = smul.addr %s6123, 192
        %s6125 = scalar_lea.vmem [#allocation11], %s6124
        // Predicated region
        $region77: #{tpu_custom_call.1} parent=39 // pred_check
          %p6126 = pneg %p159
        $region78: #{tpu_custom_call.1} parent=39 // pred_check_branch
          %6128 = sbr.rel (%p6126) target = $region80
        $region79: #{tpu_custom_call.1} parent=39 // pred_region
          %s6129 = smul.u32 24, %s27
          %s6131 = ssub.s32 3072, 3072
          %6132 = vsyncadd %s6122, %s6131
          %s6133 = smul.addr %s26, 48
          %s6134 = sadd.s32 %s6129, %s6133
          %s6135 = smul.addr %s6134, 128
          %s6136 = scalar_lea.hbm %s6, %s6135
          %s6137 = sshll.u32 %s6125, 4
          %s6138 = int_to_ptr.vmem [resolvable:$true] %s6137
          %6143 = dma.vmem_to_hbm [thread:$0]  %s6138, 3072, %s6136, %s6122, 128, 128, 8
        $region80: #{tpu_custom_call.1} parent=39 // pred_fallthru
          _
      $region40: #{tpu_custom_call.1} parent=5 // pred_fallthru
        _
      %p6144 = scmp.le.s32.totalorder 2, %s17
      // Predicated region
      $region81: #{tpu_custom_call.1} parent=5 // pred_check
        %p6145 = pneg %p6144
      $region82: #{tpu_custom_call.1} parent=5 // pred_check_branch
        %6147 = sbr.rel (%p6145) target = $region84
      $region83: #{tpu_custom_call.1} parent=5 // pred_region
        %s6148 = ssub.s32 %s17, 2
        // Predicated region
        $region85: #{tpu_custom_call.1} parent=83 // pred_check
          %p6149 = pneg %p165
        $region86: #{tpu_custom_call.1} parent=83 // pred_check_branch
          %6151 = sbr.rel (%p6149) target = $region88
        $region87: #{tpu_custom_call.1} parent=83 // pred_region
          %s6152 = sand.u32 %s150, 1
          %s6153 = scalar_lea.sflag [#allocation7], %s6152
          %s6154 = sand.u32 %s150, 1
          %s6155 = smul.addr %s6154, 192
          %s6156 = scalar_lea.vmem [#allocation11], %s6155
          %6157 = dma.done %s6153, 3072
        $region88: #{tpu_custom_call.1} parent=83 // pred_fallthru
          _
      $region84: #{tpu_custom_call.1} parent=5 // pred_fallthru
        _
    $region6: #{tpu_custom_call.1} parent=1 // loop_footer
      %s21 = sadd.s32 1, %s17
    $region7: #{tpu_custom_call.1} parent=1 // loop_footer_branch
      %16 = sbr.rel target = $region3
    $region8: #{tpu_custom_call.1} parent=1 // loop_exit
      _
    %6158 = vsyncpa [#allocation6], 1
    %s6159 = scalar_lea.sflag [#allocation6], 1
    %6160 = vsyncpa %s6159, 1
    %6161 = vsyncpa [#allocation9], 1
    %6162 = vsyncpa [#allocation7], 1
    %s6163 = scalar_lea.sflag [#allocation7], 1
    %6164 = vsyncpa %s6163, 1
  %6165 = vsyncmov [#allocation4]
  %s6166 = vpop.sfrf %6165
  %p6167 = scmp.eq.s32.totalorder %s6166, 0
  %p6168 = pneg %p6167
  %6170 = shalt.err (%p6168)
  %s6171 = scalar_lea.sflag [#allocation4], 1
  %6172 = vsyncmov %s6171
  %s6173 = vpop.sfrf %6172
  %p6174 = scmp.eq.s32.totalorder %s6173, 0
  %p6175 = pneg %p6174
  %6177 = shalt.err (%p6175)

</llo_original>
